<compile_context>
chip_gen: v6e
topology: v6e:2x2x1
jax: 0.10.0
libtpu: 0.0.40
codegen_flags: <defaults>
</compile_context>

<pallas_src>
import jax
import jax.numpy as jnp
from jax.experimental import pallas as pl
from jax.experimental.pallas import tpu as pltpu

LN_EPS = 1e-5  # PyTorch nn.LayerNorm default eps


def attention_pooling_kernel(x_ref, wp_ref, bp_ref, g_ref, beta_ref, wa_ref, ba_ref, o_ref):
    TB, S, Din = x_ref.shape
    P = wp_ref.shape[1]

    # ---- Projection: one MXU matmul over the whole batch tile. Activations are
    #      widened/narrowed to the weight dtype in VMEM only (HBM read stays in
    #      the caller's dtype); accumulation is always f32.
    x2 = x_ref[...].reshape(TB * S, Din).astype(wp_ref.dtype)
    xproj = jnp.dot(x2, wp_ref[...],
                    preferred_element_type=jnp.float32) + bp_ref[...]      # (TB*S, P) f32

    # ---- Scorer trunk: LayerNorm(P) -> ReLU (LN stats are data-dependent).
    mu = jnp.mean(xproj, axis=-1, keepdims=True)
    diff = xproj - mu
    var = jnp.mean(diff * diff, axis=-1, keepdims=True)       # biased var (PyTorch LN)
    h = diff * jax.lax.rsqrt(var + LN_EPS) * g_ref[...] + beta_ref[...]
    h = jnp.maximum(h, 0.0)

    # ---- Linear(P -> 1): row-wise dot with the (1, P) weight row (lane reduce).
    scores = jnp.sum(h * wa_ref[...], axis=-1, keepdims=True) + ba_ref[...]   # (TB*S, 1)

    # ---- Softmax over the sequence axis, independently per batch element.
    #      Divide goes through the EUP reciprocal (otherwise-idle slot) + one
    #      Newton step to recover full f32 accuracy.
    s3 = scores.reshape(TB, S, 1)
    m = jnp.max(s3, axis=1, keepdims=True)
    e = jnp.exp(s3 - m)
    denom = jnp.sum(e, axis=1, keepdims=True)
    inv = pl.reciprocal(denom, approx=True)
    inv = inv * (2.0 - denom * inv)                            # Newton refinement
    w = e * inv                                                # (TB, S, 1)

    # ---- Weighted pooling of the (pre-LayerNorm) projected features.
    xp3 = xproj.reshape(TB, S, P)
    o_ref[...] = jnp.sum(w * xp3, axis=1).astype(o_ref.dtype)  # (TB, P) lane-dense


def prepare_params(p, *, matmul_dtype=jnp.float32):
    """One-time preprocessing into kernel layout (outside the hot path).
    matmul_dtype=jnp.bfloat16 selects the fast bf16 MXU path for the projection
    (accumulation stays f32); default keeps exact f32 semantics."""
    P, Din = p["wp"].shape
    return dict(
        wp_t=jnp.asarray(p["wp"].T, matmul_dtype),              # (Din, P)  pre-transposed
        bp=jnp.asarray(p["bp"], jnp.float32).reshape(1, P),
        g=jnp.asarray(p["g"], jnp.float32).reshape(1, P),
        beta=jnp.asarray(p["beta"], jnp.float32).reshape(1, P),
        wa=jnp.asarray(p["wa"], jnp.float32).reshape(1, P),     # Linear(P,1) weight row
        ba=jnp.asarray(p["ba"], jnp.float32).reshape(1, 1),
    )


def _choose_tb(B, S, Din, P, *, vmem_budget_bytes=24 << 20, max_rows=4096):
    """Largest batch tile whose f32 working set fits a conservative VMEM budget
    (safe inside v7x's 32 MiB scoped default), capped at max_rows MXU rows and
    at ~B/2 so the grid keeps >=2 steps for v7x's two TensorCores."""
    per_row = (3 * S * Din + 2 * S * P + 2 * P) * 4     # x (3-buf) + xproj/h + out (2-buf)
    resident = (2 * Din * P + 6 * P) * 4                # double-buffered weights + vectors
    cap = max(8, (vmem_budget_bytes - resident) // per_row)
    cap = min(cap, max(8, max_rows // max(S, 1)))
    tb = min(cap, max(8, pl.cdiv(B, 2)))
    return int(max(8, (tb // 8) * 8))                   # sublane-aligned output block


def attention_pooling(x, kp, *, tb=None):
    B, S, Din = x.shape
    P = kp["wp_t"].shape[1]
    if tb is None:
        tb = _choose_tb(B, S, Din, P)

    # Support non-divisible batch sizes: pad (zero rows are dropped below).
    Bp = pl.cdiv(B, tb) * tb
    if Bp != B:
        x = jnp.pad(x, ((0, Bp - B), (0, 0), (0, 0)))
    num_blocks = Bp // tb

    flops = 2 * Bp * S * Din * P + 10 * Bp * S * P            # proj matmul + scorer/pool
    bytes_accessed = int(x.size * x.dtype.itemsize
                         + 4 * (Din * P + 5 * P + 1 + Bp * P))

    x_map = lambda i: (i, 0, 0)
    if num_blocks >= 4:
        # x is the only streamed operand: a third buffer hides residual DMA.
        try:
            x_spec = pl.BlockSpec((tb, S, Din), x_map, pipeline_mode=pl.Buffered(3))
        except TypeError:  # pipeline_mode not supported on this JAX version
            x_spec = pl.BlockSpec((tb, S, Din), x_map)
    else:
        x_spec = pl.BlockSpec((tb, S, Din), x_map)

    out = pl.pallas_call(
        attention_pooling_kernel,
        out_shape=jax.ShapeDtypeStruct((Bp, P), x.dtype),
        grid_spec=pltpu.PrefetchScalarGridSpec(
            num_scalar_prefetch=0,
            grid=(num_blocks,),
            in_specs=[
                x_spec,                                          # batch-tiled activations
                pl.BlockSpec((Din, P), lambda i: (0, 0)),        # VMEM-resident weights
                pl.BlockSpec((1, P), lambda i: (0, 0)),
                pl.BlockSpec((1, P), lambda i: (0, 0)),
                pl.BlockSpec((1, P), lambda i: (0, 0)),
                pl.BlockSpec((1, P), lambda i: (0, 0)),
                pl.BlockSpec((1, 1), lambda i: (0, 0)),
            ],
            out_specs=pl.BlockSpec((tb, P), lambda i: (i, 0)),   # lane-dense output
        ),
        compiler_params=pltpu.CompilerParams(
            dimension_semantics=("parallel",),       # shard batch across TCs on v7x
            vmem_limit_bytes=32 * 1024 * 1024,       # > v5e's 16 MiB scoped default
        ),
        cost_estimate=pl.CostEstimate(
            flops=flops, transcendentals=2 * Bp * S, bytes_accessed=bytes_accessed),
    )(x, kp["wp_t"], kp["bp"], kp["g"], kp["beta"], kp["wa"], kp["ba"])

    return out[:B] if Bp != B else out


def attention_pooling_ref(x, p):
    """Pure-JAX reference (PyTorch semantics)."""
    xproj = jnp.einsum("bsi,pi->bsp", x, p["wp"]) + p["bp"]
    mu = jnp.mean(xproj, axis=-1, keepdims=True)
    var = jnp.mean((xproj - mu) ** 2, axis=-1, keepdims=True)
    h = (xproj - mu) * jax.lax.rsqrt(var + LN_EPS) * p["g"] + p["beta"]
    h = jnp.maximum(h, 0.0)
    scores = jnp.einsum("bsp,p->bs", h, p["wa"][0]) + p["ba"][0]
    w = jax.nn.softmax(scores, axis=1)[..., None]
    return jnp.sum(w * xproj, axis=1)


if __name__ == "__main__":
    # Lane-aligned shapes: batch=128, seq=8, in_dim=128, proj_dim=256.
    # Auto tiling picks tb=64 -> grid=2 (both v7x TCs busy), 512 MXU rows/step.
    B, S, Din, P = 128, 8, 128, 256
    key = jax.random.PRNGKey(0)
    ks = jax.random.split(key, 7)

    x = jax.random.normal(ks[0], (B, S, Din), dtype=jnp.float32)

    params = {
        # PyTorch conventions: proj.weight is (proj_dim, in_dim), attn[2].weight is (1, proj_dim)
        "wp": jax.random.normal(ks[1], (P, Din), dtype=jnp.float32) / jnp.sqrt(Din),
        "bp": 0.1 * jax.random.normal(ks[2], (P,), dtype=jnp.float32),
        "g": 1.0 + 0.1 * jax.random.normal(ks[3], (P,), dtype=jnp.float32),   # LN gamma
        "beta": 0.1 * jax.random.normal(ks[4], (P,), dtype=jnp.float32),      # LN beta
        "wa": jax.random.normal(ks[5], (1, P), dtype=jnp.float32) / jnp.sqrt(P),
        "ba": 0.1 * jax.random.normal(ks[6], (1,), dtype=jnp.float32),
    }

    kp = prepare_params(params)                    # one-time layout prep (no per-call .T)
    out = jax.block_until_ready(attention_pooling(x, kp))

    ref = attention_pooling_ref(x, params)
    assert out.shape == (B, P)
    assert jnp.allclose(out, ref, atol=1e-4, rtol=1e-4), "mismatch vs. JAX reference"

    print("KERNEL_OK")
</pallas_src>

<mosaic_0001>
module attributes {stable_mosaic.version = 11 : i64} {
  func.func @attention_pooling_kernel(%arg0: i32, %arg1: memref<64x8x128xf32, #tpu.memory_space<vmem>>, %arg2: memref<128x256xf32, #tpu.memory_space<vmem>>, %arg3: memref<1x256xf32, #tpu.memory_space<vmem>>, %arg4: memref<1x256xf32, #tpu.memory_space<vmem>>, %arg5: memref<1x256xf32, #tpu.memory_space<vmem>>, %arg6: memref<1x256xf32, #tpu.memory_space<vmem>>, %arg7: memref<1x1xf32, #tpu.memory_space<vmem>>, %arg8: memref<64x256xf32, #tpu.memory_space<vmem>>) attributes {dimension_semantics = [#tpu.dimension_semantics<parallel>], iteration_bounds = array<i64: 2>, scalar_prefetch = 0 : i64, scratch_operands = 0 : i64, tpu.core_type = #tpu.core_type<tc>, window_params = [{transform_indices = @transform_0, window_bounds = array<i64: 64, 8, 128>}, {pipeline_mode = #tpu.pipeline_mode<synchronous>, transform_indices = @transform_1, window_bounds = array<i64: 128, 256>}, {pipeline_mode = #tpu.pipeline_mode<synchronous>, transform_indices = @transform_2, window_bounds = array<i64: 1, 256>}, {pipeline_mode = #tpu.pipeline_mode<synchronous>, transform_indices = @transform_3, window_bounds = array<i64: 1, 256>}, {pipeline_mode = #tpu.pipeline_mode<synchronous>, transform_indices = @transform_4, window_bounds = array<i64: 1, 256>}, {pipeline_mode = #tpu.pipeline_mode<synchronous>, transform_indices = @transform_5, window_bounds = array<i64: 1, 256>}, {pipeline_mode = #tpu.pipeline_mode<synchronous>, transform_indices = @transform_6, window_bounds = array<i64: 1, 1>}, {transform_indices = @transform_7, window_bounds = array<i64: 64, 256>}]} {
    %c0 = arith.constant 0 : index
    %c0_0 = arith.constant 0 : index
    %c0_1 = arith.constant 0 : index
    %0 = vector.load %arg1[%c0, %c0_0, %c0_1] : memref<64x8x128xf32, #tpu.memory_space<vmem>>, vector<64x8x128xf32>
    %1 = vector.shape_cast %0 : vector<64x8x128xf32> to vector<512x128xf32>
    %c0_2 = arith.constant 0 : index
    %c0_3 = arith.constant 0 : index
    %2 = vector.load %arg2[%c0_2, %c0_3] : memref<128x256xf32, #tpu.memory_space<vmem>>, vector<128x256xf32>
    %cst = arith.constant dense<0.000000e+00> : vector<512x256xf32>
    %3 = tpu.matmul %1, %2, %cst {dimension_numbers = #tpu.dot_dimension_numbers<[1], [0], [0], [1], [0, 0, 1, 1], [], []>} : vector<512x128xf32>, vector<128x256xf32>, vector<512x256xf32> -> vector<512x256xf32>
    %c0_4 = arith.constant 0 : index
    %c0_5 = arith.constant 0 : index
    %4 = vector.load %arg3[%c0_4, %c0_5] : memref<1x256xf32, #tpu.memory_space<vmem>>, vector<1x256xf32>
    %5 = vector.broadcast %4 : vector<1x256xf32> to vector<512x256xf32>
    %6 = arith.addf %3, %5 : vector<512x256xf32>
    %cst_6 = arith.constant dense<0.000000e+00> : vector<512xf32>
    %7 = vector.multi_reduction <add>, %6, %cst_6 [1] : vector<512x256xf32> to vector<512xf32>
    %8 = vector.shape_cast %7 : vector<512xf32> to vector<512x1xf32>
    %cst_7 = arith.constant 2.560000e+02 : f32
    %9 = vector.broadcast %cst_7 : f32 to vector<512x1xf32>
    %10 = arith.divf %8, %9 : vector<512x1xf32>
    %11 = vector.broadcast %10 : vector<512x1xf32> to vector<512x256xf32>
    %12 = arith.subf %6, %11 : vector<512x256xf32>
    %13 = arith.mulf %12, %12 : vector<512x256xf32>
    %cst_8 = arith.constant dense<0.000000e+00> : vector<512xf32>
    %14 = vector.multi_reduction <add>, %13, %cst_8 [1] : vector<512x256xf32> to vector<512xf32>
    %15 = vector.shape_cast %14 : vector<512xf32> to vector<512x1xf32>
    %cst_9 = arith.constant 2.560000e+02 : f32
    %16 = vector.broadcast %cst_9 : f32 to vector<512x1xf32>
    %17 = arith.divf %15, %16 : vector<512x1xf32>
    %cst_10 = arith.constant 9.99999974E-6 : f32
    %18 = vector.broadcast %cst_10 : f32 to vector<512x1xf32>
    %19 = arith.addf %17, %18 : vector<512x1xf32>
    %20 = math.rsqrt %19 : vector<512x1xf32>
    %21 = vector.broadcast %20 : vector<512x1xf32> to vector<512x256xf32>
    %22 = arith.mulf %12, %21 : vector<512x256xf32>
    %c0_11 = arith.constant 0 : index
    %c0_12 = arith.constant 0 : index
    %23 = vector.load %arg4[%c0_11, %c0_12] : memref<1x256xf32, #tpu.memory_space<vmem>>, vector<1x256xf32>
    %24 = vector.broadcast %23 : vector<1x256xf32> to vector<512x256xf32>
    %25 = arith.mulf %22, %24 : vector<512x256xf32>
    %c0_13 = arith.constant 0 : index
    %c0_14 = arith.constant 0 : index
    %26 = vector.load %arg5[%c0_13, %c0_14] : memref<1x256xf32, #tpu.memory_space<vmem>>, vector<1x256xf32>
    %27 = vector.broadcast %26 : vector<1x256xf32> to vector<512x256xf32>
    %28 = arith.addf %25, %27 : vector<512x256xf32>
    %cst_15 = arith.constant 0.000000e+00 : f32
    %29 = vector.broadcast %cst_15 : f32 to vector<512x256xf32>
    %30 = arith.maximumf %28, %29 : vector<512x256xf32>
    %c0_16 = arith.constant 0 : index
    %c0_17 = arith.constant 0 : index
    %31 = vector.load %arg6[%c0_16, %c0_17] : memref<1x256xf32, #tpu.memory_space<vmem>>, vector<1x256xf32>
    %32 = vector.broadcast %31 : vector<1x256xf32> to vector<512x256xf32>
    %33 = arith.mulf %30, %32 : vector<512x256xf32>
    %cst_18 = arith.constant dense<0.000000e+00> : vector<512xf32>
    %34 = vector.multi_reduction <add>, %33, %cst_18 [1] : vector<512x256xf32> to vector<512xf32>
    %35 = vector.shape_cast %34 : vector<512xf32> to vector<512x1xf32>
    %c0_19 = arith.constant 0 : index
    %c0_20 = arith.constant 0 : index
    %36 = vector.load %arg7[%c0_19, %c0_20] : memref<1x1xf32, #tpu.memory_space<vmem>>, vector<1x1xf32>
    %37 = vector.broadcast %36 : vector<1x1xf32> to vector<512x1xf32>
    %38 = arith.addf %35, %37 : vector<512x1xf32>
    %39 = vector.shape_cast %38 : vector<512x1xf32> to vector<64x8x1xf32>
    %cst_21 = arith.constant dense<0xFF800000> : vector<64x1xf32>
    %40 = vector.multi_reduction <maximumf>, %39, %cst_21 [1] : vector<64x8x1xf32> to vector<64x1xf32>
    %41 = vector.shape_cast %40 : vector<64x1xf32> to vector<64x1x1xf32>
    %42 = vector.broadcast %41 : vector<64x1x1xf32> to vector<64x8x1xf32>
    %43 = arith.subf %39, %42 : vector<64x8x1xf32>
    %44 = math.exp %43 : vector<64x8x1xf32>
    %cst_22 = arith.constant dense<0.000000e+00> : vector<64x1xf32>
    %45 = vector.multi_reduction <add>, %44, %cst_22 [1] : vector<64x8x1xf32> to vector<64x1xf32>
    %46 = vector.shape_cast %45 : vector<64x1xf32> to vector<64x1x1xf32>
    %47 = tpu.reciprocal %46 {approx = true} : vector<64x1x1xf32> -> vector<64x1x1xf32>
    %48 = arith.mulf %46, %47 : vector<64x1x1xf32>
    %cst_23 = arith.constant 2.000000e+00 : f32
    %49 = vector.broadcast %cst_23 : f32 to vector<64x1x1xf32>
    %50 = arith.subf %49, %48 : vector<64x1x1xf32>
    %51 = arith.mulf %47, %50 : vector<64x1x1xf32>
    %52 = vector.broadcast %51 : vector<64x1x1xf32> to vector<64x8x1xf32>
    %53 = arith.mulf %44, %52 : vector<64x8x1xf32>
    %54 = vector.shape_cast %6 : vector<512x256xf32> to vector<64x8x256xf32>
    %55 = vector.broadcast %53 : vector<64x8x1xf32> to vector<64x8x256xf32>
    %56 = arith.mulf %55, %54 : vector<64x8x256xf32>
    %cst_24 = arith.constant dense<0.000000e+00> : vector<64x256xf32>
    %57 = vector.multi_reduction <add>, %56, %cst_24 [1] : vector<64x8x256xf32> to vector<64x256xf32>
    %c0_25 = arith.constant 0 : index
    %c0_26 = arith.constant 0 : index
    %58 = vector.load %arg8[%c0_25, %c0_26] : memref<64x256xf32, #tpu.memory_space<vmem>>, vector<64x256xf32>
    tpu.vector_store %arg8[%c0_25, %c0_26], %57 {strides = array<i32>} : memref<64x256xf32, #tpu.memory_space<vmem>>, vector<64x256xf32>,
    return
  }
  func.func @transform_0(%arg0: i32) -> (i32, i32, i32) {
    %c0_i32 = arith.constant 0 : i32
    %c0_i32_0 = arith.constant 0 : i32
    %c0_i32_1 = arith.constant 0 : i32
    return %arg0, %c0_i32, %c0_i32_0 : i32, i32, i32
  }
  func.func @transform_1(%arg0: i32) -> (i32, i32) {
    %c0_i32 = arith.constant 0 : i32
    %c0_i32_0 = arith.constant 0 : i32
    %c0_i32_1 = arith.constant 0 : i32
    return %c0_i32, %c0_i32_0 : i32, i32
  }
  func.func @transform_2(%arg0: i32) -> (i32, i32) {
    %c0_i32 = arith.constant 0 : i32
    %c0_i32_0 = arith.constant 0 : i32
    %c0_i32_1 = arith.constant 0 : i32
    return %c0_i32, %c0_i32_0 : i32, i32
  }
  func.func @transform_3(%arg0: i32) -> (i32, i32) {
    %c0_i32 = arith.constant 0 : i32
    %c0_i32_0 = arith.constant 0 : i32
    %c0_i32_1 = arith.constant 0 : i32
    return %c0_i32, %c0_i32_0 : i32, i32
  }
  func.func @transform_4(%arg0: i32) -> (i32, i32) {
    %c0_i32 = arith.constant 0 : i32
    %c0_i32_0 = arith.constant 0 : i32
    %c0_i32_1 = arith.constant 0 : i32
    return %c0_i32, %c0_i32_0 : i32, i32
  }
  func.func @transform_5(%arg0: i32) -> (i32, i32) {
    %c0_i32 = arith.constant 0 : i32
    %c0_i32_0 = arith.constant 0 : i32
    %c0_i32_1 = arith.constant 0 : i32
    return %c0_i32, %c0_i32_0 : i32, i32
  }
  func.func @transform_6(%arg0: i32) -> (i32, i32) {
    %c0_i32 = arith.constant 0 : i32
    %c0_i32_0 = arith.constant 0 : i32
    %c0_i32_1 = arith.constant 0 : i32
    return %c0_i32, %c0_i32_0 : i32, i32
  }
  func.func @transform_7(%arg0: i32) -> (i32, i32) {
    %c0_i32 = arith.constant 0 : i32
    %c0_i32_0 = arith.constant 0 : i32
    return %arg0, %c0_i32 : i32, i32
  }
}

</mosaic_0001>

<llo_original>
// kernel: tpu_custom_call.1
$region0: #{tpu_custom_call.1}
  #allocation0 [shape = 'u32[]', space=smem, size = 0x4, offset = 0x4, fixed_abs, tag = 'smem constant byte address 0x4 - core index']
  #allocation1 [shape = 'u32[144,128]{1,0:T(1,128)}', space=vmem, size = 0x12000, scoped, tag = 'internal scratch']
  #allocation2 [shape = 'f32[1,1]{1,0:T(1,128)S(1)}', space=vmem, size = 0x200, scoped, tag = 'scoped memory for tpu_custom_call.1']
  %s0 = inlined_call_operand.hbm [shape: f32[128,8,128], index: 0, kind: input, shape index: {}]
  %s1 = inlined_call_operand.hbm [shape: f32[128,256], index: 1, kind: input, shape index: {}]
  %s2 = inlined_call_operand.vmem [shape: f32[1,256], index: 2, kind: input, shape index: {}]
  %s3 = inlined_call_operand.vmem [shape: f32[1,256], index: 3, kind: input, shape index: {}]
  %s4 = inlined_call_operand.vmem [shape: f32[1,256], index: 4, kind: input, shape index: {}]
  %s5 = inlined_call_operand.vmem [shape: f32[1,256], index: 5, kind: input, shape index: {}]
  %s6 = inlined_call_operand.<no memory space> [shape: f32[1,1], index: 6, kind: input, shape index: {}]
  %s7 = inlined_call_operand.hbm [shape: f32[128,256], index: 7, kind: output, shape index: {}]
  %s8 = sld [smem:[#allocation0]]
  $region69: #{tpu_custom_call.1} parent=0
    _
  %s10 = ssub.s32 1, %s8
  %s11 = scalar_select 0, %s10, %s8
  %v12 = vstv %s6
  %13 = vst [vmem:[#allocation2] sm:$0x1] %v12
  $region1: #{tpu_custom_call.1} parent=0
    #allocation3 [shape = 'u8[524288]{0}', space=vmem, size = 0x80000, scoped, tag = 'input window, operand 0']
    #allocation4 [shape = 's32[2]{0}', space=sflag, size = 0x8, scoped, tag = 'scoped memory for tpu_custom_call.1']
    #allocation5 [shape = 's32[2]{0}', space=sflag, size = 0x8, scoped, tag = 'scoped memory for tpu_custom_call.1']
    #allocation6 [shape = 'u8[131072]{0}', space=vmem, size = 0x20000, scoped, tag = 'input window, operand 1, single buffered']
    #allocation7 [shape = 's32[1]{0}', space=sflag, size = 0x4, scoped, tag = 'scoped memory for tpu_custom_call.1']
    #allocation8 [shape = 'u8[131072]{0}', space=vmem, size = 0x20000, scoped, tag = 'output window, operand 0']
    %14 = vsyncpa [#allocation4], 0
    %s15 = scalar_lea.sflag [#allocation4], 1
    %16 = vsyncpa %s15, 0
    %17 = vsyncpa [#allocation7], 0
    %18 = vsyncpa [#allocation5], 0
    %s19 = scalar_lea.sflag [#allocation5], 1
    %20 = vsyncpa %s19, 0
    loop: start=0, step=1, limit=4
    $region2: #{tpu_custom_call.1} parent=1 // loop_pre_header
      _
    $region3: #{tpu_custom_call.1} parent=1 // loop_header
      %s22 = sphi 0, %s26
      %p23 = scmp.ge.s32.totalorder %s22, 4
      %s32 = sphi 0, %s34
      %s35 = sphi 0, %s32
      %s36 = sphi 0, %s35
      %s52 = sphi 0, %s36
      %s56 = sphi 0, %s56
      %s58 = sphi 0, %s56
      %s59 = sphi 0, %s58
      %s73 = sphi 0, %s59
      %s77 = sphi 0, %s77
      %s79 = sphi 0, %s77
      %s80 = sphi 0, %s79
      %s94 = sphi 0, %s80
      %s98 = sphi 0, %s98
      %s100 = sphi 0, %s98
      %s101 = sphi 0, %s100
      %s115 = sphi 0, %s101
      %s119 = sphi 0, %s119
      %s121 = sphi 0, %s119
      %s122 = sphi 0, %s121
      %s136 = sphi 0, %s122
      %s140 = sphi 0, %s140
      %s142 = sphi 0, %s140
      %s143 = sphi 0, %s142
      %s157 = sphi 0, %s143
      %s161 = sphi 0, %s161
      %s163 = sphi 0, %s161
      %s164 = sphi 0, %s163
      %s178 = sphi 0, %s164
      %s184 = sphi 0, %s186
      %s187 = sphi 0, %s184
      %s188 = sphi 0, %s187
      %s204 = sphi 0, %s188
    $region4: #{tpu_custom_call.1} parent=1 // loop_header_branch
      %25 = sbr.rel (%p23) target = $region8
    $region5: #{tpu_custom_call.1} parent=1 // loop_body
      %s27 = ssub.s32 %s22, 1
      %s28 = ssub.s32 %s22, 2
      %s29 = sadd.s32 %s22, 1
      %s30 = ssub.s32 %s22, %s29
      %p31 = scmp.eq.s32.totalorder %s30, 0
      %s33 = sadd.s32 %s32, 1
      %s34 = scalar_select %p31, %s32, %s33
      %p37 = pneg %p31
      %p38 = scmp.eq.s32.totalorder %s22, 1
      %p39 = por %p37, %p38
      %p40 = scmp.ne.s32.totalorder %s32, %s35
      %p41 = scmp.eq.s32.totalorder %s22, 0
      %p42 = por %p40, %p41
      %p43 = scmp.ne.s32.totalorder %s32, %s35
      %p44 = scmp.eq.s32.totalorder %s27, 1
      %p45 = por %p43, %p44
      %p46 = scmp.ne.s32.totalorder %s35, %s36
      %p47 = scmp.eq.s32.totalorder %s27, 0
      %p48 = por %p46, %p47
      %p49 = scmp.ne.s32.totalorder %s35, %s36
      %p50 = scmp.eq.s32.totalorder %s28, 1
      %p51 = por %p49, %p50
      %p53 = scmp.ne.s32.totalorder %s36, %s52
      %p54 = scmp.eq.s32.totalorder %s28, 0
      %p55 = por %p53, %p54
      %s57 = sadd.s32 %s56, 1
      %p60 = scmp.eq.s32.totalorder %s22, 1
      %p61 = scmp.ne.s32.totalorder %s56, %s58
      %p62 = scmp.eq.s32.totalorder %s22, 0
      %p63 = por %p61, %p62
      %p64 = scmp.ne.s32.totalorder %s56, %s58
      %p65 = scmp.eq.s32.totalorder %s27, 1
      %p66 = por %p64, %p65
      %p67 = scmp.ne.s32.totalorder %s58, %s59
      %p68 = scmp.eq.s32.totalorder %s27, 0
      %p69 = por %p67, %p68
      %p70 = scmp.ne.s32.totalorder %s58, %s59
      %p71 = scmp.eq.s32.totalorder %s28, 1
      %p72 = por %p70, %p71
      %p74 = scmp.ne.s32.totalorder %s59, %s73
      %p75 = scmp.eq.s32.totalorder %s28, 0
      %p76 = por %p74, %p75
      %s78 = sadd.s32 %s77, 1
      %p81 = scmp.eq.s32.totalorder %s22, 1
      %p82 = scmp.ne.s32.totalorder %s77, %s79
      %p83 = scmp.eq.s32.totalorder %s22, 0
      %p84 = por %p82, %p83
      %p85 = scmp.ne.s32.totalorder %s77, %s79
      %p86 = scmp.eq.s32.totalorder %s27, 1
      %p87 = por %p85, %p86
      %p88 = scmp.ne.s32.totalorder %s79, %s80
      %p89 = scmp.eq.s32.totalorder %s27, 0
      %p90 = por %p88, %p89
      %p91 = scmp.ne.s32.totalorder %s79, %s80
      %p92 = scmp.eq.s32.totalorder %s28, 1
      %p93 = por %p91, %p92
      %p95 = scmp.ne.s32.totalorder %s80, %s94
      %p96 = scmp.eq.s32.totalorder %s28, 0
      %p97 = por %p95, %p96
      %s99 = sadd.s32 %s98, 1
      %p102 = scmp.eq.s32.totalorder %s22, 1
      %p103 = scmp.ne.s32.totalorder %s98, %s100
      %p104 = scmp.eq.s32.totalorder %s22, 0
      %p105 = por %p103, %p104
      %p106 = scmp.ne.s32.totalorder %s98, %s100
      %p107 = scmp.eq.s32.totalorder %s27, 1
      %p108 = por %p106, %p107
      %p109 = scmp.ne.s32.totalorder %s100, %s101
      %p110 = scmp.eq.s32.totalorder %s27, 0
      %p111 = por %p109, %p110
      %p112 = scmp.ne.s32.totalorder %s100, %s101
      %p113 = scmp.eq.s32.totalorder %s28, 1
      %p114 = por %p112, %p113
      %p116 = scmp.ne.s32.totalorder %s101, %s115
      %p117 = scmp.eq.s32.totalorder %s28, 0
      %p118 = por %p116, %p117
      %s120 = sadd.s32 %s119, 1
      %p123 = scmp.eq.s32.totalorder %s22, 1
      %p124 = scmp.ne.s32.totalorder %s119, %s121
      %p125 = scmp.eq.s32.totalorder %s22, 0
      %p126 = por %p124, %p125
      %p127 = scmp.ne.s32.totalorder %s119, %s121
      %p128 = scmp.eq.s32.totalorder %s27, 1
      %p129 = por %p127, %p128
      %p130 = scmp.ne.s32.totalorder %s121, %s122
      %p131 = scmp.eq.s32.totalorder %s27, 0
      %p132 = por %p130, %p131
      %p133 = scmp.ne.s32.totalorder %s121, %s122
      %p134 = scmp.eq.s32.totalorder %s28, 1
      %p135 = por %p133, %p134
      %p137 = scmp.ne.s32.totalorder %s122, %s136
      %p138 = scmp.eq.s32.totalorder %s28, 0
      %p139 = por %p137, %p138
      %s141 = sadd.s32 %s140, 1
      %p144 = scmp.eq.s32.totalorder %s22, 1
      %p145 = scmp.ne.s32.totalorder %s140, %s142
      %p146 = scmp.eq.s32.totalorder %s22, 0
      %p147 = por %p145, %p146
      %p148 = scmp.ne.s32.totalorder %s140, %s142
      %p149 = scmp.eq.s32.totalorder %s27, 1
      %p150 = por %p148, %p149
      %p151 = scmp.ne.s32.totalorder %s142, %s143
      %p152 = scmp.eq.s32.totalorder %s27, 0
      %p153 = por %p151, %p152
      %p154 = scmp.ne.s32.totalorder %s142, %s143
      %p155 = scmp.eq.s32.totalorder %s28, 1
      %p156 = por %p154, %p155
      %p158 = scmp.ne.s32.totalorder %s143, %s157
      %p159 = scmp.eq.s32.totalorder %s28, 0
      %p160 = por %p158, %p159
      %s162 = sadd.s32 %s161, 1
      %p165 = scmp.eq.s32.totalorder %s22, 1
      %p166 = scmp.ne.s32.totalorder %s161, %s163
      %p167 = scmp.eq.s32.totalorder %s22, 0
      %p168 = por %p166, %p167
      %p169 = scmp.ne.s32.totalorder %s161, %s163
      %p170 = scmp.eq.s32.totalorder %s27, 1
      %p171 = por %p169, %p170
      %p172 = scmp.ne.s32.totalorder %s163, %s164
      %p173 = scmp.eq.s32.totalorder %s27, 0
      %p174 = por %p172, %p173
      %p175 = scmp.ne.s32.totalorder %s163, %s164
      %p176 = scmp.eq.s32.totalorder %s28, 1
      %p177 = por %p175, %p176
      %p179 = scmp.ne.s32.totalorder %s164, %s178
      %p180 = scmp.eq.s32.totalorder %s28, 0
      %p181 = por %p179, %p180
      %s182 = ssub.s32 %s22, %s29
      %p183 = scmp.eq.s32.totalorder %s182, 0
      %s185 = sadd.s32 %s184, 1
      %s186 = scalar_select %p183, %s184, %s185
      %p189 = pneg %p183
      %p190 = scmp.eq.s32.totalorder %s22, 1
      %p191 = por %p189, %p190
      %p192 = scmp.ne.s32.totalorder %s184, %s187
      %p193 = scmp.eq.s32.totalorder %s22, 0
      %p194 = por %p192, %p193
      %p195 = scmp.ne.s32.totalorder %s184, %s187
      %p196 = scmp.eq.s32.totalorder %s27, 1
      %p197 = por %p195, %p196
      %p198 = scmp.ne.s32.totalorder %s187, %s188
      %p199 = scmp.eq.s32.totalorder %s27, 0
      %p200 = por %p198, %p199
      %p201 = scmp.ne.s32.totalorder %s187, %s188
      %p202 = scmp.eq.s32.totalorder %s28, 1
      %p203 = por %p201, %p202
      %p205 = scmp.ne.s32.totalorder %s188, %s204
      %p206 = scmp.eq.s32.totalorder %s28, 0
      %p207 = por %p205, %p206
      %p208 = scmp.le.s32.totalorder 1, %s22
      %p209 = scmp.lt.s32.totalorder %s22, 3
      %p210 = pnand %p208, %p209
      %p211 = pneg %p210
      // Predicated region
      $region9: #{tpu_custom_call.1} parent=5 // pred_check
        _
      $region10: #{tpu_custom_call.1} parent=5 // pred_check_branch
        %213 = sbr.rel (%p210) target = $region12
      $region11: #{tpu_custom_call.1} parent=5 // pred_region
        %s214 = ssub.s32 %s22, 1
        // Predicated region
        $region13: #{tpu_custom_call.1} parent=11 // pred_check
          %p215 = pneg %p69
        $region14: #{tpu_custom_call.1} parent=11 // pred_check_branch
          %217 = sbr.rel (%p215) target = $region16
        $region15: #{tpu_custom_call.1} parent=11 // pred_region
          %s219 = ssub.s32 4096, 4096
          %220 = vsyncadd [#allocation7], %s219
          %s221 = sshll.u32 [#allocation6], 4
          %s222 = int_to_ptr.vmem [resolvable:$true] %s221
          %227 = dma.hbm_to_vmem [thread:$0]  %s1, 4096, %s222, [#allocation7], 256, 256, 16
        $region16: #{tpu_custom_call.1} parent=11 // pred_fallthru
          _
        // Predicated region
        $region17: #{tpu_custom_call.1} parent=11 // pred_check
          %p228 = pneg %p90
        $region18: #{tpu_custom_call.1} parent=11 // pred_check_branch
          %230 = sbr.rel (%p228) target = $region20
        $region19: #{tpu_custom_call.1} parent=11 // pred_region
          _
        $region20: #{tpu_custom_call.1} parent=11 // pred_fallthru
          _
        // Predicated region
        $region21: #{tpu_custom_call.1} parent=11 // pred_check
          %p231 = pneg %p111
        $region22: #{tpu_custom_call.1} parent=11 // pred_check_branch
          %233 = sbr.rel (%p231) target = $region24
        $region23: #{tpu_custom_call.1} parent=11 // pred_region
          _
        $region24: #{tpu_custom_call.1} parent=11 // pred_fallthru
          _
        // Predicated region
        $region25: #{tpu_custom_call.1} parent=11 // pred_check
          %p234 = pneg %p132
        $region26: #{tpu_custom_call.1} parent=11 // pred_check_branch
          %236 = sbr.rel (%p234) target = $region28
        $region27: #{tpu_custom_call.1} parent=11 // pred_region
          _
        $region28: #{tpu_custom_call.1} parent=11 // pred_fallthru
          _
        // Predicated region
        $region29: #{tpu_custom_call.1} parent=11 // pred_check
          %p237 = pneg %p153
        $region30: #{tpu_custom_call.1} parent=11 // pred_check_branch
          %239 = sbr.rel (%p237) target = $region32
        $region31: #{tpu_custom_call.1} parent=11 // pred_region
          _
        $region32: #{tpu_custom_call.1} parent=11 // pred_fallthru
          _
        // Predicated region
        $region33: #{tpu_custom_call.1} parent=11 // pred_check
          %p240 = pneg %p174
        $region34: #{tpu_custom_call.1} parent=11 // pred_check_branch
          %242 = sbr.rel (%p240) target = $region36
        $region35: #{tpu_custom_call.1} parent=11 // pred_region
          _
        $region36: #{tpu_custom_call.1} parent=11 // pred_fallthru
          _
      $region12: #{tpu_custom_call.1} parent=5 // pred_fallthru
        _
      %p243 = scmp.lt.s32.totalorder %s22, 2
      // Predicated region
      $region37: #{tpu_custom_call.1} parent=5 // pred_check
        %p244 = pneg %p243
      $region38: #{tpu_custom_call.1} parent=5 // pred_check_branch
        %246 = sbr.rel (%p244) target = $region40
      $region39: #{tpu_custom_call.1} parent=5 // pred_region
        // Predicated region
        $region41: #{tpu_custom_call.1} parent=39 // pred_check
          %p247 = pneg %p42
        $region42: #{tpu_custom_call.1} parent=39 // pred_check_branch
          %249 = sbr.rel (%p247) target = $region44
        $region43: #{tpu_custom_call.1} parent=39 // pred_region
          %s250 = sand.u32 %s32, 1
          %s251 = scalar_lea.sflag [#allocation4], %s250
          %s252 = sand.u32 %s32, 1
          %s253 = smul.addr %s252, 512
          %s254 = scalar_lea.vmem [#allocation3], %s253
          %s255 = smul.u32 64, %s22
          %s257 = ssub.s32 8192, 8192
          %258 = vsyncadd %s251, %s257
          %s259 = smul.addr %s255, 128
          %s260 = scalar_lea.hbm %s0, %s259
          %s261 = sshll.u32 %s254, 4
          %s262 = int_to_ptr.vmem [resolvable:$true] %s261
          %267 = dma.hbm_to_vmem [thread:$0]  %s260, 8192, %s262, %s251, 128, 128, 8
        $region44: #{tpu_custom_call.1} parent=39 // pred_fallthru
          _
      $region40: #{tpu_custom_call.1} parent=5 // pred_fallthru
        _
      %p268 = scmp.le.s32.totalorder 1, %s22
      %p269 = scmp.lt.s32.totalorder %s22, 3
      %p270 = pnand %p268, %p269
      %p271 = pneg %p270
      // Predicated region
      $region45: #{tpu_custom_call.1} parent=5 // pred_check
        _
      $region46: #{tpu_custom_call.1} parent=5 // pred_check_branch
        %273 = sbr.rel (%p270) target = $region48
      $region47: #{tpu_custom_call.1} parent=5 // pred_region
        %s274 = ssub.s32 %s22, 1
        %s275 = sand.u32 %s35, 1
        %s276 = scalar_lea.sflag [#allocation4], %s275
        %s277 = sand.u32 %s35, 1
        %s278 = smul.addr %s277, 512
        %s279 = scalar_lea.vmem [#allocation3], %s278
        // Predicated region
        $region49: #{tpu_custom_call.1} parent=47 // pred_check
          %p280 = pneg %p48
        $region50: #{tpu_custom_call.1} parent=47 // pred_check_branch
          %282 = sbr.rel (%p280) target = $region52
        $region51: #{tpu_custom_call.1} parent=47 // pred_region
          %283 = dma.done %s276, 8192
        $region52: #{tpu_custom_call.1} parent=47 // pred_fallthru
          _
        // Predicated region
        $region53: #{tpu_custom_call.1} parent=47 // pred_check
          %p284 = pneg %p69
        $region54: #{tpu_custom_call.1} parent=47 // pred_check_branch
          %286 = sbr.rel (%p284) target = $region56
        $region55: #{tpu_custom_call.1} parent=47 // pred_region
          %287 = dma.done [#allocation7], 4096
        $region56: #{tpu_custom_call.1} parent=47 // pred_fallthru
          _
        %s288 = sand.u32 %s35, 1
        %s289 = scalar_lea.sflag [#allocation4], %s288
        %s290 = sand.u32 %s35, 1
        %s291 = smul.addr %s290, 512
        %s292 = scalar_lea.vmem [#allocation3], %s291
        %p293 = pneg %p48
        %p294 = pneg %p45
        %p295 = pneg %p69
        %p296 = pneg %p66
        %p297 = pneg %p90
        %p298 = pneg %p87
        %p299 = pneg %p111
        %p300 = pneg %p108
        %p301 = pneg %p132
        %p302 = pneg %p129
        %p303 = pneg %p153
        %p304 = pneg %p150
        %p305 = pneg %p174
        %p306 = pneg %p171
        %p307 = pneg %p200
        %p308 = pneg %p197
        %s309 = sand.u32 %s187, 1
        %s310 = scalar_lea.sflag [#allocation5], %s309
        %s311 = sand.u32 %s187, 1
        %s312 = smul.addr %s311, 128
        %s313 = scalar_lea.vmem [#allocation8], %s312
        %s314 = smul.u32 64, %s27
        %s315 = smul.u32 8, %s27
        %v316 = vld [vmem:[%s279] sm:$0xff]
        %v317 = vld [vmem:[%s279 + $0x8] sm:$0xff]
        %v318 = vld [vmem:[%s279 + $0x10] sm:$0xff]
        %v319 = vld [vmem:[%s279 + $0x18] sm:$0xff]
        %v320 = vld [vmem:[%s279 + $0x20] sm:$0xff]
        %v321 = vld [vmem:[%s279 + $0x28] sm:$0xff]
        %v322 = vld [vmem:[%s279 + $0x30] sm:$0xff]
        %v323 = vld [vmem:[%s279 + $0x38] sm:$0xff]
        %v324 = vld [vmem:[%s279 + $0x40] sm:$0xff]
        %v325 = vld [vmem:[%s279 + $0x48] sm:$0xff]
        %v326 = vld [vmem:[%s279 + $0x50] sm:$0xff]
        %v327 = vld [vmem:[%s279 + $0x58] sm:$0xff]
        %v328 = vld [vmem:[%s279 + $0x60] sm:$0xff]
        %v329 = vld [vmem:[%s279 + $0x68] sm:$0xff]
        %v330 = vld [vmem:[%s279 + $0x70] sm:$0xff]
        %v331 = vld [vmem:[%s279 + $0x78] sm:$0xff]
        %v332 = vld [vmem:[%s279 + $0x80] sm:$0xff]
        %v333 = vld [vmem:[%s279 + $0x88] sm:$0xff]
        %v334 = vld [vmem:[%s279 + $0x90] sm:$0xff]
        %v335 = vld [vmem:[%s279 + $0x98] sm:$0xff]
        %v336 = vld [vmem:[%s279 + $0xa0] sm:$0xff]
        %v337 = vld [vmem:[%s279 + $0xa8] sm:$0xff]
        %v338 = vld [vmem:[%s279 + $0xb0] sm:$0xff]
        %v339 = vld [vmem:[%s279 + $0xb8] sm:$0xff]
        %v340 = vld [vmem:[%s279 + $0xc0] sm:$0xff]
        %v341 = vld [vmem:[%s279 + $0xc8] sm:$0xff]
        %v342 = vld [vmem:[%s279 + $0xd0] sm:$0xff]
        %v343 = vld [vmem:[%s279 + $0xd8] sm:$0xff]
        %v344 = vld [vmem:[%s279 + $0xe0] sm:$0xff]
        %v345 = vld [vmem:[%s279 + $0xe8] sm:$0xff]
        %v346 = vld [vmem:[%s279 + $0xf0] sm:$0xff]
        %v347 = vld [vmem:[%s279 + $0xf8] sm:$0xff]
        %v348 = vld [vmem:[%s279 + $0x100] sm:$0xff]
        %v349 = vld [vmem:[%s279 + $0x108] sm:$0xff]
        %v350 = vld [vmem:[%s279 + $0x110] sm:$0xff]
        %v351 = vld [vmem:[%s279 + $0x118] sm:$0xff]
        %v352 = vld [vmem:[%s279 + $0x120] sm:$0xff]
        %v353 = vld [vmem:[%s279 + $0x128] sm:$0xff]
        %v354 = vld [vmem:[%s279 + $0x130] sm:$0xff]
        %v355 = vld [vmem:[%s279 + $0x138] sm:$0xff]
        %v356 = vld [vmem:[%s279 + $0x140] sm:$0xff]
        %v357 = vld [vmem:[%s279 + $0x148] sm:$0xff]
        %v358 = vld [vmem:[%s279 + $0x150] sm:$0xff]
        %v359 = vld [vmem:[%s279 + $0x158] sm:$0xff]
        %v360 = vld [vmem:[%s279 + $0x160] sm:$0xff]
        %v361 = vld [vmem:[%s279 + $0x168] sm:$0xff]
        %v362 = vld [vmem:[%s279 + $0x170] sm:$0xff]
        %v363 = vld [vmem:[%s279 + $0x178] sm:$0xff]
        %v364 = vld [vmem:[%s279 + $0x180] sm:$0xff]
        %v365 = vld [vmem:[%s279 + $0x188] sm:$0xff]
        %v366 = vld [vmem:[%s279 + $0x190] sm:$0xff]
        %v367 = vld [vmem:[%s279 + $0x198] sm:$0xff]
        %v368 = vld [vmem:[%s279 + $0x1a0] sm:$0xff]
        %v369 = vld [vmem:[%s279 + $0x1a8] sm:$0xff]
        %v370 = vld [vmem:[%s279 + $0x1b0] sm:$0xff]
        %v371 = vld [vmem:[%s279 + $0x1b8] sm:$0xff]
        %v372 = vld [vmem:[%s279 + $0x1c0] sm:$0xff]
        %v373 = vld [vmem:[%s279 + $0x1c8] sm:$0xff]
        %v374 = vld [vmem:[%s279 + $0x1d0] sm:$0xff]
        %v375 = vld [vmem:[%s279 + $0x1d8] sm:$0xff]
        %v376 = vld [vmem:[%s279 + $0x1e0] sm:$0xff]
        %v377 = vld [vmem:[%s279 + $0x1e8] sm:$0xff]
        %v378 = vld [vmem:[%s279 + $0x1f0] sm:$0xff]
        %v379 = vld [vmem:[%s279 + $0x1f8] sm:$0xff]
        %v380 = vld [vmem:[#allocation6] sm:$0xff]
        %v381 = vld [vmem:[#allocation6 + $0x8] sm:$0xff]
        %v382 = vld [vmem:[#allocation6 + $0x10] sm:$0xff]
        %v383 = vld [vmem:[#allocation6 + $0x18] sm:$0xff]
        %v384 = vld [vmem:[#allocation6 + $0x20] sm:$0xff]
        %v385 = vld [vmem:[#allocation6 + $0x28] sm:$0xff]
        %v386 = vld [vmem:[#allocation6 + $0x30] sm:$0xff]
        %v387 = vld [vmem:[#allocation6 + $0x38] sm:$0xff]
        %v388 = vld [vmem:[#allocation6 + $0x40] sm:$0xff]
        %v389 = vld [vmem:[#allocation6 + $0x48] sm:$0xff]
        %v390 = vld [vmem:[#allocation6 + $0x50] sm:$0xff]
        %v391 = vld [vmem:[#allocation6 + $0x58] sm:$0xff]
        %v392 = vld [vmem:[#allocation6 + $0x60] sm:$0xff]
        %v393 = vld [vmem:[#allocation6 + $0x68] sm:$0xff]
        %v394 = vld [vmem:[#allocation6 + $0x70] sm:$0xff]
        %v395 = vld [vmem:[#allocation6 + $0x78] sm:$0xff]
        %v396 = vld [vmem:[#allocation6 + $0x80] sm:$0xff]
        %v397 = vld [vmem:[#allocation6 + $0x88] sm:$0xff]
        %v398 = vld [vmem:[#allocation6 + $0x90] sm:$0xff]
        %v399 = vld [vmem:[#allocation6 + $0x98] sm:$0xff]
        %v400 = vld [vmem:[#allocation6 + $0xa0] sm:$0xff]
        %v401 = vld [vmem:[#allocation6 + $0xa8] sm:$0xff]
        %v402 = vld [vmem:[#allocation6 + $0xb0] sm:$0xff]
        %v403 = vld [vmem:[#allocation6 + $0xb8] sm:$0xff]
        %v404 = vld [vmem:[#allocation6 + $0xc0] sm:$0xff]
        %v405 = vld [vmem:[#allocation6 + $0xc8] sm:$0xff]
        %v406 = vld [vmem:[#allocation6 + $0xd0] sm:$0xff]
        %v407 = vld [vmem:[#allocation6 + $0xd8] sm:$0xff]
        %v408 = vld [vmem:[#allocation6 + $0xe0] sm:$0xff]
        %v409 = vld [vmem:[#allocation6 + $0xe8] sm:$0xff]
        %v410 = vld [vmem:[#allocation6 + $0xf0] sm:$0xff]
        %v411 = vld [vmem:[#allocation6 + $0xf8] sm:$0xff]
        %v412 = vld [vmem:[%s2] sm:$0x3]
        %v414 = vlaneseq
        %v415 = vshrl.u32 %v414, 7
        %v416 = vsub.s32 0, %v415
        %v417 = vrot.slane %v412, %v416
        %v418 = vlaneseq
        %v419 = vshrl.u32 %v418, 7
        %v420 = vsub.s32 1, %v419
        %v421 = vrot.slane %v412, %v420
        %424 = vmatprep.subr.mxu0 %v411
        %425 = vmatpush1.msra.mxu0 %v410
        %426 = vmatprep.subr.mxu0 %v409
        %427 = vmatpush1.msra.mxu0 %v408
        %428 = vmatprep.subr.mxu0 %v407
        %429 = vmatpush1.msra.mxu0 %v406
        %430 = vmatprep.subr.mxu0 %v405
        %431 = vmatpush1.msra.mxu0 %v404
        %432 = vmatprep.subr.mxu0 %v403
        %433 = vmatpush1.msra.mxu0 %v402
        %434 = vmatprep.subr.mxu0 %v401
        %435 = vmatpush1.msra.mxu0 %v400
        %436 = vmatprep.subr.mxu0 %v399
        %437 = vmatpush1.msra.mxu0 %v398
        %438 = vmatprep.subr.mxu0 %v397
        %439 = vmatpush1.msra.mxu0 %v396
        %440 = vmatprep.subr.mxu0 %v395
        %441 = vmatpush1.msra.mxu0 %v394
        %442 = vmatprep.subr.mxu0 %v393
        %443 = vmatpush1.msra.mxu0 %v392
        %444 = vmatprep.subr.mxu0 %v391
        %445 = vmatpush1.msra.mxu0 %v390
        %446 = vmatprep.subr.mxu0 %v389
        %447 = vmatpush1.msra.mxu0 %v388
        %448 = vmatprep.subr.mxu0 %v387
        %449 = vmatpush1.msra.mxu0 %v386
        %450 = vmatprep.subr.mxu0 %v385
        %451 = vmatpush1.msra.mxu0 %v384
        %452 = vmatprep.subr.mxu0 %v383
        %453 = vmatpush1.msra.mxu0 %v382
        %454 = vmatprep.subr.mxu0 %v381
        %455 = vmatpush1.msra.mxu0 %v380
        %456 = vmatprep.subr.mxu0 0.0
        %457 = vmatpush2.msra.mxu0 0.0
        %458 = vmatprep.subr.mxu0 0.0
        %459 = vmatpush2.msra.mxu0 0.0
        %460 = vmatprep.subr.mxu0 0.0
        %461 = vmatpush2.msra.mxu0 0.0
        %462 = vmatprep.subr.mxu0 0.0
        %463 = vmatpush2.msra.mxu0 0.0
        %464 = vmatprep.subr.mxu0 0.0
        %465 = vmatpush2.msra.mxu0 0.0
        %466 = vmatprep.subr.mxu0 0.0
        %467 = vmatpush2.msra.mxu0 0.0
        %468 = vmatprep.subr.mxu0 0.0
        %469 = vmatpush2.msra.mxu0 0.0
        %470 = vmatprep.subr.mxu0 0.0
        %471 = vmatpush2.msra.mxu0 0.0
        %472 = vmatprep.subr.mxu0 0.0
        %473 = vmatpush2.msra.mxu0 0.0
        %474 = vmatprep.subr.mxu0 0.0
        %475 = vmatpush2.msra.mxu0 0.0
        %476 = vmatprep.subr.mxu0 0.0
        %477 = vmatpush2.msra.mxu0 0.0
        %478 = vmatprep.subr.mxu0 0.0
        %479 = vmatpush2.msra.mxu0 0.0
        %480 = vmatprep.subr.mxu0 0.0
        %481 = vmatpush2.msra.mxu0 0.0
        %482 = vmatprep.subr.mxu0 0.0
        %483 = vmatpush2.msra.mxu0 0.0
        %484 = vmatprep.subr.mxu0 0.0
        %485 = vmatpush2.msra.mxu0 0.0
        %486 = vmatprep.subr.mxu0 0.0
        %487 = vmatpush2.msra.mxu0 0.0
        %488 = vmatprep.mubr.f32.mxu0 0.0
        %489 = vmatmul.mubr.f32.gmra.mxu0 %v316
        %v490 = vpop.f32.mrf.mxu0
        %v491 = vadd.f32 %v417, %v490
        %v492 = vpop.f32.mrf.mxu0
        %v493 = vadd.f32 %v421, %v492
        %494 = vmatprep.mubr.f32.mxu0 0.0
        %495 = vmatmul.mubr.f32.gmra.mxu0 %v317
        %v496 = vpop.f32.mrf.mxu0
        %v497 = vadd.f32 %v417, %v496
        %v498 = vpop.f32.mrf.mxu0
        %v499 = vadd.f32 %v421, %v498
        %500 = vmatprep.mubr.f32.mxu0 0.0
        %501 = vmatmul.mubr.f32.gmra.mxu0 %v318
        %v502 = vpop.f32.mrf.mxu0
        %v503 = vadd.f32 %v417, %v502
        %v504 = vpop.f32.mrf.mxu0
        %v505 = vadd.f32 %v421, %v504
        %506 = vmatprep.mubr.f32.mxu0 0.0
        %507 = vmatmul.mubr.f32.gmra.mxu0 %v319
        %v508 = vpop.f32.mrf.mxu0
        %v509 = vadd.f32 %v417, %v508
        %v510 = vpop.f32.mrf.mxu0
        %v511 = vadd.f32 %v421, %v510
        %512 = vmatprep.mubr.f32.mxu0 0.0
        %513 = vmatmul.mubr.f32.gmra.mxu0 %v320
        %v514 = vpop.f32.mrf.mxu0
        %v515 = vadd.f32 %v417, %v514
        %v516 = vpop.f32.mrf.mxu0
        %v517 = vadd.f32 %v421, %v516
        %518 = vmatprep.mubr.f32.mxu0 0.0
        %519 = vmatmul.mubr.f32.gmra.mxu0 %v321
        %v520 = vpop.f32.mrf.mxu0
        %v521 = vadd.f32 %v417, %v520
        %v522 = vpop.f32.mrf.mxu0
        %v523 = vadd.f32 %v421, %v522
        %524 = vmatprep.mubr.f32.mxu0 0.0
        %525 = vmatmul.mubr.f32.gmra.mxu0 %v322
        %v526 = vpop.f32.mrf.mxu0
        %v527 = vadd.f32 %v417, %v526
        %v528 = vpop.f32.mrf.mxu0
        %v529 = vadd.f32 %v421, %v528
        %530 = vmatprep.mubr.f32.mxu0 0.0
        %531 = vmatmul.mubr.f32.gmra.mxu0 %v323
        %v532 = vpop.f32.mrf.mxu0
        %v533 = vadd.f32 %v417, %v532
        %v534 = vpop.f32.mrf.mxu0
        %v535 = vadd.f32 %v421, %v534
        %536 = vmatprep.mubr.f32.mxu0 0.0
        %537 = vmatmul.mubr.f32.gmra.mxu0 %v324
        %v538 = vpop.f32.mrf.mxu0
        %v539 = vadd.f32 %v417, %v538
        %v540 = vpop.f32.mrf.mxu0
        %v541 = vadd.f32 %v421, %v540
        %542 = vmatprep.mubr.f32.mxu0 0.0
        %543 = vmatmul.mubr.f32.gmra.mxu0 %v325
        %v544 = vpop.f32.mrf.mxu0
        %v545 = vadd.f32 %v417, %v544
        %v546 = vpop.f32.mrf.mxu0
        %v547 = vadd.f32 %v421, %v546
        %548 = vmatprep.mubr.f32.mxu0 0.0
        %549 = vmatmul.mubr.f32.gmra.mxu0 %v326
        %v550 = vpop.f32.mrf.mxu0
        %v551 = vadd.f32 %v417, %v550
        %v552 = vpop.f32.mrf.mxu0
        %v553 = vadd.f32 %v421, %v552
        %554 = vmatprep.mubr.f32.mxu0 0.0
        %555 = vmatmul.mubr.f32.gmra.mxu0 %v327
        %v556 = vpop.f32.mrf.mxu0
        %v557 = vadd.f32 %v417, %v556
        %v558 = vpop.f32.mrf.mxu0
        %v559 = vadd.f32 %v421, %v558
        %560 = vmatprep.mubr.f32.mxu0 0.0
        %561 = vmatmul.mubr.f32.gmra.mxu0 %v328
        %v562 = vpop.f32.mrf.mxu0
        %v563 = vadd.f32 %v417, %v562
        %v564 = vpop.f32.mrf.mxu0
        %v565 = vadd.f32 %v421, %v564
        %566 = vmatprep.mubr.f32.mxu0 0.0
        %567 = vmatmul.mubr.f32.gmra.mxu0 %v329
        %v568 = vpop.f32.mrf.mxu0
        %v569 = vadd.f32 %v417, %v568
        %v570 = vpop.f32.mrf.mxu0
        %v571 = vadd.f32 %v421, %v570
        %572 = vmatprep.mubr.f32.mxu0 0.0
        %573 = vmatmul.mubr.f32.gmra.mxu0 %v330
        %v574 = vpop.f32.mrf.mxu0
        %v575 = vadd.f32 %v417, %v574
        %v576 = vpop.f32.mrf.mxu0
        %v577 = vadd.f32 %v421, %v576
        %578 = vmatprep.mubr.f32.mxu0 0.0
        %579 = vmatmul.mubr.f32.gmra.mxu0 %v331
        %v580 = vpop.f32.mrf.mxu0
        %v581 = vadd.f32 %v417, %v580
        %v582 = vpop.f32.mrf.mxu0
        %v583 = vadd.f32 %v421, %v582
        %584 = vmatprep.mubr.f32.mxu0 0.0
        %585 = vmatmul.mubr.f32.gmra.mxu0 %v332
        %v586 = vpop.f32.mrf.mxu0
        %v587 = vadd.f32 %v417, %v586
        %v588 = vpop.f32.mrf.mxu0
        %v589 = vadd.f32 %v421, %v588
        %590 = vmatprep.mubr.f32.mxu0 0.0
        %591 = vmatmul.mubr.f32.gmra.mxu0 %v333
        %v592 = vpop.f32.mrf.mxu0
        %v593 = vadd.f32 %v417, %v592
        %v594 = vpop.f32.mrf.mxu0
        %v595 = vadd.f32 %v421, %v594
        %596 = vmatprep.mubr.f32.mxu0 0.0
        %597 = vmatmul.mubr.f32.gmra.mxu0 %v334
        %v598 = vpop.f32.mrf.mxu0
        %v599 = vadd.f32 %v417, %v598
        %v600 = vpop.f32.mrf.mxu0
        %v601 = vadd.f32 %v421, %v600
        %602 = vmatprep.mubr.f32.mxu0 0.0
        %603 = vmatmul.mubr.f32.gmra.mxu0 %v335
        %v604 = vpop.f32.mrf.mxu0
        %v605 = vadd.f32 %v417, %v604
        %v606 = vpop.f32.mrf.mxu0
        %v607 = vadd.f32 %v421, %v606
        %608 = vmatprep.mubr.f32.mxu0 0.0
        %609 = vmatmul.mubr.f32.gmra.mxu0 %v336
        %v610 = vpop.f32.mrf.mxu0
        %v611 = vadd.f32 %v417, %v610
        %v612 = vpop.f32.mrf.mxu0
        %v613 = vadd.f32 %v421, %v612
        %614 = vmatprep.mubr.f32.mxu0 0.0
        %615 = vmatmul.mubr.f32.gmra.mxu0 %v337
        %v616 = vpop.f32.mrf.mxu0
        %v617 = vadd.f32 %v417, %v616
        %v618 = vpop.f32.mrf.mxu0
        %v619 = vadd.f32 %v421, %v618
        %620 = vmatprep.mubr.f32.mxu0 0.0
        %621 = vmatmul.mubr.f32.gmra.mxu0 %v338
        %v622 = vpop.f32.mrf.mxu0
        %v623 = vadd.f32 %v417, %v622
        %v624 = vpop.f32.mrf.mxu0
        %v625 = vadd.f32 %v421, %v624
        %626 = vmatprep.mubr.f32.mxu0 0.0
        %627 = vmatmul.mubr.f32.gmra.mxu0 %v339
        %v628 = vpop.f32.mrf.mxu0
        %v629 = vadd.f32 %v417, %v628
        %v630 = vpop.f32.mrf.mxu0
        %v631 = vadd.f32 %v421, %v630
        %632 = vmatprep.mubr.f32.mxu0 0.0
        %633 = vmatmul.mubr.f32.gmra.mxu0 %v340
        %v634 = vpop.f32.mrf.mxu0
        %v635 = vadd.f32 %v417, %v634
        %v636 = vpop.f32.mrf.mxu0
        %v637 = vadd.f32 %v421, %v636
        %638 = vmatprep.mubr.f32.mxu0 0.0
        %639 = vmatmul.mubr.f32.gmra.mxu0 %v341
        %v640 = vpop.f32.mrf.mxu0
        %v641 = vadd.f32 %v417, %v640
        %v642 = vpop.f32.mrf.mxu0
        %v643 = vadd.f32 %v421, %v642
        %644 = vmatprep.mubr.f32.mxu0 0.0
        %645 = vmatmul.mubr.f32.gmra.mxu0 %v342
        %v646 = vpop.f32.mrf.mxu0
        %v647 = vadd.f32 %v417, %v646
        %v648 = vpop.f32.mrf.mxu0
        %v649 = vadd.f32 %v421, %v648
        %650 = vmatprep.mubr.f32.mxu0 0.0
        %651 = vmatmul.mubr.f32.gmra.mxu0 %v343
        %v652 = vpop.f32.mrf.mxu0
        %v653 = vadd.f32 %v417, %v652
        %v654 = vpop.f32.mrf.mxu0
        %v655 = vadd.f32 %v421, %v654
        %656 = vmatprep.mubr.f32.mxu0 0.0
        %657 = vmatmul.mubr.f32.gmra.mxu0 %v344
        %v658 = vpop.f32.mrf.mxu0
        %v659 = vadd.f32 %v417, %v658
        %v660 = vpop.f32.mrf.mxu0
        %v661 = vadd.f32 %v421, %v660
        %662 = vmatprep.mubr.f32.mxu0 0.0
        %663 = vmatmul.mubr.f32.gmra.mxu0 %v345
        %v664 = vpop.f32.mrf.mxu0
        %v665 = vadd.f32 %v417, %v664
        %v666 = vpop.f32.mrf.mxu0
        %v667 = vadd.f32 %v421, %v666
        %668 = vmatprep.mubr.f32.mxu0 0.0
        %669 = vmatmul.mubr.f32.gmra.mxu0 %v346
        %v670 = vpop.f32.mrf.mxu0
        %v671 = vadd.f32 %v417, %v670
        %v672 = vpop.f32.mrf.mxu0
        %v673 = vadd.f32 %v421, %v672
        %674 = vmatprep.mubr.f32.mxu0 0.0
        %675 = vmatmul.mubr.f32.gmra.mxu0 %v347
        %v676 = vpop.f32.mrf.mxu0
        %v677 = vadd.f32 %v417, %v676
        %v678 = vpop.f32.mrf.mxu0
        %v679 = vadd.f32 %v421, %v678
        %680 = vmatprep.mubr.f32.mxu0 0.0
        %681 = vmatmul.mubr.f32.gmra.mxu0 %v348
        %v682 = vpop.f32.mrf.mxu0
        %v683 = vadd.f32 %v417, %v682
        %v684 = vpop.f32.mrf.mxu0
        %v685 = vadd.f32 %v421, %v684
        %686 = vmatprep.mubr.f32.mxu0 0.0
        %687 = vmatmul.mubr.f32.gmra.mxu0 %v349
        %v688 = vpop.f32.mrf.mxu0
        %v689 = vadd.f32 %v417, %v688
        %v690 = vpop.f32.mrf.mxu0
        %v691 = vadd.f32 %v421, %v690
        %692 = vmatprep.mubr.f32.mxu0 0.0
        %693 = vmatmul.mubr.f32.gmra.mxu0 %v350
        %v694 = vpop.f32.mrf.mxu0
        %v695 = vadd.f32 %v417, %v694
        %v696 = vpop.f32.mrf.mxu0
        %v697 = vadd.f32 %v421, %v696
        %698 = vmatprep.mubr.f32.mxu0 0.0
        %699 = vmatmul.mubr.f32.gmra.mxu0 %v351
        %v700 = vpop.f32.mrf.mxu0
        %v701 = vadd.f32 %v417, %v700
        %v702 = vpop.f32.mrf.mxu0
        %v703 = vadd.f32 %v421, %v702
        %704 = vmatprep.mubr.f32.mxu0 0.0
        %705 = vmatmul.mubr.f32.gmra.mxu0 %v352
        %v706 = vpop.f32.mrf.mxu0
        %v707 = vadd.f32 %v417, %v706
        %v708 = vpop.f32.mrf.mxu0
        %v709 = vadd.f32 %v421, %v708
        %710 = vmatprep.mubr.f32.mxu0 0.0
        %711 = vmatmul.mubr.f32.gmra.mxu0 %v353
        %v712 = vpop.f32.mrf.mxu0
        %v713 = vadd.f32 %v417, %v712
        %v714 = vpop.f32.mrf.mxu0
        %v715 = vadd.f32 %v421, %v714
        %716 = vmatprep.mubr.f32.mxu0 0.0
        %717 = vmatmul.mubr.f32.gmra.mxu0 %v354
        %v718 = vpop.f32.mrf.mxu0
        %v719 = vadd.f32 %v417, %v718
        %v720 = vpop.f32.mrf.mxu0
        %v721 = vadd.f32 %v421, %v720
        %722 = vmatprep.mubr.f32.mxu0 0.0
        %723 = vmatmul.mubr.f32.gmra.mxu0 %v355
        %v724 = vpop.f32.mrf.mxu0
        %v725 = vadd.f32 %v417, %v724
        %v726 = vpop.f32.mrf.mxu0
        %v727 = vadd.f32 %v421, %v726
        %728 = vmatprep.mubr.f32.mxu0 0.0
        %729 = vmatmul.mubr.f32.gmra.mxu0 %v356
        %v730 = vpop.f32.mrf.mxu0
        %v731 = vadd.f32 %v417, %v730
        %v732 = vpop.f32.mrf.mxu0
        %v733 = vadd.f32 %v421, %v732
        %734 = vmatprep.mubr.f32.mxu0 0.0
        %735 = vmatmul.mubr.f32.gmra.mxu0 %v357
        %v736 = vpop.f32.mrf.mxu0
        %v737 = vadd.f32 %v417, %v736
        %v738 = vpop.f32.mrf.mxu0
        %v739 = vadd.f32 %v421, %v738
        %740 = vmatprep.mubr.f32.mxu0 0.0
        %741 = vmatmul.mubr.f32.gmra.mxu0 %v358
        %v742 = vpop.f32.mrf.mxu0
        %v743 = vadd.f32 %v417, %v742
        %v744 = vpop.f32.mrf.mxu0
        %v745 = vadd.f32 %v421, %v744
        %746 = vmatprep.mubr.f32.mxu0 0.0
        %747 = vmatmul.mubr.f32.gmra.mxu0 %v359
        %v748 = vpop.f32.mrf.mxu0
        %v749 = vadd.f32 %v417, %v748
        %v750 = vpop.f32.mrf.mxu0
        %v751 = vadd.f32 %v421, %v750
        %752 = vmatprep.mubr.f32.mxu0 0.0
        %753 = vmatmul.mubr.f32.gmra.mxu0 %v360
        %v754 = vpop.f32.mrf.mxu0
        %v755 = vadd.f32 %v417, %v754
        %v756 = vpop.f32.mrf.mxu0
        %v757 = vadd.f32 %v421, %v756
        %758 = vmatprep.mubr.f32.mxu0 0.0
        %759 = vmatmul.mubr.f32.gmra.mxu0 %v361
        %v760 = vpop.f32.mrf.mxu0
        %v761 = vadd.f32 %v417, %v760
        %v762 = vpop.f32.mrf.mxu0
        %v763 = vadd.f32 %v421, %v762
        %764 = vmatprep.mubr.f32.mxu0 0.0
        %765 = vmatmul.mubr.f32.gmra.mxu0 %v362
        %v766 = vpop.f32.mrf.mxu0
        %v767 = vadd.f32 %v417, %v766
        %v768 = vpop.f32.mrf.mxu0
        %v769 = vadd.f32 %v421, %v768
        %770 = vmatprep.mubr.f32.mxu0 0.0
        %771 = vmatmul.mubr.f32.gmra.mxu0 %v363
        %v772 = vpop.f32.mrf.mxu0
        %v773 = vadd.f32 %v417, %v772
        %v774 = vpop.f32.mrf.mxu0
        %v775 = vadd.f32 %v421, %v774
        %776 = vmatprep.mubr.f32.mxu0 0.0
        %777 = vmatmul.mubr.f32.gmra.mxu0 %v364
        %v778 = vpop.f32.mrf.mxu0
        %v779 = vadd.f32 %v417, %v778
        %v780 = vpop.f32.mrf.mxu0
        %v781 = vadd.f32 %v421, %v780
        %782 = vmatprep.mubr.f32.mxu0 0.0
        %783 = vmatmul.mubr.f32.gmra.mxu0 %v365
        %v784 = vpop.f32.mrf.mxu0
        %v785 = vadd.f32 %v417, %v784
        %v786 = vpop.f32.mrf.mxu0
        %v787 = vadd.f32 %v421, %v786
        %788 = vmatprep.mubr.f32.mxu0 0.0
        %789 = vmatmul.mubr.f32.gmra.mxu0 %v366
        %v790 = vpop.f32.mrf.mxu0
        %v791 = vadd.f32 %v417, %v790
        %v792 = vpop.f32.mrf.mxu0
        %v793 = vadd.f32 %v421, %v792
        %794 = vmatprep.mubr.f32.mxu0 0.0
        %795 = vmatmul.mubr.f32.gmra.mxu0 %v367
        %v796 = vpop.f32.mrf.mxu0
        %v797 = vadd.f32 %v417, %v796
        %v798 = vpop.f32.mrf.mxu0
        %v799 = vadd.f32 %v421, %v798
        %800 = vmatprep.mubr.f32.mxu0 0.0
        %801 = vmatmul.mubr.f32.gmra.mxu0 %v368
        %v802 = vpop.f32.mrf.mxu0
        %v803 = vadd.f32 %v417, %v802
        %v804 = vpop.f32.mrf.mxu0
        %v805 = vadd.f32 %v421, %v804
        %806 = vmatprep.mubr.f32.mxu0 0.0
        %807 = vmatmul.mubr.f32.gmra.mxu0 %v369
        %v808 = vpop.f32.mrf.mxu0
        %v809 = vadd.f32 %v417, %v808
        %v810 = vpop.f32.mrf.mxu0
        %v811 = vadd.f32 %v421, %v810
        %812 = vmatprep.mubr.f32.mxu0 0.0
        %813 = vmatmul.mubr.f32.gmra.mxu0 %v370
        %v814 = vpop.f32.mrf.mxu0
        %v815 = vadd.f32 %v417, %v814
        %v816 = vpop.f32.mrf.mxu0
        %v817 = vadd.f32 %v421, %v816
        %818 = vmatprep.mubr.f32.mxu0 0.0
        %819 = vmatmul.mubr.f32.gmra.mxu0 %v371
        %v820 = vpop.f32.mrf.mxu0
        %v821 = vadd.f32 %v417, %v820
        %v822 = vpop.f32.mrf.mxu0
        %v823 = vadd.f32 %v421, %v822
        %824 = vmatprep.mubr.f32.mxu0 0.0
        %825 = vmatmul.mubr.f32.gmra.mxu0 %v372
        %v826 = vpop.f32.mrf.mxu0
        %v827 = vadd.f32 %v417, %v826
        %v828 = vpop.f32.mrf.mxu0
        %v829 = vadd.f32 %v421, %v828
        %830 = vmatprep.mubr.f32.mxu0 0.0
        %831 = vmatmul.mubr.f32.gmra.mxu0 %v373
        %v832 = vpop.f32.mrf.mxu0
        %v833 = vadd.f32 %v417, %v832
        %v834 = vpop.f32.mrf.mxu0
        %v835 = vadd.f32 %v421, %v834
        %836 = vmatprep.mubr.f32.mxu0 0.0
        %837 = vmatmul.mubr.f32.gmra.mxu0 %v374
        %v838 = vpop.f32.mrf.mxu0
        %v839 = vadd.f32 %v417, %v838
        %v840 = vpop.f32.mrf.mxu0
        %v841 = vadd.f32 %v421, %v840
        %842 = vmatprep.mubr.f32.mxu0 0.0
        %843 = vmatmul.mubr.f32.gmra.mxu0 %v375
        %v844 = vpop.f32.mrf.mxu0
        %v845 = vadd.f32 %v417, %v844
        %v846 = vpop.f32.mrf.mxu0
        %v847 = vadd.f32 %v421, %v846
        %848 = vmatprep.mubr.f32.mxu0 0.0
        %849 = vmatmul.mubr.f32.gmra.mxu0 %v376
        %v850 = vpop.f32.mrf.mxu0
        %v851 = vadd.f32 %v417, %v850
        %v852 = vpop.f32.mrf.mxu0
        %v853 = vadd.f32 %v421, %v852
        %854 = vmatprep.mubr.f32.mxu0 0.0
        %855 = vmatmul.mubr.f32.gmra.mxu0 %v377
        %v856 = vpop.f32.mrf.mxu0
        %v857 = vadd.f32 %v417, %v856
        %v858 = vpop.f32.mrf.mxu0
        %v859 = vadd.f32 %v421, %v858
        %860 = vmatprep.mubr.f32.mxu0 0.0
        %861 = vmatmul.mubr.f32.gmra.mxu0 %v378
        %v862 = vpop.f32.mrf.mxu0
        %v863 = vadd.f32 %v417, %v862
        %v864 = vpop.f32.mrf.mxu0
        %v865 = vadd.f32 %v421, %v864
        %866 = vmatprep.mubr.f32.mxu0 0.0
        %867 = vmatmul.mubr.f32.gmra.mxu0 %v379
        %v868 = vpop.f32.mrf.mxu0
        %v869 = vadd.f32 %v417, %v868
        %v870 = vpop.f32.mrf.mxu0
        %v871 = vadd.f32 %v421, %v870
        %872 = vdwg.mxu0
        %v873 = vadd.f32 %v491, %v493
        %874 = vadd.xlane.f32.xlu0 %v873
        %v875 = vpop.xlane.xlu0 %874
        %v876 = vadd.f32 %v497, %v499
        %877 = vadd.xlane.f32.xlu0 %v876
        %v878 = vpop.xlane.xlu0 %877
        %v879 = vadd.f32 %v503, %v505
        %880 = vadd.xlane.f32.xlu0 %v879
        %v881 = vpop.xlane.xlu0 %880
        %v882 = vadd.f32 %v509, %v511
        %883 = vadd.xlane.f32.xlu0 %v882
        %v884 = vpop.xlane.xlu0 %883
        %v885 = vadd.f32 %v515, %v517
        %886 = vadd.xlane.f32.xlu0 %v885
        %v887 = vpop.xlane.xlu0 %886
        %v888 = vadd.f32 %v521, %v523
        %889 = vadd.xlane.f32.xlu0 %v888
        %v890 = vpop.xlane.xlu0 %889
        %v891 = vadd.f32 %v527, %v529
        %892 = vadd.xlane.f32.xlu0 %v891
        %v893 = vpop.xlane.xlu0 %892
        %v894 = vadd.f32 %v533, %v535
        %895 = vadd.xlane.f32.xlu0 %v894
        %v896 = vpop.xlane.xlu0 %895
        %v897 = vadd.f32 %v539, %v541
        %898 = vadd.xlane.f32.xlu0 %v897
        %v899 = vpop.xlane.xlu0 %898
        %v900 = vadd.f32 %v545, %v547
        %901 = vadd.xlane.f32.xlu0 %v900
        %v902 = vpop.xlane.xlu0 %901
        %v903 = vadd.f32 %v551, %v553
        %904 = vadd.xlane.f32.xlu0 %v903
        %v905 = vpop.xlane.xlu0 %904
        %v906 = vadd.f32 %v557, %v559
        %907 = vadd.xlane.f32.xlu0 %v906
        %v908 = vpop.xlane.xlu0 %907
        %v909 = vadd.f32 %v563, %v565
        %910 = vadd.xlane.f32.xlu0 %v909
        %v911 = vpop.xlane.xlu0 %910
        %v912 = vadd.f32 %v569, %v571
        %913 = vadd.xlane.f32.xlu0 %v912
        %v914 = vpop.xlane.xlu0 %913
        %v915 = vadd.f32 %v575, %v577
        %916 = vadd.xlane.f32.xlu0 %v915
        %v917 = vpop.xlane.xlu0 %916
        %v918 = vadd.f32 %v581, %v583
        %919 = vadd.xlane.f32.xlu0 %v918
        %v920 = vpop.xlane.xlu0 %919
        %v921 = vadd.f32 %v587, %v589
        %922 = vadd.xlane.f32.xlu0 %v921
        %v923 = vpop.xlane.xlu0 %922
        %v924 = vadd.f32 %v593, %v595
        %925 = vadd.xlane.f32.xlu0 %v924
        %v926 = vpop.xlane.xlu0 %925
        %v927 = vadd.f32 %v599, %v601
        %928 = vadd.xlane.f32.xlu0 %v927
        %v929 = vpop.xlane.xlu0 %928
        %v930 = vadd.f32 %v605, %v607
        %931 = vadd.xlane.f32.xlu0 %v930
        %v932 = vpop.xlane.xlu0 %931
        %v933 = vadd.f32 %v611, %v613
        %934 = vadd.xlane.f32.xlu0 %v933
        %v935 = vpop.xlane.xlu0 %934
        %v936 = vadd.f32 %v617, %v619
        %937 = vadd.xlane.f32.xlu0 %v936
        %v938 = vpop.xlane.xlu0 %937
        %v939 = vadd.f32 %v623, %v625
        %940 = vadd.xlane.f32.xlu0 %v939
        %v941 = vpop.xlane.xlu0 %940
        %v942 = vadd.f32 %v629, %v631
        %943 = vadd.xlane.f32.xlu0 %v942
        %v944 = vpop.xlane.xlu0 %943
        %v945 = vadd.f32 %v635, %v637
        %946 = vadd.xlane.f32.xlu0 %v945
        %v947 = vpop.xlane.xlu0 %946
        %v948 = vadd.f32 %v641, %v643
        %949 = vadd.xlane.f32.xlu0 %v948
        %v950 = vpop.xlane.xlu0 %949
        %v951 = vadd.f32 %v647, %v649
        %952 = vadd.xlane.f32.xlu0 %v951
        %v953 = vpop.xlane.xlu0 %952
        %v954 = vadd.f32 %v653, %v655
        %955 = vadd.xlane.f32.xlu0 %v954
        %v956 = vpop.xlane.xlu0 %955
        %v957 = vadd.f32 %v659, %v661
        %958 = vadd.xlane.f32.xlu0 %v957
        %v959 = vpop.xlane.xlu0 %958
        %v960 = vadd.f32 %v665, %v667
        %961 = vadd.xlane.f32.xlu0 %v960
        %v962 = vpop.xlane.xlu0 %961
        %v963 = vadd.f32 %v671, %v673
        %964 = vadd.xlane.f32.xlu0 %v963
        %v965 = vpop.xlane.xlu0 %964
        %v966 = vadd.f32 %v677, %v679
        %967 = vadd.xlane.f32.xlu0 %v966
        %v968 = vpop.xlane.xlu0 %967
        %v969 = vadd.f32 %v683, %v685
        %970 = vadd.xlane.f32.xlu0 %v969
        %v971 = vpop.xlane.xlu0 %970
        %v972 = vadd.f32 %v689, %v691
        %973 = vadd.xlane.f32.xlu0 %v972
        %v974 = vpop.xlane.xlu0 %973
        %v975 = vadd.f32 %v695, %v697
        %976 = vadd.xlane.f32.xlu0 %v975
        %v977 = vpop.xlane.xlu0 %976
        %v978 = vadd.f32 %v701, %v703
        %979 = vadd.xlane.f32.xlu0 %v978
        %v980 = vpop.xlane.xlu0 %979
        %v981 = vadd.f32 %v707, %v709
        %982 = vadd.xlane.f32.xlu0 %v981
        %v983 = vpop.xlane.xlu0 %982
        %v984 = vadd.f32 %v713, %v715
        %985 = vadd.xlane.f32.xlu0 %v984
        %v986 = vpop.xlane.xlu0 %985
        %v987 = vadd.f32 %v719, %v721
        %988 = vadd.xlane.f32.xlu0 %v987
        %v989 = vpop.xlane.xlu0 %988
        %v990 = vadd.f32 %v725, %v727
        %991 = vadd.xlane.f32.xlu0 %v990
        %v992 = vpop.xlane.xlu0 %991
        %v993 = vadd.f32 %v731, %v733
        %994 = vadd.xlane.f32.xlu0 %v993
        %v995 = vpop.xlane.xlu0 %994
        %v996 = vadd.f32 %v737, %v739
        %997 = vadd.xlane.f32.xlu0 %v996
        %v998 = vpop.xlane.xlu0 %997
        %v999 = vadd.f32 %v743, %v745
        %1000 = vadd.xlane.f32.xlu0 %v999
        %v1001 = vpop.xlane.xlu0 %1000
        %v1002 = vadd.f32 %v749, %v751
        %1003 = vadd.xlane.f32.xlu0 %v1002
        %v1004 = vpop.xlane.xlu0 %1003
        %v1005 = vadd.f32 %v755, %v757
        %1006 = vadd.xlane.f32.xlu0 %v1005
        %v1007 = vpop.xlane.xlu0 %1006
        %v1008 = vadd.f32 %v761, %v763
        %1009 = vadd.xlane.f32.xlu0 %v1008
        %v1010 = vpop.xlane.xlu0 %1009
        %v1011 = vadd.f32 %v767, %v769
        %1012 = vadd.xlane.f32.xlu0 %v1011
        %v1013 = vpop.xlane.xlu0 %1012
        %v1014 = vadd.f32 %v773, %v775
        %1015 = vadd.xlane.f32.xlu0 %v1014
        %v1016 = vpop.xlane.xlu0 %1015
        %v1017 = vadd.f32 %v779, %v781
        %1018 = vadd.xlane.f32.xlu0 %v1017
        %v1019 = vpop.xlane.xlu0 %1018
        %v1020 = vadd.f32 %v785, %v787
        %1021 = vadd.xlane.f32.xlu0 %v1020
        %v1022 = vpop.xlane.xlu0 %1021
        %v1023 = vadd.f32 %v791, %v793
        %1024 = vadd.xlane.f32.xlu0 %v1023
        %v1025 = vpop.xlane.xlu0 %1024
        %v1026 = vadd.f32 %v797, %v799
        %1027 = vadd.xlane.f32.xlu0 %v1026
        %v1028 = vpop.xlane.xlu0 %1027
        %v1029 = vadd.f32 %v803, %v805
        %1030 = vadd.xlane.f32.xlu0 %v1029
        %v1031 = vpop.xlane.xlu0 %1030
        %v1032 = vadd.f32 %v809, %v811
        %1033 = vadd.xlane.f32.xlu0 %v1032
        %v1034 = vpop.xlane.xlu0 %1033
        %v1035 = vadd.f32 %v815, %v817
        %1036 = vadd.xlane.f32.xlu0 %v1035
        %v1037 = vpop.xlane.xlu0 %1036
        %v1038 = vadd.f32 %v821, %v823
        %1039 = vadd.xlane.f32.xlu0 %v1038
        %v1040 = vpop.xlane.xlu0 %1039
        %v1041 = vadd.f32 %v827, %v829
        %1042 = vadd.xlane.f32.xlu0 %v1041
        %v1043 = vpop.xlane.xlu0 %1042
        %v1044 = vadd.f32 %v833, %v835
        %1045 = vadd.xlane.f32.xlu0 %v1044
        %v1046 = vpop.xlane.xlu0 %1045
        %v1047 = vadd.f32 %v839, %v841
        %1048 = vadd.xlane.f32.xlu0 %v1047
        %v1049 = vpop.xlane.xlu0 %1048
        %v1050 = vadd.f32 %v845, %v847
        %1051 = vadd.xlane.f32.xlu0 %v1050
        %v1052 = vpop.xlane.xlu0 %1051
        %v1053 = vadd.f32 %v851, %v853
        %1054 = vadd.xlane.f32.xlu0 %v1053
        %v1055 = vpop.xlane.xlu0 %1054
        %v1056 = vadd.f32 %v857, %v859
        %1057 = vadd.xlane.f32.xlu0 %v1056
        %v1058 = vpop.xlane.xlu0 %1057
        %v1059 = vadd.f32 %v863, %v865
        %1060 = vadd.xlane.f32.xlu0 %v1059
        %v1061 = vpop.xlane.xlu0 %1060
        %v1062 = vadd.f32 %v869, %v871
        %1063 = vadd.xlane.f32.xlu0 %v1062
        %v1064 = vpop.xlane.xlu0 %1063
        %v1065 = vrcp.pop 256.0
        %v1066 = vmul.f32 %v875, %v1065
        %v1067 = vmul.f32 %v878, %v1065
        %v1068 = vmul.f32 %v881, %v1065
        %v1069 = vmul.f32 %v884, %v1065
        %v1070 = vmul.f32 %v887, %v1065
        %v1071 = vmul.f32 %v890, %v1065
        %v1072 = vmul.f32 %v893, %v1065
        %v1073 = vmul.f32 %v896, %v1065
        %v1074 = vmul.f32 %v899, %v1065
        %v1075 = vmul.f32 %v902, %v1065
        %v1076 = vmul.f32 %v905, %v1065
        %v1077 = vmul.f32 %v908, %v1065
        %v1078 = vmul.f32 %v911, %v1065
        %v1079 = vmul.f32 %v914, %v1065
        %v1080 = vmul.f32 %v917, %v1065
        %v1081 = vmul.f32 %v920, %v1065
        %v1082 = vmul.f32 %v923, %v1065
        %v1083 = vmul.f32 %v926, %v1065
        %v1084 = vmul.f32 %v929, %v1065
        %v1085 = vmul.f32 %v932, %v1065
        %v1086 = vmul.f32 %v935, %v1065
        %v1087 = vmul.f32 %v938, %v1065
        %v1088 = vmul.f32 %v941, %v1065
        %v1089 = vmul.f32 %v944, %v1065
        %v1090 = vmul.f32 %v947, %v1065
        %v1091 = vmul.f32 %v950, %v1065
        %v1092 = vmul.f32 %v953, %v1065
        %v1093 = vmul.f32 %v956, %v1065
        %v1094 = vmul.f32 %v959, %v1065
        %v1095 = vmul.f32 %v962, %v1065
        %v1096 = vmul.f32 %v965, %v1065
        %v1097 = vmul.f32 %v968, %v1065
        %v1098 = vmul.f32 %v971, %v1065
        %v1099 = vmul.f32 %v974, %v1065
        %v1100 = vmul.f32 %v977, %v1065
        %v1101 = vmul.f32 %v980, %v1065
        %v1102 = vmul.f32 %v983, %v1065
        %v1103 = vmul.f32 %v986, %v1065
        %v1104 = vmul.f32 %v989, %v1065
        %v1105 = vmul.f32 %v992, %v1065
        %v1106 = vmul.f32 %v995, %v1065
        %v1107 = vmul.f32 %v998, %v1065
        %v1108 = vmul.f32 %v1001, %v1065
        %v1109 = vmul.f32 %v1004, %v1065
        %v1110 = vmul.f32 %v1007, %v1065
        %v1111 = vmul.f32 %v1010, %v1065
        %v1112 = vmul.f32 %v1013, %v1065
        %v1113 = vmul.f32 %v1016, %v1065
        %v1114 = vmul.f32 %v1019, %v1065
        %v1115 = vmul.f32 %v1022, %v1065
        %v1116 = vmul.f32 %v1025, %v1065
        %v1117 = vmul.f32 %v1028, %v1065
        %v1118 = vmul.f32 %v1031, %v1065
        %v1119 = vmul.f32 %v1034, %v1065
        %v1120 = vmul.f32 %v1037, %v1065
        %v1121 = vmul.f32 %v1040, %v1065
        %v1122 = vmul.f32 %v1043, %v1065
        %v1123 = vmul.f32 %v1046, %v1065
        %v1124 = vmul.f32 %v1049, %v1065
        %v1125 = vmul.f32 %v1052, %v1065
        %v1126 = vmul.f32 %v1055, %v1065
        %v1127 = vmul.f32 %v1058, %v1065
        %v1128 = vmul.f32 %v1061, %v1065
        %v1129 = vmul.f32 %v1064, %v1065
        %v1130 = vsub.f32 %v491, %v1066
        %v1131 = vsub.f32 %v493, %v1066
        %v1132 = vsub.f32 %v497, %v1067
        %v1133 = vsub.f32 %v499, %v1067
        %v1134 = vsub.f32 %v503, %v1068
        %v1135 = vsub.f32 %v505, %v1068
        %v1136 = vsub.f32 %v509, %v1069
        %v1137 = vsub.f32 %v511, %v1069
        %v1138 = vsub.f32 %v515, %v1070
        %v1139 = vsub.f32 %v517, %v1070
        %v1140 = vsub.f32 %v521, %v1071
        %v1141 = vsub.f32 %v523, %v1071
        %v1142 = vsub.f32 %v527, %v1072
        %v1143 = vsub.f32 %v529, %v1072
        %v1144 = vsub.f32 %v533, %v1073
        %v1145 = vsub.f32 %v535, %v1073
        %v1146 = vsub.f32 %v539, %v1074
        %v1147 = vsub.f32 %v541, %v1074
        %v1148 = vsub.f32 %v545, %v1075
        %v1149 = vsub.f32 %v547, %v1075
        %v1150 = vsub.f32 %v551, %v1076
        %v1151 = vsub.f32 %v553, %v1076
        %v1152 = vsub.f32 %v557, %v1077
        %v1153 = vsub.f32 %v559, %v1077
        %v1154 = vsub.f32 %v563, %v1078
        %v1155 = vsub.f32 %v565, %v1078
        %v1156 = vsub.f32 %v569, %v1079
        %v1157 = vsub.f32 %v571, %v1079
        %v1158 = vsub.f32 %v575, %v1080
        %v1159 = vsub.f32 %v577, %v1080
        %v1160 = vsub.f32 %v581, %v1081
        %v1161 = vsub.f32 %v583, %v1081
        %v1162 = vsub.f32 %v587, %v1082
        %v1163 = vsub.f32 %v589, %v1082
        %v1164 = vsub.f32 %v593, %v1083
        %v1165 = vsub.f32 %v595, %v1083
        %v1166 = vsub.f32 %v599, %v1084
        %v1167 = vsub.f32 %v601, %v1084
        %v1168 = vsub.f32 %v605, %v1085
        %v1169 = vsub.f32 %v607, %v1085
        %v1170 = vsub.f32 %v611, %v1086
        %v1171 = vsub.f32 %v613, %v1086
        %v1172 = vsub.f32 %v617, %v1087
        %v1173 = vsub.f32 %v619, %v1087
        %v1174 = vsub.f32 %v623, %v1088
        %v1175 = vsub.f32 %v625, %v1088
        %v1176 = vsub.f32 %v629, %v1089
        %v1177 = vsub.f32 %v631, %v1089
        %v1178 = vsub.f32 %v635, %v1090
        %v1179 = vsub.f32 %v637, %v1090
        %v1180 = vsub.f32 %v641, %v1091
        %v1181 = vsub.f32 %v643, %v1091
        %v1182 = vsub.f32 %v647, %v1092
        %v1183 = vsub.f32 %v649, %v1092
        %v1184 = vsub.f32 %v653, %v1093
        %v1185 = vsub.f32 %v655, %v1093
        %v1186 = vsub.f32 %v659, %v1094
        %v1187 = vsub.f32 %v661, %v1094
        %v1188 = vsub.f32 %v665, %v1095
        %v1189 = vsub.f32 %v667, %v1095
        %v1190 = vsub.f32 %v671, %v1096
        %v1191 = vsub.f32 %v673, %v1096
        %v1192 = vsub.f32 %v677, %v1097
        %v1193 = vsub.f32 %v679, %v1097
        %v1194 = vsub.f32 %v683, %v1098
        %v1195 = vsub.f32 %v685, %v1098
        %v1196 = vsub.f32 %v689, %v1099
        %v1197 = vsub.f32 %v691, %v1099
        %v1198 = vsub.f32 %v695, %v1100
        %v1199 = vsub.f32 %v697, %v1100
        %v1200 = vsub.f32 %v701, %v1101
        %v1201 = vsub.f32 %v703, %v1101
        %v1202 = vsub.f32 %v707, %v1102
        %v1203 = vsub.f32 %v709, %v1102
        %v1204 = vsub.f32 %v713, %v1103
        %v1205 = vsub.f32 %v715, %v1103
        %v1206 = vsub.f32 %v719, %v1104
        %v1207 = vsub.f32 %v721, %v1104
        %v1208 = vsub.f32 %v725, %v1105
        %v1209 = vsub.f32 %v727, %v1105
        %v1210 = vsub.f32 %v731, %v1106
        %v1211 = vsub.f32 %v733, %v1106
        %v1212 = vsub.f32 %v737, %v1107
        %v1213 = vsub.f32 %v739, %v1107
        %v1214 = vsub.f32 %v743, %v1108
        %v1215 = vsub.f32 %v745, %v1108
        %v1216 = vsub.f32 %v749, %v1109
        %v1217 = vsub.f32 %v751, %v1109
        %v1218 = vsub.f32 %v755, %v1110
        %v1219 = vsub.f32 %v757, %v1110
        %v1220 = vsub.f32 %v761, %v1111
        %v1221 = vsub.f32 %v763, %v1111
        %v1222 = vsub.f32 %v767, %v1112
        %v1223 = vsub.f32 %v769, %v1112
        %v1224 = vsub.f32 %v773, %v1113
        %v1225 = vsub.f32 %v775, %v1113
        %v1226 = vsub.f32 %v779, %v1114
        %v1227 = vsub.f32 %v781, %v1114
        %v1228 = vsub.f32 %v785, %v1115
        %v1229 = vsub.f32 %v787, %v1115
        %v1230 = vsub.f32 %v791, %v1116
        %v1231 = vsub.f32 %v793, %v1116
        %v1232 = vsub.f32 %v797, %v1117
        %v1233 = vsub.f32 %v799, %v1117
        %v1234 = vsub.f32 %v803, %v1118
        %v1235 = vsub.f32 %v805, %v1118
        %v1236 = vsub.f32 %v809, %v1119
        %v1237 = vsub.f32 %v811, %v1119
        %v1238 = vsub.f32 %v815, %v1120
        %v1239 = vsub.f32 %v817, %v1120
        %v1240 = vsub.f32 %v821, %v1121
        %v1241 = vsub.f32 %v823, %v1121
        %v1242 = vsub.f32 %v827, %v1122
        %v1243 = vsub.f32 %v829, %v1122
        %v1244 = vsub.f32 %v833, %v1123
        %v1245 = vsub.f32 %v835, %v1123
        %v1246 = vsub.f32 %v839, %v1124
        %v1247 = vsub.f32 %v841, %v1124
        %v1248 = vsub.f32 %v845, %v1125
        %v1249 = vsub.f32 %v847, %v1125
        %v1250 = vsub.f32 %v851, %v1126
        %v1251 = vsub.f32 %v853, %v1126
        %v1252 = vsub.f32 %v857, %v1127
        %v1253 = vsub.f32 %v859, %v1127
        %v1254 = vsub.f32 %v863, %v1128
        %v1255 = vsub.f32 %v865, %v1128
        %v1256 = vsub.f32 %v869, %v1129
        %v1257 = vsub.f32 %v871, %v1129
        %v1258 = vmul.f32 %v1130, %v1130
        %v1259 = vmul.f32 %v1131, %v1131
        %v1260 = vmul.f32 %v1132, %v1132
        %v1261 = vmul.f32 %v1133, %v1133
        %v1262 = vmul.f32 %v1134, %v1134
        %v1263 = vmul.f32 %v1135, %v1135
        %v1264 = vmul.f32 %v1136, %v1136
        %v1265 = vmul.f32 %v1137, %v1137
        %v1266 = vmul.f32 %v1138, %v1138
        %v1267 = vmul.f32 %v1139, %v1139
        %v1268 = vmul.f32 %v1140, %v1140
        %v1269 = vmul.f32 %v1141, %v1141
        %v1270 = vmul.f32 %v1142, %v1142
        %v1271 = vmul.f32 %v1143, %v1143
        %v1272 = vmul.f32 %v1144, %v1144
        %v1273 = vmul.f32 %v1145, %v1145
        %v1274 = vmul.f32 %v1146, %v1146
        %v1275 = vmul.f32 %v1147, %v1147
        %v1276 = vmul.f32 %v1148, %v1148
        %v1277 = vmul.f32 %v1149, %v1149
        %v1278 = vmul.f32 %v1150, %v1150
        %v1279 = vmul.f32 %v1151, %v1151
        %v1280 = vmul.f32 %v1152, %v1152
        %v1281 = vmul.f32 %v1153, %v1153
        %v1282 = vmul.f32 %v1154, %v1154
        %v1283 = vmul.f32 %v1155, %v1155
        %v1284 = vmul.f32 %v1156, %v1156
        %v1285 = vmul.f32 %v1157, %v1157
        %v1286 = vmul.f32 %v1158, %v1158
        %v1287 = vmul.f32 %v1159, %v1159
        %v1288 = vmul.f32 %v1160, %v1160
        %v1289 = vmul.f32 %v1161, %v1161
        %v1290 = vmul.f32 %v1162, %v1162
        %v1291 = vmul.f32 %v1163, %v1163
        %v1292 = vmul.f32 %v1164, %v1164
        %v1293 = vmul.f32 %v1165, %v1165
        %v1294 = vmul.f32 %v1166, %v1166
        %v1295 = vmul.f32 %v1167, %v1167
        %v1296 = vmul.f32 %v1168, %v1168
        %v1297 = vmul.f32 %v1169, %v1169
        %v1298 = vmul.f32 %v1170, %v1170
        %v1299 = vmul.f32 %v1171, %v1171
        %v1300 = vmul.f32 %v1172, %v1172
        %v1301 = vmul.f32 %v1173, %v1173
        %v1302 = vmul.f32 %v1174, %v1174
        %v1303 = vmul.f32 %v1175, %v1175
        %v1304 = vmul.f32 %v1176, %v1176
        %v1305 = vmul.f32 %v1177, %v1177
        %v1306 = vmul.f32 %v1178, %v1178
        %v1307 = vmul.f32 %v1179, %v1179
        %v1308 = vmul.f32 %v1180, %v1180
        %v1309 = vmul.f32 %v1181, %v1181
        %v1310 = vmul.f32 %v1182, %v1182
        %v1311 = vmul.f32 %v1183, %v1183
        %v1312 = vmul.f32 %v1184, %v1184
        %v1313 = vmul.f32 %v1185, %v1185
        %v1314 = vmul.f32 %v1186, %v1186
        %v1315 = vmul.f32 %v1187, %v1187
        %v1316 = vmul.f32 %v1188, %v1188
        %v1317 = vmul.f32 %v1189, %v1189
        %v1318 = vmul.f32 %v1190, %v1190
        %v1319 = vmul.f32 %v1191, %v1191
        %v1320 = vmul.f32 %v1192, %v1192
        %v1321 = vmul.f32 %v1193, %v1193
        %v1322 = vmul.f32 %v1194, %v1194
        %v1323 = vmul.f32 %v1195, %v1195
        %v1324 = vmul.f32 %v1196, %v1196
        %v1325 = vmul.f32 %v1197, %v1197
        %v1326 = vmul.f32 %v1198, %v1198
        %v1327 = vmul.f32 %v1199, %v1199
        %v1328 = vmul.f32 %v1200, %v1200
        %v1329 = vmul.f32 %v1201, %v1201
        %v1330 = vmul.f32 %v1202, %v1202
        %v1331 = vmul.f32 %v1203, %v1203
        %v1332 = vmul.f32 %v1204, %v1204
        %v1333 = vmul.f32 %v1205, %v1205
        %v1334 = vmul.f32 %v1206, %v1206
        %v1335 = vmul.f32 %v1207, %v1207
        %v1336 = vmul.f32 %v1208, %v1208
        %v1337 = vmul.f32 %v1209, %v1209
        %v1338 = vmul.f32 %v1210, %v1210
        %v1339 = vmul.f32 %v1211, %v1211
        %v1340 = vmul.f32 %v1212, %v1212
        %v1341 = vmul.f32 %v1213, %v1213
        %v1342 = vmul.f32 %v1214, %v1214
        %v1343 = vmul.f32 %v1215, %v1215
        %v1344 = vmul.f32 %v1216, %v1216
        %v1345 = vmul.f32 %v1217, %v1217
        %v1346 = vmul.f32 %v1218, %v1218
        %v1347 = vmul.f32 %v1219, %v1219
        %v1348 = vmul.f32 %v1220, %v1220
        %v1349 = vmul.f32 %v1221, %v1221
        %v1350 = vmul.f32 %v1222, %v1222
        %v1351 = vmul.f32 %v1223, %v1223
        %v1352 = vmul.f32 %v1224, %v1224
        %v1353 = vmul.f32 %v1225, %v1225
        %v1354 = vmul.f32 %v1226, %v1226
        %v1355 = vmul.f32 %v1227, %v1227
        %v1356 = vmul.f32 %v1228, %v1228
        %v1357 = vmul.f32 %v1229, %v1229
        %v1358 = vmul.f32 %v1230, %v1230
        %v1359 = vmul.f32 %v1231, %v1231
        %v1360 = vmul.f32 %v1232, %v1232
        %v1361 = vmul.f32 %v1233, %v1233
        %v1362 = vmul.f32 %v1234, %v1234
        %v1363 = vmul.f32 %v1235, %v1235
        %v1364 = vmul.f32 %v1236, %v1236
        %v1365 = vmul.f32 %v1237, %v1237
        %v1366 = vmul.f32 %v1238, %v1238
        %v1367 = vmul.f32 %v1239, %v1239
        %v1368 = vmul.f32 %v1240, %v1240
        %v1369 = vmul.f32 %v1241, %v1241
        %v1370 = vmul.f32 %v1242, %v1242
        %v1371 = vmul.f32 %v1243, %v1243
        %v1372 = vmul.f32 %v1244, %v1244
        %v1373 = vmul.f32 %v1245, %v1245
        %v1374 = vmul.f32 %v1246, %v1246
        %v1375 = vmul.f32 %v1247, %v1247
        %v1376 = vmul.f32 %v1248, %v1248
        %v1377 = vmul.f32 %v1249, %v1249
        %v1378 = vmul.f32 %v1250, %v1250
        %v1379 = vmul.f32 %v1251, %v1251
        %v1380 = vmul.f32 %v1252, %v1252
        %v1381 = vmul.f32 %v1253, %v1253
        %v1382 = vmul.f32 %v1254, %v1254
        %v1383 = vmul.f32 %v1255, %v1255
        %v1384 = vmul.f32 %v1256, %v1256
        %v1385 = vmul.f32 %v1257, %v1257
        %v1386 = vadd.f32 %v1258, %v1259
        %1387 = vadd.xlane.f32.xlu0 %v1386
        %v1388 = vpop.xlane.xlu0 %1387
        %v1389 = vadd.f32 %v1260, %v1261
        %1390 = vadd.xlane.f32.xlu0 %v1389
        %v1391 = vpop.xlane.xlu0 %1390
        %v1392 = vadd.f32 %v1262, %v1263
        %1393 = vadd.xlane.f32.xlu0 %v1392
        %v1394 = vpop.xlane.xlu0 %1393
        %v1395 = vadd.f32 %v1264, %v1265
        %1396 = vadd.xlane.f32.xlu0 %v1395
        %v1397 = vpop.xlane.xlu0 %1396
        %v1398 = vadd.f32 %v1266, %v1267
        %1399 = vadd.xlane.f32.xlu0 %v1398
        %v1400 = vpop.xlane.xlu0 %1399
        %v1401 = vadd.f32 %v1268, %v1269
        %1402 = vadd.xlane.f32.xlu0 %v1401
        %v1403 = vpop.xlane.xlu0 %1402
        %v1404 = vadd.f32 %v1270, %v1271
        %1405 = vadd.xlane.f32.xlu0 %v1404
        %v1406 = vpop.xlane.xlu0 %1405
        %v1407 = vadd.f32 %v1272, %v1273
        %1408 = vadd.xlane.f32.xlu0 %v1407
        %v1409 = vpop.xlane.xlu0 %1408
        %v1410 = vadd.f32 %v1274, %v1275
        %1411 = vadd.xlane.f32.xlu0 %v1410
        %v1412 = vpop.xlane.xlu0 %1411
        %v1413 = vadd.f32 %v1276, %v1277
        %1414 = vadd.xlane.f32.xlu0 %v1413
        %v1415 = vpop.xlane.xlu0 %1414
        %v1416 = vadd.f32 %v1278, %v1279
        %1417 = vadd.xlane.f32.xlu0 %v1416
        %v1418 = vpop.xlane.xlu0 %1417
        %v1419 = vadd.f32 %v1280, %v1281
        %1420 = vadd.xlane.f32.xlu0 %v1419
        %v1421 = vpop.xlane.xlu0 %1420
        %v1422 = vadd.f32 %v1282, %v1283
        %1423 = vadd.xlane.f32.xlu0 %v1422
        %v1424 = vpop.xlane.xlu0 %1423
        %v1425 = vadd.f32 %v1284, %v1285
        %1426 = vadd.xlane.f32.xlu0 %v1425
        %v1427 = vpop.xlane.xlu0 %1426
        %v1428 = vadd.f32 %v1286, %v1287
        %1429 = vadd.xlane.f32.xlu0 %v1428
        %v1430 = vpop.xlane.xlu0 %1429
        %v1431 = vadd.f32 %v1288, %v1289
        %1432 = vadd.xlane.f32.xlu0 %v1431
        %v1433 = vpop.xlane.xlu0 %1432
        %v1434 = vadd.f32 %v1290, %v1291
        %1435 = vadd.xlane.f32.xlu0 %v1434
        %v1436 = vpop.xlane.xlu0 %1435
        %v1437 = vadd.f32 %v1292, %v1293
        %1438 = vadd.xlane.f32.xlu0 %v1437
        %v1439 = vpop.xlane.xlu0 %1438
        %v1440 = vadd.f32 %v1294, %v1295
        %1441 = vadd.xlane.f32.xlu0 %v1440
        %v1442 = vpop.xlane.xlu0 %1441
        %v1443 = vadd.f32 %v1296, %v1297
        %1444 = vadd.xlane.f32.xlu0 %v1443
        %v1445 = vpop.xlane.xlu0 %1444
        %v1446 = vadd.f32 %v1298, %v1299
        %1447 = vadd.xlane.f32.xlu0 %v1446
        %v1448 = vpop.xlane.xlu0 %1447
        %v1449 = vadd.f32 %v1300, %v1301
        %1450 = vadd.xlane.f32.xlu0 %v1449
        %v1451 = vpop.xlane.xlu0 %1450
        %v1452 = vadd.f32 %v1302, %v1303
        %1453 = vadd.xlane.f32.xlu0 %v1452
        %v1454 = vpop.xlane.xlu0 %1453
        %v1455 = vadd.f32 %v1304, %v1305
        %1456 = vadd.xlane.f32.xlu0 %v1455
        %v1457 = vpop.xlane.xlu0 %1456
        %v1458 = vadd.f32 %v1306, %v1307
        %1459 = vadd.xlane.f32.xlu0 %v1458
        %v1460 = vpop.xlane.xlu0 %1459
        %v1461 = vadd.f32 %v1308, %v1309
        %1462 = vadd.xlane.f32.xlu0 %v1461
        %v1463 = vpop.xlane.xlu0 %1462
        %v1464 = vadd.f32 %v1310, %v1311
        %1465 = vadd.xlane.f32.xlu0 %v1464
        %v1466 = vpop.xlane.xlu0 %1465
        %v1467 = vadd.f32 %v1312, %v1313
        %1468 = vadd.xlane.f32.xlu0 %v1467
        %v1469 = vpop.xlane.xlu0 %1468
        %v1470 = vadd.f32 %v1314, %v1315
        %1471 = vadd.xlane.f32.xlu0 %v1470
        %v1472 = vpop.xlane.xlu0 %1471
        %v1473 = vadd.f32 %v1316, %v1317
        %1474 = vadd.xlane.f32.xlu0 %v1473
        %v1475 = vpop.xlane.xlu0 %1474
        %v1476 = vadd.f32 %v1318, %v1319
        %1477 = vadd.xlane.f32.xlu0 %v1476
        %v1478 = vpop.xlane.xlu0 %1477
        %v1479 = vadd.f32 %v1320, %v1321
        %1480 = vadd.xlane.f32.xlu0 %v1479
        %v1481 = vpop.xlane.xlu0 %1480
        %v1482 = vadd.f32 %v1322, %v1323
        %1483 = vadd.xlane.f32.xlu0 %v1482
        %v1484 = vpop.xlane.xlu0 %1483
        %v1485 = vadd.f32 %v1324, %v1325
        %1486 = vadd.xlane.f32.xlu0 %v1485
        %v1487 = vpop.xlane.xlu0 %1486
        %v1488 = vadd.f32 %v1326, %v1327
        %1489 = vadd.xlane.f32.xlu0 %v1488
        %v1490 = vpop.xlane.xlu0 %1489
        %v1491 = vadd.f32 %v1328, %v1329
        %1492 = vadd.xlane.f32.xlu0 %v1491
        %v1493 = vpop.xlane.xlu0 %1492
        %v1494 = vadd.f32 %v1330, %v1331
        %1495 = vadd.xlane.f32.xlu0 %v1494
        %v1496 = vpop.xlane.xlu0 %1495
        %v1497 = vadd.f32 %v1332, %v1333
        %1498 = vadd.xlane.f32.xlu0 %v1497
        %v1499 = vpop.xlane.xlu0 %1498
        %v1500 = vadd.f32 %v1334, %v1335
        %1501 = vadd.xlane.f32.xlu0 %v1500
        %v1502 = vpop.xlane.xlu0 %1501
        %v1503 = vadd.f32 %v1336, %v1337
        %1504 = vadd.xlane.f32.xlu0 %v1503
        %v1505 = vpop.xlane.xlu0 %1504
        %v1506 = vadd.f32 %v1338, %v1339
        %1507 = vadd.xlane.f32.xlu0 %v1506
        %v1508 = vpop.xlane.xlu0 %1507
        %v1509 = vadd.f32 %v1340, %v1341
        %1510 = vadd.xlane.f32.xlu0 %v1509
        %v1511 = vpop.xlane.xlu0 %1510
        %v1512 = vadd.f32 %v1342, %v1343
        %1513 = vadd.xlane.f32.xlu0 %v1512
        %v1514 = vpop.xlane.xlu0 %1513
        %v1515 = vadd.f32 %v1344, %v1345
        %1516 = vadd.xlane.f32.xlu0 %v1515
        %v1517 = vpop.xlane.xlu0 %1516
        %v1518 = vadd.f32 %v1346, %v1347
        %1519 = vadd.xlane.f32.xlu0 %v1518
        %v1520 = vpop.xlane.xlu0 %1519
        %v1521 = vadd.f32 %v1348, %v1349
        %1522 = vadd.xlane.f32.xlu0 %v1521
        %v1523 = vpop.xlane.xlu0 %1522
        %v1524 = vadd.f32 %v1350, %v1351
        %1525 = vadd.xlane.f32.xlu0 %v1524
        %v1526 = vpop.xlane.xlu0 %1525
        %v1527 = vadd.f32 %v1352, %v1353
        %1528 = vadd.xlane.f32.xlu0 %v1527
        %v1529 = vpop.xlane.xlu0 %1528
        %v1530 = vadd.f32 %v1354, %v1355
        %1531 = vadd.xlane.f32.xlu0 %v1530
        %v1532 = vpop.xlane.xlu0 %1531
        %v1533 = vadd.f32 %v1356, %v1357
        %1534 = vadd.xlane.f32.xlu0 %v1533
        %v1535 = vpop.xlane.xlu0 %1534
        %v1536 = vadd.f32 %v1358, %v1359
        %1537 = vadd.xlane.f32.xlu0 %v1536
        %v1538 = vpop.xlane.xlu0 %1537
        %v1539 = vadd.f32 %v1360, %v1361
        %1540 = vadd.xlane.f32.xlu0 %v1539
        %v1541 = vpop.xlane.xlu0 %1540
        %v1542 = vadd.f32 %v1362, %v1363
        %1543 = vadd.xlane.f32.xlu0 %v1542
        %v1544 = vpop.xlane.xlu0 %1543
        %v1545 = vadd.f32 %v1364, %v1365
        %1546 = vadd.xlane.f32.xlu0 %v1545
        %v1547 = vpop.xlane.xlu0 %1546
        %v1548 = vadd.f32 %v1366, %v1367
        %1549 = vadd.xlane.f32.xlu0 %v1548
        %v1550 = vpop.xlane.xlu0 %1549
        %v1551 = vadd.f32 %v1368, %v1369
        %1552 = vadd.xlane.f32.xlu0 %v1551
        %v1553 = vpop.xlane.xlu0 %1552
        %v1554 = vadd.f32 %v1370, %v1371
        %1555 = vadd.xlane.f32.xlu0 %v1554
        %v1556 = vpop.xlane.xlu0 %1555
        %v1557 = vadd.f32 %v1372, %v1373
        %1558 = vadd.xlane.f32.xlu0 %v1557
        %v1559 = vpop.xlane.xlu0 %1558
        %v1560 = vadd.f32 %v1374, %v1375
        %1561 = vadd.xlane.f32.xlu0 %v1560
        %v1562 = vpop.xlane.xlu0 %1561
        %v1563 = vadd.f32 %v1376, %v1377
        %1564 = vadd.xlane.f32.xlu0 %v1563
        %v1565 = vpop.xlane.xlu0 %1564
        %v1566 = vadd.f32 %v1378, %v1379
        %1567 = vadd.xlane.f32.xlu0 %v1566
        %v1568 = vpop.xlane.xlu0 %1567
        %v1569 = vadd.f32 %v1380, %v1381
        %1570 = vadd.xlane.f32.xlu0 %v1569
        %v1571 = vpop.xlane.xlu0 %1570
        %v1572 = vadd.f32 %v1382, %v1383
        %1573 = vadd.xlane.f32.xlu0 %v1572
        %v1574 = vpop.xlane.xlu0 %1573
        %v1575 = vadd.f32 %v1384, %v1385
        %1576 = vadd.xlane.f32.xlu0 %v1575
        %v1577 = vpop.xlane.xlu0 %1576
        %v1578 = vmul.f32 %v1388, %v1065
        %v1579 = vmul.f32 %v1391, %v1065
        %v1580 = vmul.f32 %v1394, %v1065
        %v1581 = vmul.f32 %v1397, %v1065
        %v1582 = vmul.f32 %v1400, %v1065
        %v1583 = vmul.f32 %v1403, %v1065
        %v1584 = vmul.f32 %v1406, %v1065
        %v1585 = vmul.f32 %v1409, %v1065
        %v1586 = vmul.f32 %v1412, %v1065
        %v1587 = vmul.f32 %v1415, %v1065
        %v1588 = vmul.f32 %v1418, %v1065
        %v1589 = vmul.f32 %v1421, %v1065
        %v1590 = vmul.f32 %v1424, %v1065
        %v1591 = vmul.f32 %v1427, %v1065
        %v1592 = vmul.f32 %v1430, %v1065
        %v1593 = vmul.f32 %v1433, %v1065
        %v1594 = vmul.f32 %v1436, %v1065
        %v1595 = vmul.f32 %v1439, %v1065
        %v1596 = vmul.f32 %v1442, %v1065
        %v1597 = vmul.f32 %v1445, %v1065
        %v1598 = vmul.f32 %v1448, %v1065
        %v1599 = vmul.f32 %v1451, %v1065
        %v1600 = vmul.f32 %v1454, %v1065
        %v1601 = vmul.f32 %v1457, %v1065
        %v1602 = vmul.f32 %v1460, %v1065
        %v1603 = vmul.f32 %v1463, %v1065
        %v1604 = vmul.f32 %v1466, %v1065
        %v1605 = vmul.f32 %v1469, %v1065
        %v1606 = vmul.f32 %v1472, %v1065
        %v1607 = vmul.f32 %v1475, %v1065
        %v1608 = vmul.f32 %v1478, %v1065
        %v1609 = vmul.f32 %v1481, %v1065
        %v1610 = vmul.f32 %v1484, %v1065
        %v1611 = vmul.f32 %v1487, %v1065
        %v1612 = vmul.f32 %v1490, %v1065
        %v1613 = vmul.f32 %v1493, %v1065
        %v1614 = vmul.f32 %v1496, %v1065
        %v1615 = vmul.f32 %v1499, %v1065
        %v1616 = vmul.f32 %v1502, %v1065
        %v1617 = vmul.f32 %v1505, %v1065
        %v1618 = vmul.f32 %v1508, %v1065
        %v1619 = vmul.f32 %v1511, %v1065
        %v1620 = vmul.f32 %v1514, %v1065
        %v1621 = vmul.f32 %v1517, %v1065
        %v1622 = vmul.f32 %v1520, %v1065
        %v1623 = vmul.f32 %v1523, %v1065
        %v1624 = vmul.f32 %v1526, %v1065
        %v1625 = vmul.f32 %v1529, %v1065
        %v1626 = vmul.f32 %v1532, %v1065
        %v1627 = vmul.f32 %v1535, %v1065
        %v1628 = vmul.f32 %v1538, %v1065
        %v1629 = vmul.f32 %v1541, %v1065
        %v1630 = vmul.f32 %v1544, %v1065
        %v1631 = vmul.f32 %v1547, %v1065
        %v1632 = vmul.f32 %v1550, %v1065
        %v1633 = vmul.f32 %v1553, %v1065
        %v1634 = vmul.f32 %v1556, %v1065
        %v1635 = vmul.f32 %v1559, %v1065
        %v1636 = vmul.f32 %v1562, %v1065
        %v1637 = vmul.f32 %v1565, %v1065
        %v1638 = vmul.f32 %v1568, %v1065
        %v1639 = vmul.f32 %v1571, %v1065
        %v1640 = vmul.f32 %v1574, %v1065
        %v1641 = vmul.f32 %v1577, %v1065
        %v1642 = vadd.f32 %v1578, 1e-05
        %v1643 = vadd.f32 %v1579, 1e-05
        %v1644 = vadd.f32 %v1580, 1e-05
        %v1645 = vadd.f32 %v1581, 1e-05
        %v1646 = vadd.f32 %v1582, 1e-05
        %v1647 = vadd.f32 %v1583, 1e-05
        %v1648 = vadd.f32 %v1584, 1e-05
        %v1649 = vadd.f32 %v1585, 1e-05
        %v1650 = vadd.f32 %v1586, 1e-05
        %v1651 = vadd.f32 %v1587, 1e-05
        %v1652 = vadd.f32 %v1588, 1e-05
        %v1653 = vadd.f32 %v1589, 1e-05
        %v1654 = vadd.f32 %v1590, 1e-05
        %v1655 = vadd.f32 %v1591, 1e-05
        %v1656 = vadd.f32 %v1592, 1e-05
        %v1657 = vadd.f32 %v1593, 1e-05
        %v1658 = vadd.f32 %v1594, 1e-05
        %v1659 = vadd.f32 %v1595, 1e-05
        %v1660 = vadd.f32 %v1596, 1e-05
        %v1661 = vadd.f32 %v1597, 1e-05
        %v1662 = vadd.f32 %v1598, 1e-05
        %v1663 = vadd.f32 %v1599, 1e-05
        %v1664 = vadd.f32 %v1600, 1e-05
        %v1665 = vadd.f32 %v1601, 1e-05
        %v1666 = vadd.f32 %v1602, 1e-05
        %v1667 = vadd.f32 %v1603, 1e-05
        %v1668 = vadd.f32 %v1604, 1e-05
        %v1669 = vadd.f32 %v1605, 1e-05
        %v1670 = vadd.f32 %v1606, 1e-05
        %v1671 = vadd.f32 %v1607, 1e-05
        %v1672 = vadd.f32 %v1608, 1e-05
        %v1673 = vadd.f32 %v1609, 1e-05
        %v1674 = vadd.f32 %v1610, 1e-05
        %v1675 = vadd.f32 %v1611, 1e-05
        %v1676 = vadd.f32 %v1612, 1e-05
        %v1677 = vadd.f32 %v1613, 1e-05
        %v1678 = vadd.f32 %v1614, 1e-05
        %v1679 = vadd.f32 %v1615, 1e-05
        %v1680 = vadd.f32 %v1616, 1e-05
        %v1681 = vadd.f32 %v1617, 1e-05
        %v1682 = vadd.f32 %v1618, 1e-05
        %v1683 = vadd.f32 %v1619, 1e-05
        %v1684 = vadd.f32 %v1620, 1e-05
        %v1685 = vadd.f32 %v1621, 1e-05
        %v1686 = vadd.f32 %v1622, 1e-05
        %v1687 = vadd.f32 %v1623, 1e-05
        %v1688 = vadd.f32 %v1624, 1e-05
        %v1689 = vadd.f32 %v1625, 1e-05
        %v1690 = vadd.f32 %v1626, 1e-05
        %v1691 = vadd.f32 %v1627, 1e-05
        %v1692 = vadd.f32 %v1628, 1e-05
        %v1693 = vadd.f32 %v1629, 1e-05
        %v1694 = vadd.f32 %v1630, 1e-05
        %v1695 = vadd.f32 %v1631, 1e-05
        %v1696 = vadd.f32 %v1632, 1e-05
        %v1697 = vadd.f32 %v1633, 1e-05
        %v1698 = vadd.f32 %v1634, 1e-05
        %v1699 = vadd.f32 %v1635, 1e-05
        %v1700 = vadd.f32 %v1636, 1e-05
        %v1701 = vadd.f32 %v1637, 1e-05
        %v1702 = vadd.f32 %v1638, 1e-05
        %v1703 = vadd.f32 %v1639, 1e-05
        %v1704 = vadd.f32 %v1640, 1e-05
        %v1705 = vadd.f32 %v1641, 1e-05
        %v1706 = vrsqrt.pop %v1642
        %v1707 = vrsqrt.pop %v1643
        %v1708 = vrsqrt.pop %v1644
        %v1709 = vrsqrt.pop %v1645
        %v1710 = vrsqrt.pop %v1646
        %v1711 = vrsqrt.pop %v1647
        %v1712 = vrsqrt.pop %v1648
        %v1713 = vrsqrt.pop %v1649
        %v1714 = vrsqrt.pop %v1650
        %v1715 = vrsqrt.pop %v1651
        %v1716 = vrsqrt.pop %v1652
        %v1717 = vrsqrt.pop %v1653
        %v1718 = vrsqrt.pop %v1654
        %v1719 = vrsqrt.pop %v1655
        %v1720 = vrsqrt.pop %v1656
        %v1721 = vrsqrt.pop %v1657
        %v1722 = vrsqrt.pop %v1658
        %v1723 = vrsqrt.pop %v1659
        %v1724 = vrsqrt.pop %v1660
        %v1725 = vrsqrt.pop %v1661
        %v1726 = vrsqrt.pop %v1662
        %v1727 = vrsqrt.pop %v1663
        %v1728 = vrsqrt.pop %v1664
        %v1729 = vrsqrt.pop %v1665
        %v1730 = vrsqrt.pop %v1666
        %v1731 = vrsqrt.pop %v1667
        %v1732 = vrsqrt.pop %v1668
        %v1733 = vrsqrt.pop %v1669
        %v1734 = vrsqrt.pop %v1670
        %v1735 = vrsqrt.pop %v1671
        %v1736 = vrsqrt.pop %v1672
        %v1737 = vrsqrt.pop %v1673
        %v1738 = vrsqrt.pop %v1674
        %v1739 = vrsqrt.pop %v1675
        %v1740 = vrsqrt.pop %v1676
        %v1741 = vrsqrt.pop %v1677
        %v1742 = vrsqrt.pop %v1678
        %v1743 = vrsqrt.pop %v1679
        %v1744 = vrsqrt.pop %v1680
        %v1745 = vrsqrt.pop %v1681
        %v1746 = vrsqrt.pop %v1682
        %v1747 = vrsqrt.pop %v1683
        %v1748 = vrsqrt.pop %v1684
        %v1749 = vrsqrt.pop %v1685
        %v1750 = vrsqrt.pop %v1686
        %v1751 = vrsqrt.pop %v1687
        %v1752 = vrsqrt.pop %v1688
        %v1753 = vrsqrt.pop %v1689
        %v1754 = vrsqrt.pop %v1690
        %v1755 = vrsqrt.pop %v1691
        %v1756 = vrsqrt.pop %v1692
        %v1757 = vrsqrt.pop %v1693
        %v1758 = vrsqrt.pop %v1694
        %v1759 = vrsqrt.pop %v1695
        %v1760 = vrsqrt.pop %v1696
        %v1761 = vrsqrt.pop %v1697
        %v1762 = vrsqrt.pop %v1698
        %v1763 = vrsqrt.pop %v1699
        %v1764 = vrsqrt.pop %v1700
        %v1765 = vrsqrt.pop %v1701
        %v1766 = vrsqrt.pop %v1702
        %v1767 = vrsqrt.pop %v1703
        %v1768 = vrsqrt.pop %v1704
        %v1769 = vrsqrt.pop %v1705
        %v1770 = vmul.f32 %v1130, %v1706
        %v1771 = vmul.f32 %v1131, %v1706
        %v1772 = vmul.f32 %v1132, %v1707
        %v1773 = vmul.f32 %v1133, %v1707
        %v1774 = vmul.f32 %v1134, %v1708
        %v1775 = vmul.f32 %v1135, %v1708
        %v1776 = vmul.f32 %v1136, %v1709
        %v1777 = vmul.f32 %v1137, %v1709
        %v1778 = vmul.f32 %v1138, %v1710
        %v1779 = vmul.f32 %v1139, %v1710
        %v1780 = vmul.f32 %v1140, %v1711
        %v1781 = vmul.f32 %v1141, %v1711
        %v1782 = vmul.f32 %v1142, %v1712
        %v1783 = vmul.f32 %v1143, %v1712
        %v1784 = vmul.f32 %v1144, %v1713
        %v1785 = vmul.f32 %v1145, %v1713
        %v1786 = vmul.f32 %v1146, %v1714
        %v1787 = vmul.f32 %v1147, %v1714
        %v1788 = vmul.f32 %v1148, %v1715
        %v1789 = vmul.f32 %v1149, %v1715
        %v1790 = vmul.f32 %v1150, %v1716
        %v1791 = vmul.f32 %v1151, %v1716
        %v1792 = vmul.f32 %v1152, %v1717
        %v1793 = vmul.f32 %v1153, %v1717
        %v1794 = vmul.f32 %v1154, %v1718
        %v1795 = vmul.f32 %v1155, %v1718
        %v1796 = vmul.f32 %v1156, %v1719
        %v1797 = vmul.f32 %v1157, %v1719
        %v1798 = vmul.f32 %v1158, %v1720
        %v1799 = vmul.f32 %v1159, %v1720
        %v1800 = vmul.f32 %v1160, %v1721
        %v1801 = vmul.f32 %v1161, %v1721
        %v1802 = vmul.f32 %v1162, %v1722
        %v1803 = vmul.f32 %v1163, %v1722
        %v1804 = vmul.f32 %v1164, %v1723
        %v1805 = vmul.f32 %v1165, %v1723
        %v1806 = vmul.f32 %v1166, %v1724
        %v1807 = vmul.f32 %v1167, %v1724
        %v1808 = vmul.f32 %v1168, %v1725
        %v1809 = vmul.f32 %v1169, %v1725
        %v1810 = vmul.f32 %v1170, %v1726
        %v1811 = vmul.f32 %v1171, %v1726
        %v1812 = vmul.f32 %v1172, %v1727
        %v1813 = vmul.f32 %v1173, %v1727
        %v1814 = vmul.f32 %v1174, %v1728
        %v1815 = vmul.f32 %v1175, %v1728
        %v1816 = vmul.f32 %v1176, %v1729
        %v1817 = vmul.f32 %v1177, %v1729
        %v1818 = vmul.f32 %v1178, %v1730
        %v1819 = vmul.f32 %v1179, %v1730
        %v1820 = vmul.f32 %v1180, %v1731
        %v1821 = vmul.f32 %v1181, %v1731
        %v1822 = vmul.f32 %v1182, %v1732
        %v1823 = vmul.f32 %v1183, %v1732
        %v1824 = vmul.f32 %v1184, %v1733
        %v1825 = vmul.f32 %v1185, %v1733
        %v1826 = vmul.f32 %v1186, %v1734
        %v1827 = vmul.f32 %v1187, %v1734
        %v1828 = vmul.f32 %v1188, %v1735
        %v1829 = vmul.f32 %v1189, %v1735
        %v1830 = vmul.f32 %v1190, %v1736
        %v1831 = vmul.f32 %v1191, %v1736
        %v1832 = vmul.f32 %v1192, %v1737
        %v1833 = vmul.f32 %v1193, %v1737
        %v1834 = vmul.f32 %v1194, %v1738
        %v1835 = vmul.f32 %v1195, %v1738
        %v1836 = vmul.f32 %v1196, %v1739
        %v1837 = vmul.f32 %v1197, %v1739
        %v1838 = vmul.f32 %v1198, %v1740
        %v1839 = vmul.f32 %v1199, %v1740
        %v1840 = vmul.f32 %v1200, %v1741
        %v1841 = vmul.f32 %v1201, %v1741
        %v1842 = vmul.f32 %v1202, %v1742
        %v1843 = vmul.f32 %v1203, %v1742
        %v1844 = vmul.f32 %v1204, %v1743
        %v1845 = vmul.f32 %v1205, %v1743
        %v1846 = vmul.f32 %v1206, %v1744
        %v1847 = vmul.f32 %v1207, %v1744
        %v1848 = vmul.f32 %v1208, %v1745
        %v1849 = vmul.f32 %v1209, %v1745
        %v1850 = vmul.f32 %v1210, %v1746
        %v1851 = vmul.f32 %v1211, %v1746
        %v1852 = vmul.f32 %v1212, %v1747
        %v1853 = vmul.f32 %v1213, %v1747
        %v1854 = vmul.f32 %v1214, %v1748
        %v1855 = vmul.f32 %v1215, %v1748
        %v1856 = vmul.f32 %v1216, %v1749
        %v1857 = vmul.f32 %v1217, %v1749
        %v1858 = vmul.f32 %v1218, %v1750
        %v1859 = vmul.f32 %v1219, %v1750
        %v1860 = vmul.f32 %v1220, %v1751
        %v1861 = vmul.f32 %v1221, %v1751
        %v1862 = vmul.f32 %v1222, %v1752
        %v1863 = vmul.f32 %v1223, %v1752
        %v1864 = vmul.f32 %v1224, %v1753
        %v1865 = vmul.f32 %v1225, %v1753
        %v1866 = vmul.f32 %v1226, %v1754
        %v1867 = vmul.f32 %v1227, %v1754
        %v1868 = vmul.f32 %v1228, %v1755
        %v1869 = vmul.f32 %v1229, %v1755
        %v1870 = vmul.f32 %v1230, %v1756
        %v1871 = vmul.f32 %v1231, %v1756
        %v1872 = vmul.f32 %v1232, %v1757
        %v1873 = vmul.f32 %v1233, %v1757
        %v1874 = vmul.f32 %v1234, %v1758
        %v1875 = vmul.f32 %v1235, %v1758
        %v1876 = vmul.f32 %v1236, %v1759
        %v1877 = vmul.f32 %v1237, %v1759
        %v1878 = vmul.f32 %v1238, %v1760
        %v1879 = vmul.f32 %v1239, %v1760
        %v1880 = vmul.f32 %v1240, %v1761
        %v1881 = vmul.f32 %v1241, %v1761
        %v1882 = vmul.f32 %v1242, %v1762
        %v1883 = vmul.f32 %v1243, %v1762
        %v1884 = vmul.f32 %v1244, %v1763
        %v1885 = vmul.f32 %v1245, %v1763
        %v1886 = vmul.f32 %v1246, %v1764
        %v1887 = vmul.f32 %v1247, %v1764
        %v1888 = vmul.f32 %v1248, %v1765
        %v1889 = vmul.f32 %v1249, %v1765
        %v1890 = vmul.f32 %v1250, %v1766
        %v1891 = vmul.f32 %v1251, %v1766
        %v1892 = vmul.f32 %v1252, %v1767
        %v1893 = vmul.f32 %v1253, %v1767
        %v1894 = vmul.f32 %v1254, %v1768
        %v1895 = vmul.f32 %v1255, %v1768
        %v1896 = vmul.f32 %v1256, %v1769
        %v1897 = vmul.f32 %v1257, %v1769
        %v1898 = vld [vmem:[%s3] sm:$0x3]
        %v1900 = vlaneseq
        %v1901 = vshrl.u32 %v1900, 7
        %v1902 = vsub.s32 0, %v1901
        %v1903 = vrot.slane %v1898, %v1902
        %v1904 = vlaneseq
        %v1905 = vshrl.u32 %v1904, 7
        %v1906 = vsub.s32 1, %v1905
        %v1907 = vrot.slane %v1898, %v1906
        %v1910 = vmul.f32 %v1770, %v1903
        %v1911 = vmul.f32 %v1771, %v1907
        %v1912 = vmul.f32 %v1772, %v1903
        %v1913 = vmul.f32 %v1773, %v1907
        %v1914 = vmul.f32 %v1774, %v1903
        %v1915 = vmul.f32 %v1775, %v1907
        %v1916 = vmul.f32 %v1776, %v1903
        %v1917 = vmul.f32 %v1777, %v1907
        %v1918 = vmul.f32 %v1778, %v1903
        %v1919 = vmul.f32 %v1779, %v1907
        %v1920 = vmul.f32 %v1780, %v1903
        %v1921 = vmul.f32 %v1781, %v1907
        %v1922 = vmul.f32 %v1782, %v1903
        %v1923 = vmul.f32 %v1783, %v1907
        %v1924 = vmul.f32 %v1784, %v1903
        %v1925 = vmul.f32 %v1785, %v1907
        %v1926 = vmul.f32 %v1786, %v1903
        %v1927 = vmul.f32 %v1787, %v1907
        %v1928 = vmul.f32 %v1788, %v1903
        %v1929 = vmul.f32 %v1789, %v1907
        %v1930 = vmul.f32 %v1790, %v1903
        %v1931 = vmul.f32 %v1791, %v1907
        %v1932 = vmul.f32 %v1792, %v1903
        %v1933 = vmul.f32 %v1793, %v1907
        %v1934 = vmul.f32 %v1794, %v1903
        %v1935 = vmul.f32 %v1795, %v1907
        %v1936 = vmul.f32 %v1796, %v1903
        %v1937 = vmul.f32 %v1797, %v1907
        %v1938 = vmul.f32 %v1798, %v1903
        %v1939 = vmul.f32 %v1799, %v1907
        %v1940 = vmul.f32 %v1800, %v1903
        %v1941 = vmul.f32 %v1801, %v1907
        %v1942 = vmul.f32 %v1802, %v1903
        %v1943 = vmul.f32 %v1803, %v1907
        %v1944 = vmul.f32 %v1804, %v1903
        %v1945 = vmul.f32 %v1805, %v1907
        %v1946 = vmul.f32 %v1806, %v1903
        %v1947 = vmul.f32 %v1807, %v1907
        %v1948 = vmul.f32 %v1808, %v1903
        %v1949 = vmul.f32 %v1809, %v1907
        %v1950 = vmul.f32 %v1810, %v1903
        %v1951 = vmul.f32 %v1811, %v1907
        %v1952 = vmul.f32 %v1812, %v1903
        %v1953 = vmul.f32 %v1813, %v1907
        %v1954 = vmul.f32 %v1814, %v1903
        %v1955 = vmul.f32 %v1815, %v1907
        %v1956 = vmul.f32 %v1816, %v1903
        %v1957 = vmul.f32 %v1817, %v1907
        %v1958 = vmul.f32 %v1818, %v1903
        %v1959 = vmul.f32 %v1819, %v1907
        %v1960 = vmul.f32 %v1820, %v1903
        %v1961 = vmul.f32 %v1821, %v1907
        %v1962 = vmul.f32 %v1822, %v1903
        %v1963 = vmul.f32 %v1823, %v1907
        %v1964 = vmul.f32 %v1824, %v1903
        %v1965 = vmul.f32 %v1825, %v1907
        %v1966 = vmul.f32 %v1826, %v1903
        %v1967 = vmul.f32 %v1827, %v1907
        %v1968 = vmul.f32 %v1828, %v1903
        %v1969 = vmul.f32 %v1829, %v1907
        %v1970 = vmul.f32 %v1830, %v1903
        %v1971 = vmul.f32 %v1831, %v1907
        %v1972 = vmul.f32 %v1832, %v1903
        %v1973 = vmul.f32 %v1833, %v1907
        %v1974 = vmul.f32 %v1834, %v1903
        %v1975 = vmul.f32 %v1835, %v1907
        %v1976 = vmul.f32 %v1836, %v1903
        %v1977 = vmul.f32 %v1837, %v1907
        %v1978 = vmul.f32 %v1838, %v1903
        %v1979 = vmul.f32 %v1839, %v1907
        %v1980 = vmul.f32 %v1840, %v1903
        %v1981 = vmul.f32 %v1841, %v1907
        %v1982 = vmul.f32 %v1842, %v1903
        %v1983 = vmul.f32 %v1843, %v1907
        %v1984 = vmul.f32 %v1844, %v1903
        %v1985 = vmul.f32 %v1845, %v1907
        %v1986 = vmul.f32 %v1846, %v1903
        %v1987 = vmul.f32 %v1847, %v1907
        %v1988 = vmul.f32 %v1848, %v1903
        %v1989 = vmul.f32 %v1849, %v1907
        %v1990 = vmul.f32 %v1850, %v1903
        %v1991 = vmul.f32 %v1851, %v1907
        %v1992 = vmul.f32 %v1852, %v1903
        %v1993 = vmul.f32 %v1853, %v1907
        %v1994 = vmul.f32 %v1854, %v1903
        %v1995 = vmul.f32 %v1855, %v1907
        %v1996 = vmul.f32 %v1856, %v1903
        %v1997 = vmul.f32 %v1857, %v1907
        %v1998 = vmul.f32 %v1858, %v1903
        %v1999 = vmul.f32 %v1859, %v1907
        %v2000 = vmul.f32 %v1860, %v1903
        %v2001 = vmul.f32 %v1861, %v1907
        %v2002 = vmul.f32 %v1862, %v1903
        %v2003 = vmul.f32 %v1863, %v1907
        %v2004 = vmul.f32 %v1864, %v1903
        %v2005 = vmul.f32 %v1865, %v1907
        %v2006 = vmul.f32 %v1866, %v1903
        %v2007 = vmul.f32 %v1867, %v1907
        %v2008 = vmul.f32 %v1868, %v1903
        %v2009 = vmul.f32 %v1869, %v1907
        %v2010 = vmul.f32 %v1870, %v1903
        %v2011 = vmul.f32 %v1871, %v1907
        %v2012 = vmul.f32 %v1872, %v1903
        %v2013 = vmul.f32 %v1873, %v1907
        %v2014 = vmul.f32 %v1874, %v1903
        %v2015 = vmul.f32 %v1875, %v1907
        %v2016 = vmul.f32 %v1876, %v1903
        %v2017 = vmul.f32 %v1877, %v1907
        %v2018 = vmul.f32 %v1878, %v1903
        %v2019 = vmul.f32 %v1879, %v1907
        %v2020 = vmul.f32 %v1880, %v1903
        %v2021 = vmul.f32 %v1881, %v1907
        %v2022 = vmul.f32 %v1882, %v1903
        %v2023 = vmul.f32 %v1883, %v1907
        %v2024 = vmul.f32 %v1884, %v1903
        %v2025 = vmul.f32 %v1885, %v1907
        %v2026 = vmul.f32 %v1886, %v1903
        %v2027 = vmul.f32 %v1887, %v1907
        %v2028 = vmul.f32 %v1888, %v1903
        %v2029 = vmul.f32 %v1889, %v1907
        %v2030 = vmul.f32 %v1890, %v1903
        %v2031 = vmul.f32 %v1891, %v1907
        %v2032 = vmul.f32 %v1892, %v1903
        %v2033 = vmul.f32 %v1893, %v1907
        %v2034 = vmul.f32 %v1894, %v1903
        %v2035 = vmul.f32 %v1895, %v1907
        %v2036 = vmul.f32 %v1896, %v1903
        %v2037 = vmul.f32 %v1897, %v1907
        %v2038 = vld [vmem:[%s4] sm:$0x3]
        %v2040 = vlaneseq
        %v2041 = vshrl.u32 %v2040, 7
        %v2042 = vsub.s32 0, %v2041
        %v2043 = vrot.slane %v2038, %v2042
        %v2044 = vlaneseq
        %v2045 = vshrl.u32 %v2044, 7
        %v2046 = vsub.s32 1, %v2045
        %v2047 = vrot.slane %v2038, %v2046
        %v2050 = vadd.f32 %v1910, %v2043
        %v2051 = vadd.f32 %v1911, %v2047
        %v2052 = vadd.f32 %v1912, %v2043
        %v2053 = vadd.f32 %v1913, %v2047
        %v2054 = vadd.f32 %v1914, %v2043
        %v2055 = vadd.f32 %v1915, %v2047
        %v2056 = vadd.f32 %v1916, %v2043
        %v2057 = vadd.f32 %v1917, %v2047
        %v2058 = vadd.f32 %v1918, %v2043
        %v2059 = vadd.f32 %v1919, %v2047
        %v2060 = vadd.f32 %v1920, %v2043
        %v2061 = vadd.f32 %v1921, %v2047
        %v2062 = vadd.f32 %v1922, %v2043
        %v2063 = vadd.f32 %v1923, %v2047
        %v2064 = vadd.f32 %v1924, %v2043
        %v2065 = vadd.f32 %v1925, %v2047
        %v2066 = vadd.f32 %v1926, %v2043
        %v2067 = vadd.f32 %v1927, %v2047
        %v2068 = vadd.f32 %v1928, %v2043
        %v2069 = vadd.f32 %v1929, %v2047
        %v2070 = vadd.f32 %v1930, %v2043
        %v2071 = vadd.f32 %v1931, %v2047
        %v2072 = vadd.f32 %v1932, %v2043
        %v2073 = vadd.f32 %v1933, %v2047
        %v2074 = vadd.f32 %v1934, %v2043
        %v2075 = vadd.f32 %v1935, %v2047
        %v2076 = vadd.f32 %v1936, %v2043
        %v2077 = vadd.f32 %v1937, %v2047
        %v2078 = vadd.f32 %v1938, %v2043
        %v2079 = vadd.f32 %v1939, %v2047
        %v2080 = vadd.f32 %v1940, %v2043
        %v2081 = vadd.f32 %v1941, %v2047
        %v2082 = vadd.f32 %v1942, %v2043
        %v2083 = vadd.f32 %v1943, %v2047
        %v2084 = vadd.f32 %v1944, %v2043
        %v2085 = vadd.f32 %v1945, %v2047
        %v2086 = vadd.f32 %v1946, %v2043
        %v2087 = vadd.f32 %v1947, %v2047
        %v2088 = vadd.f32 %v1948, %v2043
        %v2089 = vadd.f32 %v1949, %v2047
        %v2090 = vadd.f32 %v1950, %v2043
        %v2091 = vadd.f32 %v1951, %v2047
        %v2092 = vadd.f32 %v1952, %v2043
        %v2093 = vadd.f32 %v1953, %v2047
        %v2094 = vadd.f32 %v1954, %v2043
        %v2095 = vadd.f32 %v1955, %v2047
        %v2096 = vadd.f32 %v1956, %v2043
        %v2097 = vadd.f32 %v1957, %v2047
        %v2098 = vadd.f32 %v1958, %v2043
        %v2099 = vadd.f32 %v1959, %v2047
        %v2100 = vadd.f32 %v1960, %v2043
        %v2101 = vadd.f32 %v1961, %v2047
        %v2102 = vadd.f32 %v1962, %v2043
        %v2103 = vadd.f32 %v1963, %v2047
        %v2104 = vadd.f32 %v1964, %v2043
        %v2105 = vadd.f32 %v1965, %v2047
        %v2106 = vadd.f32 %v1966, %v2043
        %v2107 = vadd.f32 %v1967, %v2047
        %v2108 = vadd.f32 %v1968, %v2043
        %v2109 = vadd.f32 %v1969, %v2047
        %v2110 = vadd.f32 %v1970, %v2043
        %v2111 = vadd.f32 %v1971, %v2047
        %v2112 = vadd.f32 %v1972, %v2043
        %v2113 = vadd.f32 %v1973, %v2047
        %v2114 = vadd.f32 %v1974, %v2043
        %v2115 = vadd.f32 %v1975, %v2047
        %v2116 = vadd.f32 %v1976, %v2043
        %v2117 = vadd.f32 %v1977, %v2047
        %v2118 = vadd.f32 %v1978, %v2043
        %v2119 = vadd.f32 %v1979, %v2047
        %v2120 = vadd.f32 %v1980, %v2043
        %v2121 = vadd.f32 %v1981, %v2047
        %v2122 = vadd.f32 %v1982, %v2043
        %v2123 = vadd.f32 %v1983, %v2047
        %v2124 = vadd.f32 %v1984, %v2043
        %v2125 = vadd.f32 %v1985, %v2047
        %v2126 = vadd.f32 %v1986, %v2043
        %v2127 = vadd.f32 %v1987, %v2047
        %v2128 = vadd.f32 %v1988, %v2043
        %v2129 = vadd.f32 %v1989, %v2047
        %v2130 = vadd.f32 %v1990, %v2043
        %v2131 = vadd.f32 %v1991, %v2047
        %v2132 = vadd.f32 %v1992, %v2043
        %v2133 = vadd.f32 %v1993, %v2047
        %v2134 = vadd.f32 %v1994, %v2043
        %v2135 = vadd.f32 %v1995, %v2047
        %v2136 = vadd.f32 %v1996, %v2043
        %v2137 = vadd.f32 %v1997, %v2047
        %v2138 = vadd.f32 %v1998, %v2043
        %v2139 = vadd.f32 %v1999, %v2047
        %v2140 = vadd.f32 %v2000, %v2043
        %v2141 = vadd.f32 %v2001, %v2047
        %v2142 = vadd.f32 %v2002, %v2043
        %v2143 = vadd.f32 %v2003, %v2047
        %v2144 = vadd.f32 %v2004, %v2043
        %v2145 = vadd.f32 %v2005, %v2047
        %v2146 = vadd.f32 %v2006, %v2043
        %v2147 = vadd.f32 %v2007, %v2047
        %v2148 = vadd.f32 %v2008, %v2043
        %v2149 = vadd.f32 %v2009, %v2047
        %v2150 = vadd.f32 %v2010, %v2043
        %v2151 = vadd.f32 %v2011, %v2047
        %v2152 = vadd.f32 %v2012, %v2043
        %v2153 = vadd.f32 %v2013, %v2047
        %v2154 = vadd.f32 %v2014, %v2043
        %v2155 = vadd.f32 %v2015, %v2047
        %v2156 = vadd.f32 %v2016, %v2043
        %v2157 = vadd.f32 %v2017, %v2047
        %v2158 = vadd.f32 %v2018, %v2043
        %v2159 = vadd.f32 %v2019, %v2047
        %v2160 = vadd.f32 %v2020, %v2043
        %v2161 = vadd.f32 %v2021, %v2047
        %v2162 = vadd.f32 %v2022, %v2043
        %v2163 = vadd.f32 %v2023, %v2047
        %v2164 = vadd.f32 %v2024, %v2043
        %v2165 = vadd.f32 %v2025, %v2047
        %v2166 = vadd.f32 %v2026, %v2043
        %v2167 = vadd.f32 %v2027, %v2047
        %v2168 = vadd.f32 %v2028, %v2043
        %v2169 = vadd.f32 %v2029, %v2047
        %v2170 = vadd.f32 %v2030, %v2043
        %v2171 = vadd.f32 %v2031, %v2047
        %v2172 = vadd.f32 %v2032, %v2043
        %v2173 = vadd.f32 %v2033, %v2047
        %v2174 = vadd.f32 %v2034, %v2043
        %v2175 = vadd.f32 %v2035, %v2047
        %v2176 = vadd.f32 %v2036, %v2043
        %v2177 = vadd.f32 %v2037, %v2047
        %v2178 = vmax.f32 %v2050, 0.0
        %v2179 = vmax.f32 %v2051, 0.0
        %v2180 = vmax.f32 %v2052, 0.0
        %v2181 = vmax.f32 %v2053, 0.0
        %v2182 = vmax.f32 %v2054, 0.0
        %v2183 = vmax.f32 %v2055, 0.0
        %v2184 = vmax.f32 %v2056, 0.0
        %v2185 = vmax.f32 %v2057, 0.0
        %v2186 = vmax.f32 %v2058, 0.0
        %v2187 = vmax.f32 %v2059, 0.0
        %v2188 = vmax.f32 %v2060, 0.0
        %v2189 = vmax.f32 %v2061, 0.0
        %v2190 = vmax.f32 %v2062, 0.0
        %v2191 = vmax.f32 %v2063, 0.0
        %v2192 = vmax.f32 %v2064, 0.0
        %v2193 = vmax.f32 %v2065, 0.0
        %v2194 = vmax.f32 %v2066, 0.0
        %v2195 = vmax.f32 %v2067, 0.0
        %v2196 = vmax.f32 %v2068, 0.0
        %v2197 = vmax.f32 %v2069, 0.0
        %v2198 = vmax.f32 %v2070, 0.0
        %v2199 = vmax.f32 %v2071, 0.0
        %v2200 = vmax.f32 %v2072, 0.0
        %v2201 = vmax.f32 %v2073, 0.0
        %v2202 = vmax.f32 %v2074, 0.0
        %v2203 = vmax.f32 %v2075, 0.0
        %v2204 = vmax.f32 %v2076, 0.0
        %v2205 = vmax.f32 %v2077, 0.0
        %v2206 = vmax.f32 %v2078, 0.0
        %v2207 = vmax.f32 %v2079, 0.0
        %v2208 = vmax.f32 %v2080, 0.0
        %v2209 = vmax.f32 %v2081, 0.0
        %v2210 = vmax.f32 %v2082, 0.0
        %v2211 = vmax.f32 %v2083, 0.0
        %v2212 = vmax.f32 %v2084, 0.0
        %v2213 = vmax.f32 %v2085, 0.0
        %v2214 = vmax.f32 %v2086, 0.0
        %v2215 = vmax.f32 %v2087, 0.0
        %v2216 = vmax.f32 %v2088, 0.0
        %v2217 = vmax.f32 %v2089, 0.0
        %v2218 = vmax.f32 %v2090, 0.0
        %v2219 = vmax.f32 %v2091, 0.0
        %v2220 = vmax.f32 %v2092, 0.0
        %v2221 = vmax.f32 %v2093, 0.0
        %v2222 = vmax.f32 %v2094, 0.0
        %v2223 = vmax.f32 %v2095, 0.0
        %v2224 = vmax.f32 %v2096, 0.0
        %v2225 = vmax.f32 %v2097, 0.0
        %v2226 = vmax.f32 %v2098, 0.0
        %v2227 = vmax.f32 %v2099, 0.0
        %v2228 = vmax.f32 %v2100, 0.0
        %v2229 = vmax.f32 %v2101, 0.0
        %v2230 = vmax.f32 %v2102, 0.0
        %v2231 = vmax.f32 %v2103, 0.0
        %v2232 = vmax.f32 %v2104, 0.0
        %v2233 = vmax.f32 %v2105, 0.0
        %v2234 = vmax.f32 %v2106, 0.0
        %v2235 = vmax.f32 %v2107, 0.0
        %v2236 = vmax.f32 %v2108, 0.0
        %v2237 = vmax.f32 %v2109, 0.0
        %v2238 = vmax.f32 %v2110, 0.0
        %v2239 = vmax.f32 %v2111, 0.0
        %v2240 = vmax.f32 %v2112, 0.0
        %v2241 = vmax.f32 %v2113, 0.0
        %v2242 = vmax.f32 %v2114, 0.0
        %v2243 = vmax.f32 %v2115, 0.0
        %v2244 = vmax.f32 %v2116, 0.0
        %v2245 = vmax.f32 %v2117, 0.0
        %v2246 = vmax.f32 %v2118, 0.0
        %v2247 = vmax.f32 %v2119, 0.0
        %v2248 = vmax.f32 %v2120, 0.0
        %v2249 = vmax.f32 %v2121, 0.0
        %v2250 = vmax.f32 %v2122, 0.0
        %v2251 = vmax.f32 %v2123, 0.0
        %v2252 = vmax.f32 %v2124, 0.0
        %v2253 = vmax.f32 %v2125, 0.0
        %v2254 = vmax.f32 %v2126, 0.0
        %v2255 = vmax.f32 %v2127, 0.0
        %v2256 = vmax.f32 %v2128, 0.0
        %v2257 = vmax.f32 %v2129, 0.0
        %v2258 = vmax.f32 %v2130, 0.0
        %v2259 = vmax.f32 %v2131, 0.0
        %v2260 = vmax.f32 %v2132, 0.0
        %v2261 = vmax.f32 %v2133, 0.0
        %v2262 = vmax.f32 %v2134, 0.0
        %v2263 = vmax.f32 %v2135, 0.0
        %v2264 = vmax.f32 %v2136, 0.0
        %v2265 = vmax.f32 %v2137, 0.0
        %v2266 = vmax.f32 %v2138, 0.0
        %v2267 = vmax.f32 %v2139, 0.0
        %v2268 = vmax.f32 %v2140, 0.0
        %v2269 = vmax.f32 %v2141, 0.0
        %v2270 = vmax.f32 %v2142, 0.0
        %v2271 = vmax.f32 %v2143, 0.0
        %v2272 = vmax.f32 %v2144, 0.0
        %v2273 = vmax.f32 %v2145, 0.0
        %v2274 = vmax.f32 %v2146, 0.0
        %v2275 = vmax.f32 %v2147, 0.0
        %v2276 = vmax.f32 %v2148, 0.0
        %v2277 = vmax.f32 %v2149, 0.0
        %v2278 = vmax.f32 %v2150, 0.0
        %v2279 = vmax.f32 %v2151, 0.0
        %v2280 = vmax.f32 %v2152, 0.0
        %v2281 = vmax.f32 %v2153, 0.0
        %v2282 = vmax.f32 %v2154, 0.0
        %v2283 = vmax.f32 %v2155, 0.0
        %v2284 = vmax.f32 %v2156, 0.0
        %v2285 = vmax.f32 %v2157, 0.0
        %v2286 = vmax.f32 %v2158, 0.0
        %v2287 = vmax.f32 %v2159, 0.0
        %v2288 = vmax.f32 %v2160, 0.0
        %v2289 = vmax.f32 %v2161, 0.0
        %v2290 = vmax.f32 %v2162, 0.0
        %v2291 = vmax.f32 %v2163, 0.0
        %v2292 = vmax.f32 %v2164, 0.0
        %v2293 = vmax.f32 %v2165, 0.0
        %v2294 = vmax.f32 %v2166, 0.0
        %v2295 = vmax.f32 %v2167, 0.0
        %v2296 = vmax.f32 %v2168, 0.0
        %v2297 = vmax.f32 %v2169, 0.0
        %v2298 = vmax.f32 %v2170, 0.0
        %v2299 = vmax.f32 %v2171, 0.0
        %v2300 = vmax.f32 %v2172, 0.0
        %v2301 = vmax.f32 %v2173, 0.0
        %v2302 = vmax.f32 %v2174, 0.0
        %v2303 = vmax.f32 %v2175, 0.0
        %v2304 = vmax.f32 %v2176, 0.0
        %v2305 = vmax.f32 %v2177, 0.0
        %v2306 = vld [vmem:[%s5] sm:$0x3]
        %v2308 = vlaneseq
        %v2309 = vshrl.u32 %v2308, 7
        %v2310 = vsub.s32 0, %v2309
        %v2311 = vrot.slane %v2306, %v2310
        %v2312 = vlaneseq
        %v2313 = vshrl.u32 %v2312, 7
        %v2314 = vsub.s32 1, %v2313
        %v2315 = vrot.slane %v2306, %v2314
        %v2318 = vmul.f32 %v2178, %v2311
        %v2319 = vmul.f32 %v2179, %v2315
        %v2320 = vmul.f32 %v2180, %v2311
        %v2321 = vmul.f32 %v2181, %v2315
        %v2322 = vmul.f32 %v2182, %v2311
        %v2323 = vmul.f32 %v2183, %v2315
        %v2324 = vmul.f32 %v2184, %v2311
        %v2325 = vmul.f32 %v2185, %v2315
        %v2326 = vmul.f32 %v2186, %v2311
        %v2327 = vmul.f32 %v2187, %v2315
        %v2328 = vmul.f32 %v2188, %v2311
        %v2329 = vmul.f32 %v2189, %v2315
        %v2330 = vmul.f32 %v2190, %v2311
        %v2331 = vmul.f32 %v2191, %v2315
        %v2332 = vmul.f32 %v2192, %v2311
        %v2333 = vmul.f32 %v2193, %v2315
        %v2334 = vmul.f32 %v2194, %v2311
        %v2335 = vmul.f32 %v2195, %v2315
        %v2336 = vmul.f32 %v2196, %v2311
        %v2337 = vmul.f32 %v2197, %v2315
        %v2338 = vmul.f32 %v2198, %v2311
        %v2339 = vmul.f32 %v2199, %v2315
        %v2340 = vmul.f32 %v2200, %v2311
        %v2341 = vmul.f32 %v2201, %v2315
        %v2342 = vmul.f32 %v2202, %v2311
        %v2343 = vmul.f32 %v2203, %v2315
        %v2344 = vmul.f32 %v2204, %v2311
        %v2345 = vmul.f32 %v2205, %v2315
        %v2346 = vmul.f32 %v2206, %v2311
        %v2347 = vmul.f32 %v2207, %v2315
        %v2348 = vmul.f32 %v2208, %v2311
        %v2349 = vmul.f32 %v2209, %v2315
        %v2350 = vmul.f32 %v2210, %v2311
        %v2351 = vmul.f32 %v2211, %v2315
        %v2352 = vmul.f32 %v2212, %v2311
        %v2353 = vmul.f32 %v2213, %v2315
        %v2354 = vmul.f32 %v2214, %v2311
        %v2355 = vmul.f32 %v2215, %v2315
        %v2356 = vmul.f32 %v2216, %v2311
        %v2357 = vmul.f32 %v2217, %v2315
        %v2358 = vmul.f32 %v2218, %v2311
        %v2359 = vmul.f32 %v2219, %v2315
        %v2360 = vmul.f32 %v2220, %v2311
        %v2361 = vmul.f32 %v2221, %v2315
        %v2362 = vmul.f32 %v2222, %v2311
        %v2363 = vmul.f32 %v2223, %v2315
        %v2364 = vmul.f32 %v2224, %v2311
        %v2365 = vmul.f32 %v2225, %v2315
        %v2366 = vmul.f32 %v2226, %v2311
        %v2367 = vmul.f32 %v2227, %v2315
        %v2368 = vmul.f32 %v2228, %v2311
        %v2369 = vmul.f32 %v2229, %v2315
        %v2370 = vmul.f32 %v2230, %v2311
        %v2371 = vmul.f32 %v2231, %v2315
        %v2372 = vmul.f32 %v2232, %v2311
        %v2373 = vmul.f32 %v2233, %v2315
        %v2374 = vmul.f32 %v2234, %v2311
        %v2375 = vmul.f32 %v2235, %v2315
        %v2376 = vmul.f32 %v2236, %v2311
        %v2377 = vmul.f32 %v2237, %v2315
        %v2378 = vmul.f32 %v2238, %v2311
        %v2379 = vmul.f32 %v2239, %v2315
        %v2380 = vmul.f32 %v2240, %v2311
        %v2381 = vmul.f32 %v2241, %v2315
        %v2382 = vmul.f32 %v2242, %v2311
        %v2383 = vmul.f32 %v2243, %v2315
        %v2384 = vmul.f32 %v2244, %v2311
        %v2385 = vmul.f32 %v2245, %v2315
        %v2386 = vmul.f32 %v2246, %v2311
        %v2387 = vmul.f32 %v2247, %v2315
        %v2388 = vmul.f32 %v2248, %v2311
        %v2389 = vmul.f32 %v2249, %v2315
        %v2390 = vmul.f32 %v2250, %v2311
        %v2391 = vmul.f32 %v2251, %v2315
        %v2392 = vmul.f32 %v2252, %v2311
        %v2393 = vmul.f32 %v2253, %v2315
        %v2394 = vmul.f32 %v2254, %v2311
        %v2395 = vmul.f32 %v2255, %v2315
        %v2396 = vmul.f32 %v2256, %v2311
        %v2397 = vmul.f32 %v2257, %v2315
        %v2398 = vmul.f32 %v2258, %v2311
        %v2399 = vmul.f32 %v2259, %v2315
        %v2400 = vmul.f32 %v2260, %v2311
        %v2401 = vmul.f32 %v2261, %v2315
        %v2402 = vmul.f32 %v2262, %v2311
        %v2403 = vmul.f32 %v2263, %v2315
        %v2404 = vmul.f32 %v2264, %v2311
        %v2405 = vmul.f32 %v2265, %v2315
        %v2406 = vmul.f32 %v2266, %v2311
        %v2407 = vmul.f32 %v2267, %v2315
        %v2408 = vmul.f32 %v2268, %v2311
        %v2409 = vmul.f32 %v2269, %v2315
        %v2410 = vmul.f32 %v2270, %v2311
        %v2411 = vmul.f32 %v2271, %v2315
        %v2412 = vmul.f32 %v2272, %v2311
        %v2413 = vmul.f32 %v2273, %v2315
        %v2414 = vmul.f32 %v2274, %v2311
        %v2415 = vmul.f32 %v2275, %v2315
        %v2416 = vmul.f32 %v2276, %v2311
        %v2417 = vmul.f32 %v2277, %v2315
        %v2418 = vmul.f32 %v2278, %v2311
        %v2419 = vmul.f32 %v2279, %v2315
        %v2420 = vmul.f32 %v2280, %v2311
        %v2421 = vmul.f32 %v2281, %v2315
        %v2422 = vmul.f32 %v2282, %v2311
        %v2423 = vmul.f32 %v2283, %v2315
        %v2424 = vmul.f32 %v2284, %v2311
        %v2425 = vmul.f32 %v2285, %v2315
        %v2426 = vmul.f32 %v2286, %v2311
        %v2427 = vmul.f32 %v2287, %v2315
        %v2428 = vmul.f32 %v2288, %v2311
        %v2429 = vmul.f32 %v2289, %v2315
        %v2430 = vmul.f32 %v2290, %v2311
        %v2431 = vmul.f32 %v2291, %v2315
        %v2432 = vmul.f32 %v2292, %v2311
        %v2433 = vmul.f32 %v2293, %v2315
        %v2434 = vmul.f32 %v2294, %v2311
        %v2435 = vmul.f32 %v2295, %v2315
        %v2436 = vmul.f32 %v2296, %v2311
        %v2437 = vmul.f32 %v2297, %v2315
        %v2438 = vmul.f32 %v2298, %v2311
        %v2439 = vmul.f32 %v2299, %v2315
        %v2440 = vmul.f32 %v2300, %v2311
        %v2441 = vmul.f32 %v2301, %v2315
        %v2442 = vmul.f32 %v2302, %v2311
        %v2443 = vmul.f32 %v2303, %v2315
        %v2444 = vmul.f32 %v2304, %v2311
        %v2445 = vmul.f32 %v2305, %v2315
        %v2446 = vadd.f32 %v2318, %v2319
        %2447 = vadd.xlane.f32.xlu0 %v2446
        %v2448 = vpop.xlane.xlu0 %2447
        %v2449 = vadd.f32 %v2320, %v2321
        %2450 = vadd.xlane.f32.xlu0 %v2449
        %v2451 = vpop.xlane.xlu0 %2450
        %v2452 = vadd.f32 %v2322, %v2323
        %2453 = vadd.xlane.f32.xlu0 %v2452
        %v2454 = vpop.xlane.xlu0 %2453
        %v2455 = vadd.f32 %v2324, %v2325
        %2456 = vadd.xlane.f32.xlu0 %v2455
        %v2457 = vpop.xlane.xlu0 %2456
        %v2458 = vadd.f32 %v2326, %v2327
        %2459 = vadd.xlane.f32.xlu0 %v2458
        %v2460 = vpop.xlane.xlu0 %2459
        %v2461 = vadd.f32 %v2328, %v2329
        %2462 = vadd.xlane.f32.xlu0 %v2461
        %v2463 = vpop.xlane.xlu0 %2462
        %v2464 = vadd.f32 %v2330, %v2331
        %2465 = vadd.xlane.f32.xlu0 %v2464
        %v2466 = vpop.xlane.xlu0 %2465
        %v2467 = vadd.f32 %v2332, %v2333
        %2468 = vadd.xlane.f32.xlu0 %v2467
        %v2469 = vpop.xlane.xlu0 %2468
        %v2470 = vadd.f32 %v2334, %v2335
        %2471 = vadd.xlane.f32.xlu0 %v2470
        %v2472 = vpop.xlane.xlu0 %2471
        %v2473 = vadd.f32 %v2336, %v2337
        %2474 = vadd.xlane.f32.xlu0 %v2473
        %v2475 = vpop.xlane.xlu0 %2474
        %v2476 = vadd.f32 %v2338, %v2339
        %2477 = vadd.xlane.f32.xlu0 %v2476
        %v2478 = vpop.xlane.xlu0 %2477
        %v2479 = vadd.f32 %v2340, %v2341
        %2480 = vadd.xlane.f32.xlu0 %v2479
        %v2481 = vpop.xlane.xlu0 %2480
        %v2482 = vadd.f32 %v2342, %v2343
        %2483 = vadd.xlane.f32.xlu0 %v2482
        %v2484 = vpop.xlane.xlu0 %2483
        %v2485 = vadd.f32 %v2344, %v2345
        %2486 = vadd.xlane.f32.xlu0 %v2485
        %v2487 = vpop.xlane.xlu0 %2486
        %v2488 = vadd.f32 %v2346, %v2347
        %2489 = vadd.xlane.f32.xlu0 %v2488
        %v2490 = vpop.xlane.xlu0 %2489
        %v2491 = vadd.f32 %v2348, %v2349
        %2492 = vadd.xlane.f32.xlu0 %v2491
        %v2493 = vpop.xlane.xlu0 %2492
        %v2494 = vadd.f32 %v2350, %v2351
        %2495 = vadd.xlane.f32.xlu0 %v2494
        %v2496 = vpop.xlane.xlu0 %2495
        %v2497 = vadd.f32 %v2352, %v2353
        %2498 = vadd.xlane.f32.xlu0 %v2497
        %v2499 = vpop.xlane.xlu0 %2498
        %v2500 = vadd.f32 %v2354, %v2355
        %2501 = vadd.xlane.f32.xlu0 %v2500
        %v2502 = vpop.xlane.xlu0 %2501
        %v2503 = vadd.f32 %v2356, %v2357
        %2504 = vadd.xlane.f32.xlu0 %v2503
        %v2505 = vpop.xlane.xlu0 %2504
        %v2506 = vadd.f32 %v2358, %v2359
        %2507 = vadd.xlane.f32.xlu0 %v2506
        %v2508 = vpop.xlane.xlu0 %2507
        %v2509 = vadd.f32 %v2360, %v2361
        %2510 = vadd.xlane.f32.xlu0 %v2509
        %v2511 = vpop.xlane.xlu0 %2510
        %v2512 = vadd.f32 %v2362, %v2363
        %2513 = vadd.xlane.f32.xlu0 %v2512
        %v2514 = vpop.xlane.xlu0 %2513
        %v2515 = vadd.f32 %v2364, %v2365
        %2516 = vadd.xlane.f32.xlu0 %v2515
        %v2517 = vpop.xlane.xlu0 %2516
        %v2518 = vadd.f32 %v2366, %v2367
        %2519 = vadd.xlane.f32.xlu0 %v2518
        %v2520 = vpop.xlane.xlu0 %2519
        %v2521 = vadd.f32 %v2368, %v2369
        %2522 = vadd.xlane.f32.xlu0 %v2521
        %v2523 = vpop.xlane.xlu0 %2522
        %v2524 = vadd.f32 %v2370, %v2371
        %2525 = vadd.xlane.f32.xlu0 %v2524
        %v2526 = vpop.xlane.xlu0 %2525
        %v2527 = vadd.f32 %v2372, %v2373
        %2528 = vadd.xlane.f32.xlu0 %v2527
        %v2529 = vpop.xlane.xlu0 %2528
        %v2530 = vadd.f32 %v2374, %v2375
        %2531 = vadd.xlane.f32.xlu0 %v2530
        %v2532 = vpop.xlane.xlu0 %2531
        %v2533 = vadd.f32 %v2376, %v2377
        %2534 = vadd.xlane.f32.xlu0 %v2533
        %v2535 = vpop.xlane.xlu0 %2534
        %v2536 = vadd.f32 %v2378, %v2379
        %2537 = vadd.xlane.f32.xlu0 %v2536
        %v2538 = vpop.xlane.xlu0 %2537
        %v2539 = vadd.f32 %v2380, %v2381
        %2540 = vadd.xlane.f32.xlu0 %v2539
        %v2541 = vpop.xlane.xlu0 %2540
        %v2542 = vadd.f32 %v2382, %v2383
        %2543 = vadd.xlane.f32.xlu0 %v2542
        %v2544 = vpop.xlane.xlu0 %2543
        %v2545 = vadd.f32 %v2384, %v2385
        %2546 = vadd.xlane.f32.xlu0 %v2545
        %v2547 = vpop.xlane.xlu0 %2546
        %v2548 = vadd.f32 %v2386, %v2387
        %2549 = vadd.xlane.f32.xlu0 %v2548
        %v2550 = vpop.xlane.xlu0 %2549
        %v2551 = vadd.f32 %v2388, %v2389
        %2552 = vadd.xlane.f32.xlu0 %v2551
        %v2553 = vpop.xlane.xlu0 %2552
        %v2554 = vadd.f32 %v2390, %v2391
        %2555 = vadd.xlane.f32.xlu0 %v2554
        %v2556 = vpop.xlane.xlu0 %2555
        %v2557 = vadd.f32 %v2392, %v2393
        %2558 = vadd.xlane.f32.xlu0 %v2557
        %v2559 = vpop.xlane.xlu0 %2558
        %v2560 = vadd.f32 %v2394, %v2395
        %2561 = vadd.xlane.f32.xlu0 %v2560
        %v2562 = vpop.xlane.xlu0 %2561
        %v2563 = vadd.f32 %v2396, %v2397
        %2564 = vadd.xlane.f32.xlu0 %v2563
        %v2565 = vpop.xlane.xlu0 %2564
        %v2566 = vadd.f32 %v2398, %v2399
        %2567 = vadd.xlane.f32.xlu0 %v2566
        %v2568 = vpop.xlane.xlu0 %2567
        %v2569 = vadd.f32 %v2400, %v2401
        %2570 = vadd.xlane.f32.xlu0 %v2569
        %v2571 = vpop.xlane.xlu0 %2570
        %v2572 = vadd.f32 %v2402, %v2403
        %2573 = vadd.xlane.f32.xlu0 %v2572
        %v2574 = vpop.xlane.xlu0 %2573
        %v2575 = vadd.f32 %v2404, %v2405
        %2576 = vadd.xlane.f32.xlu0 %v2575
        %v2577 = vpop.xlane.xlu0 %2576
        %v2578 = vadd.f32 %v2406, %v2407
        %2579 = vadd.xlane.f32.xlu0 %v2578
        %v2580 = vpop.xlane.xlu0 %2579
        %v2581 = vadd.f32 %v2408, %v2409
        %2582 = vadd.xlane.f32.xlu0 %v2581
        %v2583 = vpop.xlane.xlu0 %2582
        %v2584 = vadd.f32 %v2410, %v2411
        %2585 = vadd.xlane.f32.xlu0 %v2584
        %v2586 = vpop.xlane.xlu0 %2585
        %v2587 = vadd.f32 %v2412, %v2413
        %2588 = vadd.xlane.f32.xlu0 %v2587
        %v2589 = vpop.xlane.xlu0 %2588
        %v2590 = vadd.f32 %v2414, %v2415
        %2591 = vadd.xlane.f32.xlu0 %v2590
        %v2592 = vpop.xlane.xlu0 %2591
        %v2593 = vadd.f32 %v2416, %v2417
        %2594 = vadd.xlane.f32.xlu0 %v2593
        %v2595 = vpop.xlane.xlu0 %2594
        %v2596 = vadd.f32 %v2418, %v2419
        %2597 = vadd.xlane.f32.xlu0 %v2596
        %v2598 = vpop.xlane.xlu0 %2597
        %v2599 = vadd.f32 %v2420, %v2421
        %2600 = vadd.xlane.f32.xlu0 %v2599
        %v2601 = vpop.xlane.xlu0 %2600
        %v2602 = vadd.f32 %v2422, %v2423
        %2603 = vadd.xlane.f32.xlu0 %v2602
        %v2604 = vpop.xlane.xlu0 %2603
        %v2605 = vadd.f32 %v2424, %v2425
        %2606 = vadd.xlane.f32.xlu0 %v2605
        %v2607 = vpop.xlane.xlu0 %2606
        %v2608 = vadd.f32 %v2426, %v2427
        %2609 = vadd.xlane.f32.xlu0 %v2608
        %v2610 = vpop.xlane.xlu0 %2609
        %v2611 = vadd.f32 %v2428, %v2429
        %2612 = vadd.xlane.f32.xlu0 %v2611
        %v2613 = vpop.xlane.xlu0 %2612
        %v2614 = vadd.f32 %v2430, %v2431
        %2615 = vadd.xlane.f32.xlu0 %v2614
        %v2616 = vpop.xlane.xlu0 %2615
        %v2617 = vadd.f32 %v2432, %v2433
        %2618 = vadd.xlane.f32.xlu0 %v2617
        %v2619 = vpop.xlane.xlu0 %2618
        %v2620 = vadd.f32 %v2434, %v2435
        %2621 = vadd.xlane.f32.xlu0 %v2620
        %v2622 = vpop.xlane.xlu0 %2621
        %v2623 = vadd.f32 %v2436, %v2437
        %2624 = vadd.xlane.f32.xlu0 %v2623
        %v2625 = vpop.xlane.xlu0 %2624
        %v2626 = vadd.f32 %v2438, %v2439
        %2627 = vadd.xlane.f32.xlu0 %v2626
        %v2628 = vpop.xlane.xlu0 %2627
        %v2629 = vadd.f32 %v2440, %v2441
        %2630 = vadd.xlane.f32.xlu0 %v2629
        %v2631 = vpop.xlane.xlu0 %2630
        %v2632 = vadd.f32 %v2442, %v2443
        %2633 = vadd.xlane.f32.xlu0 %v2632
        %v2634 = vpop.xlane.xlu0 %2633
        %v2635 = vadd.f32 %v2444, %v2445
        %2636 = vadd.xlane.f32.xlu0 %v2635
        %v2637 = vpop.xlane.xlu0 %2636
        %v2638 = vld [vmem:[#allocation2] sm:$0x1]
        %v2640 = vlaneseq
        %v2641 = vshrl.u32 %v2640, 7
        %v2642 = vsub.s32 0, %v2641
        %v2643 = vrot.slane %v2638, %v2642
        %v2645 = vadd.f32 %v2448, %v2643
        %v2646 = vadd.f32 %v2451, %v2643
        %v2647 = vadd.f32 %v2454, %v2643
        %v2648 = vadd.f32 %v2457, %v2643
        %v2649 = vadd.f32 %v2460, %v2643
        %v2650 = vadd.f32 %v2463, %v2643
        %v2651 = vadd.f32 %v2466, %v2643
        %v2652 = vadd.f32 %v2469, %v2643
        %v2653 = vadd.f32 %v2472, %v2643
        %v2654 = vadd.f32 %v2475, %v2643
        %v2655 = vadd.f32 %v2478, %v2643
        %v2656 = vadd.f32 %v2481, %v2643
        %v2657 = vadd.f32 %v2484, %v2643
        %v2658 = vadd.f32 %v2487, %v2643
        %v2659 = vadd.f32 %v2490, %v2643
        %v2660 = vadd.f32 %v2493, %v2643
        %v2661 = vadd.f32 %v2496, %v2643
        %v2662 = vadd.f32 %v2499, %v2643
        %v2663 = vadd.f32 %v2502, %v2643
        %v2664 = vadd.f32 %v2505, %v2643
        %v2665 = vadd.f32 %v2508, %v2643
        %v2666 = vadd.f32 %v2511, %v2643
        %v2667 = vadd.f32 %v2514, %v2643
        %v2668 = vadd.f32 %v2517, %v2643
        %v2669 = vadd.f32 %v2520, %v2643
        %v2670 = vadd.f32 %v2523, %v2643
        %v2671 = vadd.f32 %v2526, %v2643
        %v2672 = vadd.f32 %v2529, %v2643
        %v2673 = vadd.f32 %v2532, %v2643
        %v2674 = vadd.f32 %v2535, %v2643
        %v2675 = vadd.f32 %v2538, %v2643
        %v2676 = vadd.f32 %v2541, %v2643
        %v2677 = vadd.f32 %v2544, %v2643
        %v2678 = vadd.f32 %v2547, %v2643
        %v2679 = vadd.f32 %v2550, %v2643
        %v2680 = vadd.f32 %v2553, %v2643
        %v2681 = vadd.f32 %v2556, %v2643
        %v2682 = vadd.f32 %v2559, %v2643
        %v2683 = vadd.f32 %v2562, %v2643
        %v2684 = vadd.f32 %v2565, %v2643
        %v2685 = vadd.f32 %v2568, %v2643
        %v2686 = vadd.f32 %v2571, %v2643
        %v2687 = vadd.f32 %v2574, %v2643
        %v2688 = vadd.f32 %v2577, %v2643
        %v2689 = vadd.f32 %v2580, %v2643
        %v2690 = vadd.f32 %v2583, %v2643
        %v2691 = vadd.f32 %v2586, %v2643
        %v2692 = vadd.f32 %v2589, %v2643
        %v2693 = vadd.f32 %v2592, %v2643
        %v2694 = vadd.f32 %v2595, %v2643
        %v2695 = vadd.f32 %v2598, %v2643
        %v2696 = vadd.f32 %v2601, %v2643
        %v2697 = vadd.f32 %v2604, %v2643
        %v2698 = vadd.f32 %v2607, %v2643
        %v2699 = vadd.f32 %v2610, %v2643
        %v2700 = vadd.f32 %v2613, %v2643
        %v2701 = vadd.f32 %v2616, %v2643
        %v2702 = vadd.f32 %v2619, %v2643
        %v2703 = vadd.f32 %v2622, %v2643
        %v2704 = vadd.f32 %v2625, %v2643
        %v2705 = vadd.f32 %v2628, %v2643
        %v2706 = vadd.f32 %v2631, %v2643
        %v2707 = vadd.f32 %v2634, %v2643
        %v2708 = vadd.f32 %v2637, %v2643
        %vm2709 = vcmask 7168
        %v2710 = vsel %vm2709, %v2645, -inf
        %v2711 = vrot.slane %v2710, 4
        %v2712 = vmax.f32 %v2710, %v2711
        %v2713 = vrot.slane %v2712, 2
        %v2714 = vmax.f32 %v2712, %v2713
        %v2715 = vrot.slane %v2714, 1
        %v2716 = vmax.f32 %v2714, %v2715
        %v2717 = vsel %vm2709, %v2646, -inf
        %v2718 = vrot.slane %v2717, 4
        %v2719 = vmax.f32 %v2717, %v2718
        %v2720 = vrot.slane %v2719, 2
        %v2721 = vmax.f32 %v2719, %v2720
        %v2722 = vrot.slane %v2721, 1
        %v2723 = vmax.f32 %v2721, %v2722
        %v2724 = vsel %vm2709, %v2647, -inf
        %v2725 = vrot.slane %v2724, 4
        %v2726 = vmax.f32 %v2724, %v2725
        %v2727 = vrot.slane %v2726, 2
        %v2728 = vmax.f32 %v2726, %v2727
        %v2729 = vrot.slane %v2728, 1
        %v2730 = vmax.f32 %v2728, %v2729
        %v2731 = vsel %vm2709, %v2648, -inf
        %v2732 = vrot.slane %v2731, 4
        %v2733 = vmax.f32 %v2731, %v2732
        %v2734 = vrot.slane %v2733, 2
        %v2735 = vmax.f32 %v2733, %v2734
        %v2736 = vrot.slane %v2735, 1
        %v2737 = vmax.f32 %v2735, %v2736
        %v2738 = vsel %vm2709, %v2649, -inf
        %v2739 = vrot.slane %v2738, 4
        %v2740 = vmax.f32 %v2738, %v2739
        %v2741 = vrot.slane %v2740, 2
        %v2742 = vmax.f32 %v2740, %v2741
        %v2743 = vrot.slane %v2742, 1
        %v2744 = vmax.f32 %v2742, %v2743
        %v2745 = vsel %vm2709, %v2650, -inf
        %v2746 = vrot.slane %v2745, 4
        %v2747 = vmax.f32 %v2745, %v2746
        %v2748 = vrot.slane %v2747, 2
        %v2749 = vmax.f32 %v2747, %v2748
        %v2750 = vrot.slane %v2749, 1
        %v2751 = vmax.f32 %v2749, %v2750
        %v2752 = vsel %vm2709, %v2651, -inf
        %v2753 = vrot.slane %v2752, 4
        %v2754 = vmax.f32 %v2752, %v2753
        %v2755 = vrot.slane %v2754, 2
        %v2756 = vmax.f32 %v2754, %v2755
        %v2757 = vrot.slane %v2756, 1
        %v2758 = vmax.f32 %v2756, %v2757
        %v2759 = vsel %vm2709, %v2652, -inf
        %v2760 = vrot.slane %v2759, 4
        %v2761 = vmax.f32 %v2759, %v2760
        %v2762 = vrot.slane %v2761, 2
        %v2763 = vmax.f32 %v2761, %v2762
        %v2764 = vrot.slane %v2763, 1
        %v2765 = vmax.f32 %v2763, %v2764
        %v2766 = vsel %vm2709, %v2653, -inf
        %v2767 = vrot.slane %v2766, 4
        %v2768 = vmax.f32 %v2766, %v2767
        %v2769 = vrot.slane %v2768, 2
        %v2770 = vmax.f32 %v2768, %v2769
        %v2771 = vrot.slane %v2770, 1
        %v2772 = vmax.f32 %v2770, %v2771
        %v2773 = vsel %vm2709, %v2654, -inf
        %v2774 = vrot.slane %v2773, 4
        %v2775 = vmax.f32 %v2773, %v2774
        %v2776 = vrot.slane %v2775, 2
        %v2777 = vmax.f32 %v2775, %v2776
        %v2778 = vrot.slane %v2777, 1
        %v2779 = vmax.f32 %v2777, %v2778
        %v2780 = vsel %vm2709, %v2655, -inf
        %v2781 = vrot.slane %v2780, 4
        %v2782 = vmax.f32 %v2780, %v2781
        %v2783 = vrot.slane %v2782, 2
        %v2784 = vmax.f32 %v2782, %v2783
        %v2785 = vrot.slane %v2784, 1
        %v2786 = vmax.f32 %v2784, %v2785
        %v2787 = vsel %vm2709, %v2656, -inf
        %v2788 = vrot.slane %v2787, 4
        %v2789 = vmax.f32 %v2787, %v2788
        %v2790 = vrot.slane %v2789, 2
        %v2791 = vmax.f32 %v2789, %v2790
        %v2792 = vrot.slane %v2791, 1
        %v2793 = vmax.f32 %v2791, %v2792
        %v2794 = vsel %vm2709, %v2657, -inf
        %v2795 = vrot.slane %v2794, 4
        %v2796 = vmax.f32 %v2794, %v2795
        %v2797 = vrot.slane %v2796, 2
        %v2798 = vmax.f32 %v2796, %v2797
        %v2799 = vrot.slane %v2798, 1
        %v2800 = vmax.f32 %v2798, %v2799
        %v2801 = vsel %vm2709, %v2658, -inf
        %v2802 = vrot.slane %v2801, 4
        %v2803 = vmax.f32 %v2801, %v2802
        %v2804 = vrot.slane %v2803, 2
        %v2805 = vmax.f32 %v2803, %v2804
        %v2806 = vrot.slane %v2805, 1
        %v2807 = vmax.f32 %v2805, %v2806
        %v2808 = vsel %vm2709, %v2659, -inf
        %v2809 = vrot.slane %v2808, 4
        %v2810 = vmax.f32 %v2808, %v2809
        %v2811 = vrot.slane %v2810, 2
        %v2812 = vmax.f32 %v2810, %v2811
        %v2813 = vrot.slane %v2812, 1
        %v2814 = vmax.f32 %v2812, %v2813
        %v2815 = vsel %vm2709, %v2660, -inf
        %v2816 = vrot.slane %v2815, 4
        %v2817 = vmax.f32 %v2815, %v2816
        %v2818 = vrot.slane %v2817, 2
        %v2819 = vmax.f32 %v2817, %v2818
        %v2820 = vrot.slane %v2819, 1
        %v2821 = vmax.f32 %v2819, %v2820
        %v2822 = vsel %vm2709, %v2661, -inf
        %v2823 = vrot.slane %v2822, 4
        %v2824 = vmax.f32 %v2822, %v2823
        %v2825 = vrot.slane %v2824, 2
        %v2826 = vmax.f32 %v2824, %v2825
        %v2827 = vrot.slane %v2826, 1
        %v2828 = vmax.f32 %v2826, %v2827
        %v2829 = vsel %vm2709, %v2662, -inf
        %v2830 = vrot.slane %v2829, 4
        %v2831 = vmax.f32 %v2829, %v2830
        %v2832 = vrot.slane %v2831, 2
        %v2833 = vmax.f32 %v2831, %v2832
        %v2834 = vrot.slane %v2833, 1
        %v2835 = vmax.f32 %v2833, %v2834
        %v2836 = vsel %vm2709, %v2663, -inf
        %v2837 = vrot.slane %v2836, 4
        %v2838 = vmax.f32 %v2836, %v2837
        %v2839 = vrot.slane %v2838, 2
        %v2840 = vmax.f32 %v2838, %v2839
        %v2841 = vrot.slane %v2840, 1
        %v2842 = vmax.f32 %v2840, %v2841
        %v2843 = vsel %vm2709, %v2664, -inf
        %v2844 = vrot.slane %v2843, 4
        %v2845 = vmax.f32 %v2843, %v2844
        %v2846 = vrot.slane %v2845, 2
        %v2847 = vmax.f32 %v2845, %v2846
        %v2848 = vrot.slane %v2847, 1
        %v2849 = vmax.f32 %v2847, %v2848
        %v2850 = vsel %vm2709, %v2665, -inf
        %v2851 = vrot.slane %v2850, 4
        %v2852 = vmax.f32 %v2850, %v2851
        %v2853 = vrot.slane %v2852, 2
        %v2854 = vmax.f32 %v2852, %v2853
        %v2855 = vrot.slane %v2854, 1
        %v2856 = vmax.f32 %v2854, %v2855
        %v2857 = vsel %vm2709, %v2666, -inf
        %v2858 = vrot.slane %v2857, 4
        %v2859 = vmax.f32 %v2857, %v2858
        %v2860 = vrot.slane %v2859, 2
        %v2861 = vmax.f32 %v2859, %v2860
        %v2862 = vrot.slane %v2861, 1
        %v2863 = vmax.f32 %v2861, %v2862
        %v2864 = vsel %vm2709, %v2667, -inf
        %v2865 = vrot.slane %v2864, 4
        %v2866 = vmax.f32 %v2864, %v2865
        %v2867 = vrot.slane %v2866, 2
        %v2868 = vmax.f32 %v2866, %v2867
        %v2869 = vrot.slane %v2868, 1
        %v2870 = vmax.f32 %v2868, %v2869
        %v2871 = vsel %vm2709, %v2668, -inf
        %v2872 = vrot.slane %v2871, 4
        %v2873 = vmax.f32 %v2871, %v2872
        %v2874 = vrot.slane %v2873, 2
        %v2875 = vmax.f32 %v2873, %v2874
        %v2876 = vrot.slane %v2875, 1
        %v2877 = vmax.f32 %v2875, %v2876
        %v2878 = vsel %vm2709, %v2669, -inf
        %v2879 = vrot.slane %v2878, 4
        %v2880 = vmax.f32 %v2878, %v2879
        %v2881 = vrot.slane %v2880, 2
        %v2882 = vmax.f32 %v2880, %v2881
        %v2883 = vrot.slane %v2882, 1
        %v2884 = vmax.f32 %v2882, %v2883
        %v2885 = vsel %vm2709, %v2670, -inf
        %v2886 = vrot.slane %v2885, 4
        %v2887 = vmax.f32 %v2885, %v2886
        %v2888 = vrot.slane %v2887, 2
        %v2889 = vmax.f32 %v2887, %v2888
        %v2890 = vrot.slane %v2889, 1
        %v2891 = vmax.f32 %v2889, %v2890
        %v2892 = vsel %vm2709, %v2671, -inf
        %v2893 = vrot.slane %v2892, 4
        %v2894 = vmax.f32 %v2892, %v2893
        %v2895 = vrot.slane %v2894, 2
        %v2896 = vmax.f32 %v2894, %v2895
        %v2897 = vrot.slane %v2896, 1
        %v2898 = vmax.f32 %v2896, %v2897
        %v2899 = vsel %vm2709, %v2672, -inf
        %v2900 = vrot.slane %v2899, 4
        %v2901 = vmax.f32 %v2899, %v2900
        %v2902 = vrot.slane %v2901, 2
        %v2903 = vmax.f32 %v2901, %v2902
        %v2904 = vrot.slane %v2903, 1
        %v2905 = vmax.f32 %v2903, %v2904
        %v2906 = vsel %vm2709, %v2673, -inf
        %v2907 = vrot.slane %v2906, 4
        %v2908 = vmax.f32 %v2906, %v2907
        %v2909 = vrot.slane %v2908, 2
        %v2910 = vmax.f32 %v2908, %v2909
        %v2911 = vrot.slane %v2910, 1
        %v2912 = vmax.f32 %v2910, %v2911
        %v2913 = vsel %vm2709, %v2674, -inf
        %v2914 = vrot.slane %v2913, 4
        %v2915 = vmax.f32 %v2913, %v2914
        %v2916 = vrot.slane %v2915, 2
        %v2917 = vmax.f32 %v2915, %v2916
        %v2918 = vrot.slane %v2917, 1
        %v2919 = vmax.f32 %v2917, %v2918
        %v2920 = vsel %vm2709, %v2675, -inf
        %v2921 = vrot.slane %v2920, 4
        %v2922 = vmax.f32 %v2920, %v2921
        %v2923 = vrot.slane %v2922, 2
        %v2924 = vmax.f32 %v2922, %v2923
        %v2925 = vrot.slane %v2924, 1
        %v2926 = vmax.f32 %v2924, %v2925
        %v2927 = vsel %vm2709, %v2676, -inf
        %v2928 = vrot.slane %v2927, 4
        %v2929 = vmax.f32 %v2927, %v2928
        %v2930 = vrot.slane %v2929, 2
        %v2931 = vmax.f32 %v2929, %v2930
        %v2932 = vrot.slane %v2931, 1
        %v2933 = vmax.f32 %v2931, %v2932
        %v2934 = vsel %vm2709, %v2677, -inf
        %v2935 = vrot.slane %v2934, 4
        %v2936 = vmax.f32 %v2934, %v2935
        %v2937 = vrot.slane %v2936, 2
        %v2938 = vmax.f32 %v2936, %v2937
        %v2939 = vrot.slane %v2938, 1
        %v2940 = vmax.f32 %v2938, %v2939
        %v2941 = vsel %vm2709, %v2678, -inf
        %v2942 = vrot.slane %v2941, 4
        %v2943 = vmax.f32 %v2941, %v2942
        %v2944 = vrot.slane %v2943, 2
        %v2945 = vmax.f32 %v2943, %v2944
        %v2946 = vrot.slane %v2945, 1
        %v2947 = vmax.f32 %v2945, %v2946
        %v2948 = vsel %vm2709, %v2679, -inf
        %v2949 = vrot.slane %v2948, 4
        %v2950 = vmax.f32 %v2948, %v2949
        %v2951 = vrot.slane %v2950, 2
        %v2952 = vmax.f32 %v2950, %v2951
        %v2953 = vrot.slane %v2952, 1
        %v2954 = vmax.f32 %v2952, %v2953
        %v2955 = vsel %vm2709, %v2680, -inf
        %v2956 = vrot.slane %v2955, 4
        %v2957 = vmax.f32 %v2955, %v2956
        %v2958 = vrot.slane %v2957, 2
        %v2959 = vmax.f32 %v2957, %v2958
        %v2960 = vrot.slane %v2959, 1
        %v2961 = vmax.f32 %v2959, %v2960
        %v2962 = vsel %vm2709, %v2681, -inf
        %v2963 = vrot.slane %v2962, 4
        %v2964 = vmax.f32 %v2962, %v2963
        %v2965 = vrot.slane %v2964, 2
        %v2966 = vmax.f32 %v2964, %v2965
        %v2967 = vrot.slane %v2966, 1
        %v2968 = vmax.f32 %v2966, %v2967
        %v2969 = vsel %vm2709, %v2682, -inf
        %v2970 = vrot.slane %v2969, 4
        %v2971 = vmax.f32 %v2969, %v2970
        %v2972 = vrot.slane %v2971, 2
        %v2973 = vmax.f32 %v2971, %v2972
        %v2974 = vrot.slane %v2973, 1
        %v2975 = vmax.f32 %v2973, %v2974
        %v2976 = vsel %vm2709, %v2683, -inf
        %v2977 = vrot.slane %v2976, 4
        %v2978 = vmax.f32 %v2976, %v2977
        %v2979 = vrot.slane %v2978, 2
        %v2980 = vmax.f32 %v2978, %v2979
        %v2981 = vrot.slane %v2980, 1
        %v2982 = vmax.f32 %v2980, %v2981
        %v2983 = vsel %vm2709, %v2684, -inf
        %v2984 = vrot.slane %v2983, 4
        %v2985 = vmax.f32 %v2983, %v2984
        %v2986 = vrot.slane %v2985, 2
        %v2987 = vmax.f32 %v2985, %v2986
        %v2988 = vrot.slane %v2987, 1
        %v2989 = vmax.f32 %v2987, %v2988
        %v2990 = vsel %vm2709, %v2685, -inf
        %v2991 = vrot.slane %v2990, 4
        %v2992 = vmax.f32 %v2990, %v2991
        %v2993 = vrot.slane %v2992, 2
        %v2994 = vmax.f32 %v2992, %v2993
        %v2995 = vrot.slane %v2994, 1
        %v2996 = vmax.f32 %v2994, %v2995
        %v2997 = vsel %vm2709, %v2686, -inf
        %v2998 = vrot.slane %v2997, 4
        %v2999 = vmax.f32 %v2997, %v2998
        %v3000 = vrot.slane %v2999, 2
        %v3001 = vmax.f32 %v2999, %v3000
        %v3002 = vrot.slane %v3001, 1
        %v3003 = vmax.f32 %v3001, %v3002
        %v3004 = vsel %vm2709, %v2687, -inf
        %v3005 = vrot.slane %v3004, 4
        %v3006 = vmax.f32 %v3004, %v3005
        %v3007 = vrot.slane %v3006, 2
        %v3008 = vmax.f32 %v3006, %v3007
        %v3009 = vrot.slane %v3008, 1
        %v3010 = vmax.f32 %v3008, %v3009
        %v3011 = vsel %vm2709, %v2688, -inf
        %v3012 = vrot.slane %v3011, 4
        %v3013 = vmax.f32 %v3011, %v3012
        %v3014 = vrot.slane %v3013, 2
        %v3015 = vmax.f32 %v3013, %v3014
        %v3016 = vrot.slane %v3015, 1
        %v3017 = vmax.f32 %v3015, %v3016
        %v3018 = vsel %vm2709, %v2689, -inf
        %v3019 = vrot.slane %v3018, 4
        %v3020 = vmax.f32 %v3018, %v3019
        %v3021 = vrot.slane %v3020, 2
        %v3022 = vmax.f32 %v3020, %v3021
        %v3023 = vrot.slane %v3022, 1
        %v3024 = vmax.f32 %v3022, %v3023
        %v3025 = vsel %vm2709, %v2690, -inf
        %v3026 = vrot.slane %v3025, 4
        %v3027 = vmax.f32 %v3025, %v3026
        %v3028 = vrot.slane %v3027, 2
        %v3029 = vmax.f32 %v3027, %v3028
        %v3030 = vrot.slane %v3029, 1
        %v3031 = vmax.f32 %v3029, %v3030
        %v3032 = vsel %vm2709, %v2691, -inf
        %v3033 = vrot.slane %v3032, 4
        %v3034 = vmax.f32 %v3032, %v3033
        %v3035 = vrot.slane %v3034, 2
        %v3036 = vmax.f32 %v3034, %v3035
        %v3037 = vrot.slane %v3036, 1
        %v3038 = vmax.f32 %v3036, %v3037
        %v3039 = vsel %vm2709, %v2692, -inf
        %v3040 = vrot.slane %v3039, 4
        %v3041 = vmax.f32 %v3039, %v3040
        %v3042 = vrot.slane %v3041, 2
        %v3043 = vmax.f32 %v3041, %v3042
        %v3044 = vrot.slane %v3043, 1
        %v3045 = vmax.f32 %v3043, %v3044
        %v3046 = vsel %vm2709, %v2693, -inf
        %v3047 = vrot.slane %v3046, 4
        %v3048 = vmax.f32 %v3046, %v3047
        %v3049 = vrot.slane %v3048, 2
        %v3050 = vmax.f32 %v3048, %v3049
        %v3051 = vrot.slane %v3050, 1
        %v3052 = vmax.f32 %v3050, %v3051
        %v3053 = vsel %vm2709, %v2694, -inf
        %v3054 = vrot.slane %v3053, 4
        %v3055 = vmax.f32 %v3053, %v3054
        %v3056 = vrot.slane %v3055, 2
        %v3057 = vmax.f32 %v3055, %v3056
        %v3058 = vrot.slane %v3057, 1
        %v3059 = vmax.f32 %v3057, %v3058
        %v3060 = vsel %vm2709, %v2695, -inf
        %v3061 = vrot.slane %v3060, 4
        %v3062 = vmax.f32 %v3060, %v3061
        %v3063 = vrot.slane %v3062, 2
        %v3064 = vmax.f32 %v3062, %v3063
        %v3065 = vrot.slane %v3064, 1
        %v3066 = vmax.f32 %v3064, %v3065
        %v3067 = vsel %vm2709, %v2696, -inf
        %v3068 = vrot.slane %v3067, 4
        %v3069 = vmax.f32 %v3067, %v3068
        %v3070 = vrot.slane %v3069, 2
        %v3071 = vmax.f32 %v3069, %v3070
        %v3072 = vrot.slane %v3071, 1
        %v3073 = vmax.f32 %v3071, %v3072
        %v3074 = vsel %vm2709, %v2697, -inf
        %v3075 = vrot.slane %v3074, 4
        %v3076 = vmax.f32 %v3074, %v3075
        %v3077 = vrot.slane %v3076, 2
        %v3078 = vmax.f32 %v3076, %v3077
        %v3079 = vrot.slane %v3078, 1
        %v3080 = vmax.f32 %v3078, %v3079
        %v3081 = vsel %vm2709, %v2698, -inf
        %v3082 = vrot.slane %v3081, 4
        %v3083 = vmax.f32 %v3081, %v3082
        %v3084 = vrot.slane %v3083, 2
        %v3085 = vmax.f32 %v3083, %v3084
        %v3086 = vrot.slane %v3085, 1
        %v3087 = vmax.f32 %v3085, %v3086
        %v3088 = vsel %vm2709, %v2699, -inf
        %v3089 = vrot.slane %v3088, 4
        %v3090 = vmax.f32 %v3088, %v3089
        %v3091 = vrot.slane %v3090, 2
        %v3092 = vmax.f32 %v3090, %v3091
        %v3093 = vrot.slane %v3092, 1
        %v3094 = vmax.f32 %v3092, %v3093
        %v3095 = vsel %vm2709, %v2700, -inf
        %v3096 = vrot.slane %v3095, 4
        %v3097 = vmax.f32 %v3095, %v3096
        %v3098 = vrot.slane %v3097, 2
        %v3099 = vmax.f32 %v3097, %v3098
        %v3100 = vrot.slane %v3099, 1
        %v3101 = vmax.f32 %v3099, %v3100
        %v3102 = vsel %vm2709, %v2701, -inf
        %v3103 = vrot.slane %v3102, 4
        %v3104 = vmax.f32 %v3102, %v3103
        %v3105 = vrot.slane %v3104, 2
        %v3106 = vmax.f32 %v3104, %v3105
        %v3107 = vrot.slane %v3106, 1
        %v3108 = vmax.f32 %v3106, %v3107
        %v3109 = vsel %vm2709, %v2702, -inf
        %v3110 = vrot.slane %v3109, 4
        %v3111 = vmax.f32 %v3109, %v3110
        %v3112 = vrot.slane %v3111, 2
        %v3113 = vmax.f32 %v3111, %v3112
        %v3114 = vrot.slane %v3113, 1
        %v3115 = vmax.f32 %v3113, %v3114
        %v3116 = vsel %vm2709, %v2703, -inf
        %v3117 = vrot.slane %v3116, 4
        %v3118 = vmax.f32 %v3116, %v3117
        %v3119 = vrot.slane %v3118, 2
        %v3120 = vmax.f32 %v3118, %v3119
        %v3121 = vrot.slane %v3120, 1
        %v3122 = vmax.f32 %v3120, %v3121
        %v3123 = vsel %vm2709, %v2704, -inf
        %v3124 = vrot.slane %v3123, 4
        %v3125 = vmax.f32 %v3123, %v3124
        %v3126 = vrot.slane %v3125, 2
        %v3127 = vmax.f32 %v3125, %v3126
        %v3128 = vrot.slane %v3127, 1
        %v3129 = vmax.f32 %v3127, %v3128
        %v3130 = vsel %vm2709, %v2705, -inf
        %v3131 = vrot.slane %v3130, 4
        %v3132 = vmax.f32 %v3130, %v3131
        %v3133 = vrot.slane %v3132, 2
        %v3134 = vmax.f32 %v3132, %v3133
        %v3135 = vrot.slane %v3134, 1
        %v3136 = vmax.f32 %v3134, %v3135
        %v3137 = vsel %vm2709, %v2706, -inf
        %v3138 = vrot.slane %v3137, 4
        %v3139 = vmax.f32 %v3137, %v3138
        %v3140 = vrot.slane %v3139, 2
        %v3141 = vmax.f32 %v3139, %v3140
        %v3142 = vrot.slane %v3141, 1
        %v3143 = vmax.f32 %v3141, %v3142
        %v3144 = vsel %vm2709, %v2707, -inf
        %v3145 = vrot.slane %v3144, 4
        %v3146 = vmax.f32 %v3144, %v3145
        %v3147 = vrot.slane %v3146, 2
        %v3148 = vmax.f32 %v3146, %v3147
        %v3149 = vrot.slane %v3148, 1
        %v3150 = vmax.f32 %v3148, %v3149
        %v3151 = vsel %vm2709, %v2708, -inf
        %v3152 = vrot.slane %v3151, 4
        %v3153 = vmax.f32 %v3151, %v3152
        %v3154 = vrot.slane %v3153, 2
        %v3155 = vmax.f32 %v3153, %v3154
        %v3156 = vrot.slane %v3155, 1
        %v3157 = vmax.f32 %v3155, %v3156
        %v3158 = vsub.f32 %v2645, %v2716
        %v3159 = vsub.f32 %v2646, %v2723
        %v3160 = vsub.f32 %v2647, %v2730
        %v3161 = vsub.f32 %v2648, %v2737
        %v3162 = vsub.f32 %v2649, %v2744
        %v3163 = vsub.f32 %v2650, %v2751
        %v3164 = vsub.f32 %v2651, %v2758
        %v3165 = vsub.f32 %v2652, %v2765
        %v3166 = vsub.f32 %v2653, %v2772
        %v3167 = vsub.f32 %v2654, %v2779
        %v3168 = vsub.f32 %v2655, %v2786
        %v3169 = vsub.f32 %v2656, %v2793
        %v3170 = vsub.f32 %v2657, %v2800
        %v3171 = vsub.f32 %v2658, %v2807
        %v3172 = vsub.f32 %v2659, %v2814
        %v3173 = vsub.f32 %v2660, %v2821
        %v3174 = vsub.f32 %v2661, %v2828
        %v3175 = vsub.f32 %v2662, %v2835
        %v3176 = vsub.f32 %v2663, %v2842
        %v3177 = vsub.f32 %v2664, %v2849
        %v3178 = vsub.f32 %v2665, %v2856
        %v3179 = vsub.f32 %v2666, %v2863
        %v3180 = vsub.f32 %v2667, %v2870
        %v3181 = vsub.f32 %v2668, %v2877
        %v3182 = vsub.f32 %v2669, %v2884
        %v3183 = vsub.f32 %v2670, %v2891
        %v3184 = vsub.f32 %v2671, %v2898
        %v3185 = vsub.f32 %v2672, %v2905
        %v3186 = vsub.f32 %v2673, %v2912
        %v3187 = vsub.f32 %v2674, %v2919
        %v3188 = vsub.f32 %v2675, %v2926
        %v3189 = vsub.f32 %v2676, %v2933
        %v3190 = vsub.f32 %v2677, %v2940
        %v3191 = vsub.f32 %v2678, %v2947
        %v3192 = vsub.f32 %v2679, %v2954
        %v3193 = vsub.f32 %v2680, %v2961
        %v3194 = vsub.f32 %v2681, %v2968
        %v3195 = vsub.f32 %v2682, %v2975
        %v3196 = vsub.f32 %v2683, %v2982
        %v3197 = vsub.f32 %v2684, %v2989
        %v3198 = vsub.f32 %v2685, %v2996
        %v3199 = vsub.f32 %v2686, %v3003
        %v3200 = vsub.f32 %v2687, %v3010
        %v3201 = vsub.f32 %v2688, %v3017
        %v3202 = vsub.f32 %v2689, %v3024
        %v3203 = vsub.f32 %v2690, %v3031
        %v3204 = vsub.f32 %v2691, %v3038
        %v3205 = vsub.f32 %v2692, %v3045
        %v3206 = vsub.f32 %v2693, %v3052
        %v3207 = vsub.f32 %v2694, %v3059
        %v3208 = vsub.f32 %v2695, %v3066
        %v3209 = vsub.f32 %v2696, %v3073
        %v3210 = vsub.f32 %v2697, %v3080
        %v3211 = vsub.f32 %v2698, %v3087
        %v3212 = vsub.f32 %v2699, %v3094
        %v3213 = vsub.f32 %v2700, %v3101
        %v3214 = vsub.f32 %v2701, %v3108
        %v3215 = vsub.f32 %v2702, %v3115
        %v3216 = vsub.f32 %v2703, %v3122
        %v3217 = vsub.f32 %v2704, %v3129
        %v3218 = vsub.f32 %v2705, %v3136
        %v3219 = vsub.f32 %v2706, %v3143
        %v3220 = vsub.f32 %v2707, %v3150
        %v3221 = vsub.f32 %v2708, %v3157
        %v3222 = vmul.f32 %v3158, 1.442695
        %v3223 = vpow.pop %v3222
        %v3224 = vmul.f32 %v3159, 1.442695
        %v3225 = vpow.pop %v3224
        %v3226 = vmul.f32 %v3160, 1.442695
        %v3227 = vpow.pop %v3226
        %v3228 = vmul.f32 %v3161, 1.442695
        %v3229 = vpow.pop %v3228
        %v3230 = vmul.f32 %v3162, 1.442695
        %v3231 = vpow.pop %v3230
        %v3232 = vmul.f32 %v3163, 1.442695
        %v3233 = vpow.pop %v3232
        %v3234 = vmul.f32 %v3164, 1.442695
        %v3235 = vpow.pop %v3234
        %v3236 = vmul.f32 %v3165, 1.442695
        %v3237 = vpow.pop %v3236
        %v3238 = vmul.f32 %v3166, 1.442695
        %v3239 = vpow.pop %v3238
        %v3240 = vmul.f32 %v3167, 1.442695
        %v3241 = vpow.pop %v3240
        %v3242 = vmul.f32 %v3168, 1.442695
        %v3243 = vpow.pop %v3242
        %v3244 = vmul.f32 %v3169, 1.442695
        %v3245 = vpow.pop %v3244
        %v3246 = vmul.f32 %v3170, 1.442695
        %v3247 = vpow.pop %v3246
        %v3248 = vmul.f32 %v3171, 1.442695
        %v3249 = vpow.pop %v3248
        %v3250 = vmul.f32 %v3172, 1.442695
        %v3251 = vpow.pop %v3250
        %v3252 = vmul.f32 %v3173, 1.442695
        %v3253 = vpow.pop %v3252
        %v3254 = vmul.f32 %v3174, 1.442695
        %v3255 = vpow.pop %v3254
        %v3256 = vmul.f32 %v3175, 1.442695
        %v3257 = vpow.pop %v3256
        %v3258 = vmul.f32 %v3176, 1.442695
        %v3259 = vpow.pop %v3258
        %v3260 = vmul.f32 %v3177, 1.442695
        %v3261 = vpow.pop %v3260
        %v3262 = vmul.f32 %v3178, 1.442695
        %v3263 = vpow.pop %v3262
        %v3264 = vmul.f32 %v3179, 1.442695
        %v3265 = vpow.pop %v3264
        %v3266 = vmul.f32 %v3180, 1.442695
        %v3267 = vpow.pop %v3266
        %v3268 = vmul.f32 %v3181, 1.442695
        %v3269 = vpow.pop %v3268
        %v3270 = vmul.f32 %v3182, 1.442695
        %v3271 = vpow.pop %v3270
        %v3272 = vmul.f32 %v3183, 1.442695
        %v3273 = vpow.pop %v3272
        %v3274 = vmul.f32 %v3184, 1.442695
        %v3275 = vpow.pop %v3274
        %v3276 = vmul.f32 %v3185, 1.442695
        %v3277 = vpow.pop %v3276
        %v3278 = vmul.f32 %v3186, 1.442695
        %v3279 = vpow.pop %v3278
        %v3280 = vmul.f32 %v3187, 1.442695
        %v3281 = vpow.pop %v3280
        %v3282 = vmul.f32 %v3188, 1.442695
        %v3283 = vpow.pop %v3282
        %v3284 = vmul.f32 %v3189, 1.442695
        %v3285 = vpow.pop %v3284
        %v3286 = vmul.f32 %v3190, 1.442695
        %v3287 = vpow.pop %v3286
        %v3288 = vmul.f32 %v3191, 1.442695
        %v3289 = vpow.pop %v3288
        %v3290 = vmul.f32 %v3192, 1.442695
        %v3291 = vpow.pop %v3290
        %v3292 = vmul.f32 %v3193, 1.442695
        %v3293 = vpow.pop %v3292
        %v3294 = vmul.f32 %v3194, 1.442695
        %v3295 = vpow.pop %v3294
        %v3296 = vmul.f32 %v3195, 1.442695
        %v3297 = vpow.pop %v3296
        %v3298 = vmul.f32 %v3196, 1.442695
        %v3299 = vpow.pop %v3298
        %v3300 = vmul.f32 %v3197, 1.442695
        %v3301 = vpow.pop %v3300
        %v3302 = vmul.f32 %v3198, 1.442695
        %v3303 = vpow.pop %v3302
        %v3304 = vmul.f32 %v3199, 1.442695
        %v3305 = vpow.pop %v3304
        %v3306 = vmul.f32 %v3200, 1.442695
        %v3307 = vpow.pop %v3306
        %v3308 = vmul.f32 %v3201, 1.442695
        %v3309 = vpow.pop %v3308
        %v3310 = vmul.f32 %v3202, 1.442695
        %v3311 = vpow.pop %v3310
        %v3312 = vmul.f32 %v3203, 1.442695
        %v3313 = vpow.pop %v3312
        %v3314 = vmul.f32 %v3204, 1.442695
        %v3315 = vpow.pop %v3314
        %v3316 = vmul.f32 %v3205, 1.442695
        %v3317 = vpow.pop %v3316
        %v3318 = vmul.f32 %v3206, 1.442695
        %v3319 = vpow.pop %v3318
        %v3320 = vmul.f32 %v3207, 1.442695
        %v3321 = vpow.pop %v3320
        %v3322 = vmul.f32 %v3208, 1.442695
        %v3323 = vpow.pop %v3322
        %v3324 = vmul.f32 %v3209, 1.442695
        %v3325 = vpow.pop %v3324
        %v3326 = vmul.f32 %v3210, 1.442695
        %v3327 = vpow.pop %v3326
        %v3328 = vmul.f32 %v3211, 1.442695
        %v3329 = vpow.pop %v3328
        %v3330 = vmul.f32 %v3212, 1.442695
        %v3331 = vpow.pop %v3330
        %v3332 = vmul.f32 %v3213, 1.442695
        %v3333 = vpow.pop %v3332
        %v3334 = vmul.f32 %v3214, 1.442695
        %v3335 = vpow.pop %v3334
        %v3336 = vmul.f32 %v3215, 1.442695
        %v3337 = vpow.pop %v3336
        %v3338 = vmul.f32 %v3216, 1.442695
        %v3339 = vpow.pop %v3338
        %v3340 = vmul.f32 %v3217, 1.442695
        %v3341 = vpow.pop %v3340
        %v3342 = vmul.f32 %v3218, 1.442695
        %v3343 = vpow.pop %v3342
        %v3344 = vmul.f32 %v3219, 1.442695
        %v3345 = vpow.pop %v3344
        %v3346 = vmul.f32 %v3220, 1.442695
        %v3347 = vpow.pop %v3346
        %v3348 = vmul.f32 %v3221, 1.442695
        %v3349 = vpow.pop %v3348
        %v3350 = vsel %vm2709, %v3223, 0.0
        %v3351 = vrot.slane %v3350, 4
        %v3352 = vadd.f32 %v3350, %v3351
        %v3353 = vrot.slane %v3352, 2
        %v3354 = vadd.f32 %v3352, %v3353
        %v3355 = vrot.slane %v3354, 1
        %v3356 = vadd.f32 %v3354, %v3355
        %v3357 = vsel %vm2709, %v3225, 0.0
        %v3358 = vrot.slane %v3357, 4
        %v3359 = vadd.f32 %v3357, %v3358
        %v3360 = vrot.slane %v3359, 2
        %v3361 = vadd.f32 %v3359, %v3360
        %v3362 = vrot.slane %v3361, 1
        %v3363 = vadd.f32 %v3361, %v3362
        %v3364 = vsel %vm2709, %v3227, 0.0
        %v3365 = vrot.slane %v3364, 4
        %v3366 = vadd.f32 %v3364, %v3365
        %v3367 = vrot.slane %v3366, 2
        %v3368 = vadd.f32 %v3366, %v3367
        %v3369 = vrot.slane %v3368, 1
        %v3370 = vadd.f32 %v3368, %v3369
        %v3371 = vsel %vm2709, %v3229, 0.0
        %v3372 = vrot.slane %v3371, 4
        %v3373 = vadd.f32 %v3371, %v3372
        %v3374 = vrot.slane %v3373, 2
        %v3375 = vadd.f32 %v3373, %v3374
        %v3376 = vrot.slane %v3375, 1
        %v3377 = vadd.f32 %v3375, %v3376
        %v3378 = vsel %vm2709, %v3231, 0.0
        %v3379 = vrot.slane %v3378, 4
        %v3380 = vadd.f32 %v3378, %v3379
        %v3381 = vrot.slane %v3380, 2
        %v3382 = vadd.f32 %v3380, %v3381
        %v3383 = vrot.slane %v3382, 1
        %v3384 = vadd.f32 %v3382, %v3383
        %v3385 = vsel %vm2709, %v3233, 0.0
        %v3386 = vrot.slane %v3385, 4
        %v3387 = vadd.f32 %v3385, %v3386
        %v3388 = vrot.slane %v3387, 2
        %v3389 = vadd.f32 %v3387, %v3388
        %v3390 = vrot.slane %v3389, 1
        %v3391 = vadd.f32 %v3389, %v3390
        %v3392 = vsel %vm2709, %v3235, 0.0
        %v3393 = vrot.slane %v3392, 4
        %v3394 = vadd.f32 %v3392, %v3393
        %v3395 = vrot.slane %v3394, 2
        %v3396 = vadd.f32 %v3394, %v3395
        %v3397 = vrot.slane %v3396, 1
        %v3398 = vadd.f32 %v3396, %v3397
        %v3399 = vsel %vm2709, %v3237, 0.0
        %v3400 = vrot.slane %v3399, 4
        %v3401 = vadd.f32 %v3399, %v3400
        %v3402 = vrot.slane %v3401, 2
        %v3403 = vadd.f32 %v3401, %v3402
        %v3404 = vrot.slane %v3403, 1
        %v3405 = vadd.f32 %v3403, %v3404
        %v3406 = vsel %vm2709, %v3239, 0.0
        %v3407 = vrot.slane %v3406, 4
        %v3408 = vadd.f32 %v3406, %v3407
        %v3409 = vrot.slane %v3408, 2
        %v3410 = vadd.f32 %v3408, %v3409
        %v3411 = vrot.slane %v3410, 1
        %v3412 = vadd.f32 %v3410, %v3411
        %v3413 = vsel %vm2709, %v3241, 0.0
        %v3414 = vrot.slane %v3413, 4
        %v3415 = vadd.f32 %v3413, %v3414
        %v3416 = vrot.slane %v3415, 2
        %v3417 = vadd.f32 %v3415, %v3416
        %v3418 = vrot.slane %v3417, 1
        %v3419 = vadd.f32 %v3417, %v3418
        %v3420 = vsel %vm2709, %v3243, 0.0
        %v3421 = vrot.slane %v3420, 4
        %v3422 = vadd.f32 %v3420, %v3421
        %v3423 = vrot.slane %v3422, 2
        %v3424 = vadd.f32 %v3422, %v3423
        %v3425 = vrot.slane %v3424, 1
        %v3426 = vadd.f32 %v3424, %v3425
        %v3427 = vsel %vm2709, %v3245, 0.0
        %v3428 = vrot.slane %v3427, 4
        %v3429 = vadd.f32 %v3427, %v3428
        %v3430 = vrot.slane %v3429, 2
        %v3431 = vadd.f32 %v3429, %v3430
        %v3432 = vrot.slane %v3431, 1
        %v3433 = vadd.f32 %v3431, %v3432
        %v3434 = vsel %vm2709, %v3247, 0.0
        %v3435 = vrot.slane %v3434, 4
        %v3436 = vadd.f32 %v3434, %v3435
        %v3437 = vrot.slane %v3436, 2
        %v3438 = vadd.f32 %v3436, %v3437
        %v3439 = vrot.slane %v3438, 1
        %v3440 = vadd.f32 %v3438, %v3439
        %v3441 = vsel %vm2709, %v3249, 0.0
        %v3442 = vrot.slane %v3441, 4
        %v3443 = vadd.f32 %v3441, %v3442
        %v3444 = vrot.slane %v3443, 2
        %v3445 = vadd.f32 %v3443, %v3444
        %v3446 = vrot.slane %v3445, 1
        %v3447 = vadd.f32 %v3445, %v3446
        %v3448 = vsel %vm2709, %v3251, 0.0
        %v3449 = vrot.slane %v3448, 4
        %v3450 = vadd.f32 %v3448, %v3449
        %v3451 = vrot.slane %v3450, 2
        %v3452 = vadd.f32 %v3450, %v3451
        %v3453 = vrot.slane %v3452, 1
        %v3454 = vadd.f32 %v3452, %v3453
        %v3455 = vsel %vm2709, %v3253, 0.0
        %v3456 = vrot.slane %v3455, 4
        %v3457 = vadd.f32 %v3455, %v3456
        %v3458 = vrot.slane %v3457, 2
        %v3459 = vadd.f32 %v3457, %v3458
        %v3460 = vrot.slane %v3459, 1
        %v3461 = vadd.f32 %v3459, %v3460
        %v3462 = vsel %vm2709, %v3255, 0.0
        %v3463 = vrot.slane %v3462, 4
        %v3464 = vadd.f32 %v3462, %v3463
        %v3465 = vrot.slane %v3464, 2
        %v3466 = vadd.f32 %v3464, %v3465
        %v3467 = vrot.slane %v3466, 1
        %v3468 = vadd.f32 %v3466, %v3467
        %v3469 = vsel %vm2709, %v3257, 0.0
        %v3470 = vrot.slane %v3469, 4
        %v3471 = vadd.f32 %v3469, %v3470
        %v3472 = vrot.slane %v3471, 2
        %v3473 = vadd.f32 %v3471, %v3472
        %v3474 = vrot.slane %v3473, 1
        %v3475 = vadd.f32 %v3473, %v3474
        %v3476 = vsel %vm2709, %v3259, 0.0
        %v3477 = vrot.slane %v3476, 4
        %v3478 = vadd.f32 %v3476, %v3477
        %v3479 = vrot.slane %v3478, 2
        %v3480 = vadd.f32 %v3478, %v3479
        %v3481 = vrot.slane %v3480, 1
        %v3482 = vadd.f32 %v3480, %v3481
        %v3483 = vsel %vm2709, %v3261, 0.0
        %v3484 = vrot.slane %v3483, 4
        %v3485 = vadd.f32 %v3483, %v3484
        %v3486 = vrot.slane %v3485, 2
        %v3487 = vadd.f32 %v3485, %v3486
        %v3488 = vrot.slane %v3487, 1
        %v3489 = vadd.f32 %v3487, %v3488
        %v3490 = vsel %vm2709, %v3263, 0.0
        %v3491 = vrot.slane %v3490, 4
        %v3492 = vadd.f32 %v3490, %v3491
        %v3493 = vrot.slane %v3492, 2
        %v3494 = vadd.f32 %v3492, %v3493
        %v3495 = vrot.slane %v3494, 1
        %v3496 = vadd.f32 %v3494, %v3495
        %v3497 = vsel %vm2709, %v3265, 0.0
        %v3498 = vrot.slane %v3497, 4
        %v3499 = vadd.f32 %v3497, %v3498
        %v3500 = vrot.slane %v3499, 2
        %v3501 = vadd.f32 %v3499, %v3500
        %v3502 = vrot.slane %v3501, 1
        %v3503 = vadd.f32 %v3501, %v3502
        %v3504 = vsel %vm2709, %v3267, 0.0
        %v3505 = vrot.slane %v3504, 4
        %v3506 = vadd.f32 %v3504, %v3505
        %v3507 = vrot.slane %v3506, 2
        %v3508 = vadd.f32 %v3506, %v3507
        %v3509 = vrot.slane %v3508, 1
        %v3510 = vadd.f32 %v3508, %v3509
        %v3511 = vsel %vm2709, %v3269, 0.0
        %v3512 = vrot.slane %v3511, 4
        %v3513 = vadd.f32 %v3511, %v3512
        %v3514 = vrot.slane %v3513, 2
        %v3515 = vadd.f32 %v3513, %v3514
        %v3516 = vrot.slane %v3515, 1
        %v3517 = vadd.f32 %v3515, %v3516
        %v3518 = vsel %vm2709, %v3271, 0.0
        %v3519 = vrot.slane %v3518, 4
        %v3520 = vadd.f32 %v3518, %v3519
        %v3521 = vrot.slane %v3520, 2
        %v3522 = vadd.f32 %v3520, %v3521
        %v3523 = vrot.slane %v3522, 1
        %v3524 = vadd.f32 %v3522, %v3523
        %v3525 = vsel %vm2709, %v3273, 0.0
        %v3526 = vrot.slane %v3525, 4
        %v3527 = vadd.f32 %v3525, %v3526
        %v3528 = vrot.slane %v3527, 2
        %v3529 = vadd.f32 %v3527, %v3528
        %v3530 = vrot.slane %v3529, 1
        %v3531 = vadd.f32 %v3529, %v3530
        %v3532 = vsel %vm2709, %v3275, 0.0
        %v3533 = vrot.slane %v3532, 4
        %v3534 = vadd.f32 %v3532, %v3533
        %v3535 = vrot.slane %v3534, 2
        %v3536 = vadd.f32 %v3534, %v3535
        %v3537 = vrot.slane %v3536, 1
        %v3538 = vadd.f32 %v3536, %v3537
        %v3539 = vsel %vm2709, %v3277, 0.0
        %v3540 = vrot.slane %v3539, 4
        %v3541 = vadd.f32 %v3539, %v3540
        %v3542 = vrot.slane %v3541, 2
        %v3543 = vadd.f32 %v3541, %v3542
        %v3544 = vrot.slane %v3543, 1
        %v3545 = vadd.f32 %v3543, %v3544
        %v3546 = vsel %vm2709, %v3279, 0.0
        %v3547 = vrot.slane %v3546, 4
        %v3548 = vadd.f32 %v3546, %v3547
        %v3549 = vrot.slane %v3548, 2
        %v3550 = vadd.f32 %v3548, %v3549
        %v3551 = vrot.slane %v3550, 1
        %v3552 = vadd.f32 %v3550, %v3551
        %v3553 = vsel %vm2709, %v3281, 0.0
        %v3554 = vrot.slane %v3553, 4
        %v3555 = vadd.f32 %v3553, %v3554
        %v3556 = vrot.slane %v3555, 2
        %v3557 = vadd.f32 %v3555, %v3556
        %v3558 = vrot.slane %v3557, 1
        %v3559 = vadd.f32 %v3557, %v3558
        %v3560 = vsel %vm2709, %v3283, 0.0
        %v3561 = vrot.slane %v3560, 4
        %v3562 = vadd.f32 %v3560, %v3561
        %v3563 = vrot.slane %v3562, 2
        %v3564 = vadd.f32 %v3562, %v3563
        %v3565 = vrot.slane %v3564, 1
        %v3566 = vadd.f32 %v3564, %v3565
        %v3567 = vsel %vm2709, %v3285, 0.0
        %v3568 = vrot.slane %v3567, 4
        %v3569 = vadd.f32 %v3567, %v3568
        %v3570 = vrot.slane %v3569, 2
        %v3571 = vadd.f32 %v3569, %v3570
        %v3572 = vrot.slane %v3571, 1
        %v3573 = vadd.f32 %v3571, %v3572
        %v3574 = vsel %vm2709, %v3287, 0.0
        %v3575 = vrot.slane %v3574, 4
        %v3576 = vadd.f32 %v3574, %v3575
        %v3577 = vrot.slane %v3576, 2
        %v3578 = vadd.f32 %v3576, %v3577
        %v3579 = vrot.slane %v3578, 1
        %v3580 = vadd.f32 %v3578, %v3579
        %v3581 = vsel %vm2709, %v3289, 0.0
        %v3582 = vrot.slane %v3581, 4
        %v3583 = vadd.f32 %v3581, %v3582
        %v3584 = vrot.slane %v3583, 2
        %v3585 = vadd.f32 %v3583, %v3584
        %v3586 = vrot.slane %v3585, 1
        %v3587 = vadd.f32 %v3585, %v3586
        %v3588 = vsel %vm2709, %v3291, 0.0
        %v3589 = vrot.slane %v3588, 4
        %v3590 = vadd.f32 %v3588, %v3589
        %v3591 = vrot.slane %v3590, 2
        %v3592 = vadd.f32 %v3590, %v3591
        %v3593 = vrot.slane %v3592, 1
        %v3594 = vadd.f32 %v3592, %v3593
        %v3595 = vsel %vm2709, %v3293, 0.0
        %v3596 = vrot.slane %v3595, 4
        %v3597 = vadd.f32 %v3595, %v3596
        %v3598 = vrot.slane %v3597, 2
        %v3599 = vadd.f32 %v3597, %v3598
        %v3600 = vrot.slane %v3599, 1
        %v3601 = vadd.f32 %v3599, %v3600
        %v3602 = vsel %vm2709, %v3295, 0.0
        %v3603 = vrot.slane %v3602, 4
        %v3604 = vadd.f32 %v3602, %v3603
        %v3605 = vrot.slane %v3604, 2
        %v3606 = vadd.f32 %v3604, %v3605
        %v3607 = vrot.slane %v3606, 1
        %v3608 = vadd.f32 %v3606, %v3607
        %v3609 = vsel %vm2709, %v3297, 0.0
        %v3610 = vrot.slane %v3609, 4
        %v3611 = vadd.f32 %v3609, %v3610
        %v3612 = vrot.slane %v3611, 2
        %v3613 = vadd.f32 %v3611, %v3612
        %v3614 = vrot.slane %v3613, 1
        %v3615 = vadd.f32 %v3613, %v3614
        %v3616 = vsel %vm2709, %v3299, 0.0
        %v3617 = vrot.slane %v3616, 4
        %v3618 = vadd.f32 %v3616, %v3617
        %v3619 = vrot.slane %v3618, 2
        %v3620 = vadd.f32 %v3618, %v3619
        %v3621 = vrot.slane %v3620, 1
        %v3622 = vadd.f32 %v3620, %v3621
        %v3623 = vsel %vm2709, %v3301, 0.0
        %v3624 = vrot.slane %v3623, 4
        %v3625 = vadd.f32 %v3623, %v3624
        %v3626 = vrot.slane %v3625, 2
        %v3627 = vadd.f32 %v3625, %v3626
        %v3628 = vrot.slane %v3627, 1
        %v3629 = vadd.f32 %v3627, %v3628
        %v3630 = vsel %vm2709, %v3303, 0.0
        %v3631 = vrot.slane %v3630, 4
        %v3632 = vadd.f32 %v3630, %v3631
        %v3633 = vrot.slane %v3632, 2
        %v3634 = vadd.f32 %v3632, %v3633
        %v3635 = vrot.slane %v3634, 1
        %v3636 = vadd.f32 %v3634, %v3635
        %v3637 = vsel %vm2709, %v3305, 0.0
        %v3638 = vrot.slane %v3637, 4
        %v3639 = vadd.f32 %v3637, %v3638
        %v3640 = vrot.slane %v3639, 2
        %v3641 = vadd.f32 %v3639, %v3640
        %v3642 = vrot.slane %v3641, 1
        %v3643 = vadd.f32 %v3641, %v3642
        %v3644 = vsel %vm2709, %v3307, 0.0
        %v3645 = vrot.slane %v3644, 4
        %v3646 = vadd.f32 %v3644, %v3645
        %v3647 = vrot.slane %v3646, 2
        %v3648 = vadd.f32 %v3646, %v3647
        %v3649 = vrot.slane %v3648, 1
        %v3650 = vadd.f32 %v3648, %v3649
        %v3651 = vsel %vm2709, %v3309, 0.0
        %v3652 = vrot.slane %v3651, 4
        %v3653 = vadd.f32 %v3651, %v3652
        %v3654 = vrot.slane %v3653, 2
        %v3655 = vadd.f32 %v3653, %v3654
        %v3656 = vrot.slane %v3655, 1
        %v3657 = vadd.f32 %v3655, %v3656
        %v3658 = vsel %vm2709, %v3311, 0.0
        %v3659 = vrot.slane %v3658, 4
        %v3660 = vadd.f32 %v3658, %v3659
        %v3661 = vrot.slane %v3660, 2
        %v3662 = vadd.f32 %v3660, %v3661
        %v3663 = vrot.slane %v3662, 1
        %v3664 = vadd.f32 %v3662, %v3663
        %v3665 = vsel %vm2709, %v3313, 0.0
        %v3666 = vrot.slane %v3665, 4
        %v3667 = vadd.f32 %v3665, %v3666
        %v3668 = vrot.slane %v3667, 2
        %v3669 = vadd.f32 %v3667, %v3668
        %v3670 = vrot.slane %v3669, 1
        %v3671 = vadd.f32 %v3669, %v3670
        %v3672 = vsel %vm2709, %v3315, 0.0
        %v3673 = vrot.slane %v3672, 4
        %v3674 = vadd.f32 %v3672, %v3673
        %v3675 = vrot.slane %v3674, 2
        %v3676 = vadd.f32 %v3674, %v3675
        %v3677 = vrot.slane %v3676, 1
        %v3678 = vadd.f32 %v3676, %v3677
        %v3679 = vsel %vm2709, %v3317, 0.0
        %v3680 = vrot.slane %v3679, 4
        %v3681 = vadd.f32 %v3679, %v3680
        %v3682 = vrot.slane %v3681, 2
        %v3683 = vadd.f32 %v3681, %v3682
        %v3684 = vrot.slane %v3683, 1
        %v3685 = vadd.f32 %v3683, %v3684
        %v3686 = vsel %vm2709, %v3319, 0.0
        %v3687 = vrot.slane %v3686, 4
        %v3688 = vadd.f32 %v3686, %v3687
        %v3689 = vrot.slane %v3688, 2
        %v3690 = vadd.f32 %v3688, %v3689
        %v3691 = vrot.slane %v3690, 1
        %v3692 = vadd.f32 %v3690, %v3691
        %v3693 = vsel %vm2709, %v3321, 0.0
        %v3694 = vrot.slane %v3693, 4
        %v3695 = vadd.f32 %v3693, %v3694
        %v3696 = vrot.slane %v3695, 2
        %v3697 = vadd.f32 %v3695, %v3696
        %v3698 = vrot.slane %v3697, 1
        %v3699 = vadd.f32 %v3697, %v3698
        %v3700 = vsel %vm2709, %v3323, 0.0
        %v3701 = vrot.slane %v3700, 4
        %v3702 = vadd.f32 %v3700, %v3701
        %v3703 = vrot.slane %v3702, 2
        %v3704 = vadd.f32 %v3702, %v3703
        %v3705 = vrot.slane %v3704, 1
        %v3706 = vadd.f32 %v3704, %v3705
        %v3707 = vsel %vm2709, %v3325, 0.0
        %v3708 = vrot.slane %v3707, 4
        %v3709 = vadd.f32 %v3707, %v3708
        %v3710 = vrot.slane %v3709, 2
        %v3711 = vadd.f32 %v3709, %v3710
        %v3712 = vrot.slane %v3711, 1
        %v3713 = vadd.f32 %v3711, %v3712
        %v3714 = vsel %vm2709, %v3327, 0.0
        %v3715 = vrot.slane %v3714, 4
        %v3716 = vadd.f32 %v3714, %v3715
        %v3717 = vrot.slane %v3716, 2
        %v3718 = vadd.f32 %v3716, %v3717
        %v3719 = vrot.slane %v3718, 1
        %v3720 = vadd.f32 %v3718, %v3719
        %v3721 = vsel %vm2709, %v3329, 0.0
        %v3722 = vrot.slane %v3721, 4
        %v3723 = vadd.f32 %v3721, %v3722
        %v3724 = vrot.slane %v3723, 2
        %v3725 = vadd.f32 %v3723, %v3724
        %v3726 = vrot.slane %v3725, 1
        %v3727 = vadd.f32 %v3725, %v3726
        %v3728 = vsel %vm2709, %v3331, 0.0
        %v3729 = vrot.slane %v3728, 4
        %v3730 = vadd.f32 %v3728, %v3729
        %v3731 = vrot.slane %v3730, 2
        %v3732 = vadd.f32 %v3730, %v3731
        %v3733 = vrot.slane %v3732, 1
        %v3734 = vadd.f32 %v3732, %v3733
        %v3735 = vsel %vm2709, %v3333, 0.0
        %v3736 = vrot.slane %v3735, 4
        %v3737 = vadd.f32 %v3735, %v3736
        %v3738 = vrot.slane %v3737, 2
        %v3739 = vadd.f32 %v3737, %v3738
        %v3740 = vrot.slane %v3739, 1
        %v3741 = vadd.f32 %v3739, %v3740
        %v3742 = vsel %vm2709, %v3335, 0.0
        %v3743 = vrot.slane %v3742, 4
        %v3744 = vadd.f32 %v3742, %v3743
        %v3745 = vrot.slane %v3744, 2
        %v3746 = vadd.f32 %v3744, %v3745
        %v3747 = vrot.slane %v3746, 1
        %v3748 = vadd.f32 %v3746, %v3747
        %v3749 = vsel %vm2709, %v3337, 0.0
        %v3750 = vrot.slane %v3749, 4
        %v3751 = vadd.f32 %v3749, %v3750
        %v3752 = vrot.slane %v3751, 2
        %v3753 = vadd.f32 %v3751, %v3752
        %v3754 = vrot.slane %v3753, 1
        %v3755 = vadd.f32 %v3753, %v3754
        %v3756 = vsel %vm2709, %v3339, 0.0
        %v3757 = vrot.slane %v3756, 4
        %v3758 = vadd.f32 %v3756, %v3757
        %v3759 = vrot.slane %v3758, 2
        %v3760 = vadd.f32 %v3758, %v3759
        %v3761 = vrot.slane %v3760, 1
        %v3762 = vadd.f32 %v3760, %v3761
        %v3763 = vsel %vm2709, %v3341, 0.0
        %v3764 = vrot.slane %v3763, 4
        %v3765 = vadd.f32 %v3763, %v3764
        %v3766 = vrot.slane %v3765, 2
        %v3767 = vadd.f32 %v3765, %v3766
        %v3768 = vrot.slane %v3767, 1
        %v3769 = vadd.f32 %v3767, %v3768
        %v3770 = vsel %vm2709, %v3343, 0.0
        %v3771 = vrot.slane %v3770, 4
        %v3772 = vadd.f32 %v3770, %v3771
        %v3773 = vrot.slane %v3772, 2
        %v3774 = vadd.f32 %v3772, %v3773
        %v3775 = vrot.slane %v3774, 1
        %v3776 = vadd.f32 %v3774, %v3775
        %v3777 = vsel %vm2709, %v3345, 0.0
        %v3778 = vrot.slane %v3777, 4
        %v3779 = vadd.f32 %v3777, %v3778
        %v3780 = vrot.slane %v3779, 2
        %v3781 = vadd.f32 %v3779, %v3780
        %v3782 = vrot.slane %v3781, 1
        %v3783 = vadd.f32 %v3781, %v3782
        %v3784 = vsel %vm2709, %v3347, 0.0
        %v3785 = vrot.slane %v3784, 4
        %v3786 = vadd.f32 %v3784, %v3785
        %v3787 = vrot.slane %v3786, 2
        %v3788 = vadd.f32 %v3786, %v3787
        %v3789 = vrot.slane %v3788, 1
        %v3790 = vadd.f32 %v3788, %v3789
        %v3791 = vsel %vm2709, %v3349, 0.0
        %v3792 = vrot.slane %v3791, 4
        %v3793 = vadd.f32 %v3791, %v3792
        %v3794 = vrot.slane %v3793, 2
        %v3795 = vadd.f32 %v3793, %v3794
        %v3796 = vrot.slane %v3795, 1
        %v3797 = vadd.f32 %v3795, %v3796
        %v3798 = vrcp.pop %v3356
        %v3799 = vrcp.pop %v3363
        %v3800 = vrcp.pop %v3370
        %v3801 = vrcp.pop %v3377
        %v3802 = vrcp.pop %v3384
        %v3803 = vrcp.pop %v3391
        %v3804 = vrcp.pop %v3398
        %v3805 = vrcp.pop %v3405
        %v3806 = vrcp.pop %v3412
        %v3807 = vrcp.pop %v3419
        %v3808 = vrcp.pop %v3426
        %v3809 = vrcp.pop %v3433
        %v3810 = vrcp.pop %v3440
        %v3811 = vrcp.pop %v3447
        %v3812 = vrcp.pop %v3454
        %v3813 = vrcp.pop %v3461
        %v3814 = vrcp.pop %v3468
        %v3815 = vrcp.pop %v3475
        %v3816 = vrcp.pop %v3482
        %v3817 = vrcp.pop %v3489
        %v3818 = vrcp.pop %v3496
        %v3819 = vrcp.pop %v3503
        %v3820 = vrcp.pop %v3510
        %v3821 = vrcp.pop %v3517
        %v3822 = vrcp.pop %v3524
        %v3823 = vrcp.pop %v3531
        %v3824 = vrcp.pop %v3538
        %v3825 = vrcp.pop %v3545
        %v3826 = vrcp.pop %v3552
        %v3827 = vrcp.pop %v3559
        %v3828 = vrcp.pop %v3566
        %v3829 = vrcp.pop %v3573
        %v3830 = vrcp.pop %v3580
        %v3831 = vrcp.pop %v3587
        %v3832 = vrcp.pop %v3594
        %v3833 = vrcp.pop %v3601
        %v3834 = vrcp.pop %v3608
        %v3835 = vrcp.pop %v3615
        %v3836 = vrcp.pop %v3622
        %v3837 = vrcp.pop %v3629
        %v3838 = vrcp.pop %v3636
        %v3839 = vrcp.pop %v3643
        %v3840 = vrcp.pop %v3650
        %v3841 = vrcp.pop %v3657
        %v3842 = vrcp.pop %v3664
        %v3843 = vrcp.pop %v3671
        %v3844 = vrcp.pop %v3678
        %v3845 = vrcp.pop %v3685
        %v3846 = vrcp.pop %v3692
        %v3847 = vrcp.pop %v3699
        %v3848 = vrcp.pop %v3706
        %v3849 = vrcp.pop %v3713
        %v3850 = vrcp.pop %v3720
        %v3851 = vrcp.pop %v3727
        %v3852 = vrcp.pop %v3734
        %v3853 = vrcp.pop %v3741
        %v3854 = vrcp.pop %v3748
        %v3855 = vrcp.pop %v3755
        %v3856 = vrcp.pop %v3762
        %v3857 = vrcp.pop %v3769
        %v3858 = vrcp.pop %v3776
        %v3859 = vrcp.pop %v3783
        %v3860 = vrcp.pop %v3790
        %v3861 = vrcp.pop %v3797
        %v3862 = vmul.f32 %v3356, %v3798
        %v3863 = vmul.f32 %v3363, %v3799
        %v3864 = vmul.f32 %v3370, %v3800
        %v3865 = vmul.f32 %v3377, %v3801
        %v3866 = vmul.f32 %v3384, %v3802
        %v3867 = vmul.f32 %v3391, %v3803
        %v3868 = vmul.f32 %v3398, %v3804
        %v3869 = vmul.f32 %v3405, %v3805
        %v3870 = vmul.f32 %v3412, %v3806
        %v3871 = vmul.f32 %v3419, %v3807
        %v3872 = vmul.f32 %v3426, %v3808
        %v3873 = vmul.f32 %v3433, %v3809
        %v3874 = vmul.f32 %v3440, %v3810
        %v3875 = vmul.f32 %v3447, %v3811
        %v3876 = vmul.f32 %v3454, %v3812
        %v3877 = vmul.f32 %v3461, %v3813
        %v3878 = vmul.f32 %v3468, %v3814
        %v3879 = vmul.f32 %v3475, %v3815
        %v3880 = vmul.f32 %v3482, %v3816
        %v3881 = vmul.f32 %v3489, %v3817
        %v3882 = vmul.f32 %v3496, %v3818
        %v3883 = vmul.f32 %v3503, %v3819
        %v3884 = vmul.f32 %v3510, %v3820
        %v3885 = vmul.f32 %v3517, %v3821
        %v3886 = vmul.f32 %v3524, %v3822
        %v3887 = vmul.f32 %v3531, %v3823
        %v3888 = vmul.f32 %v3538, %v3824
        %v3889 = vmul.f32 %v3545, %v3825
        %v3890 = vmul.f32 %v3552, %v3826
        %v3891 = vmul.f32 %v3559, %v3827
        %v3892 = vmul.f32 %v3566, %v3828
        %v3893 = vmul.f32 %v3573, %v3829
        %v3894 = vmul.f32 %v3580, %v3830
        %v3895 = vmul.f32 %v3587, %v3831
        %v3896 = vmul.f32 %v3594, %v3832
        %v3897 = vmul.f32 %v3601, %v3833
        %v3898 = vmul.f32 %v3608, %v3834
        %v3899 = vmul.f32 %v3615, %v3835
        %v3900 = vmul.f32 %v3622, %v3836
        %v3901 = vmul.f32 %v3629, %v3837
        %v3902 = vmul.f32 %v3636, %v3838
        %v3903 = vmul.f32 %v3643, %v3839
        %v3904 = vmul.f32 %v3650, %v3840
        %v3905 = vmul.f32 %v3657, %v3841
        %v3906 = vmul.f32 %v3664, %v3842
        %v3907 = vmul.f32 %v3671, %v3843
        %v3908 = vmul.f32 %v3678, %v3844
        %v3909 = vmul.f32 %v3685, %v3845
        %v3910 = vmul.f32 %v3692, %v3846
        %v3911 = vmul.f32 %v3699, %v3847
        %v3912 = vmul.f32 %v3706, %v3848
        %v3913 = vmul.f32 %v3713, %v3849
        %v3914 = vmul.f32 %v3720, %v3850
        %v3915 = vmul.f32 %v3727, %v3851
        %v3916 = vmul.f32 %v3734, %v3852
        %v3917 = vmul.f32 %v3741, %v3853
        %v3918 = vmul.f32 %v3748, %v3854
        %v3919 = vmul.f32 %v3755, %v3855
        %v3920 = vmul.f32 %v3762, %v3856
        %v3921 = vmul.f32 %v3769, %v3857
        %v3922 = vmul.f32 %v3776, %v3858
        %v3923 = vmul.f32 %v3783, %v3859
        %v3924 = vmul.f32 %v3790, %v3860
        %v3925 = vmul.f32 %v3797, %v3861
        %v3926 = vsub.f32 2.0, %v3862
        %v3927 = vsub.f32 2.0, %v3863
        %v3928 = vsub.f32 2.0, %v3864
        %v3929 = vsub.f32 2.0, %v3865
        %v3930 = vsub.f32 2.0, %v3866
        %v3931 = vsub.f32 2.0, %v3867
        %v3932 = vsub.f32 2.0, %v3868
        %v3933 = vsub.f32 2.0, %v3869
        %v3934 = vsub.f32 2.0, %v3870
        %v3935 = vsub.f32 2.0, %v3871
        %v3936 = vsub.f32 2.0, %v3872
        %v3937 = vsub.f32 2.0, %v3873
        %v3938 = vsub.f32 2.0, %v3874
        %v3939 = vsub.f32 2.0, %v3875
        %v3940 = vsub.f32 2.0, %v3876
        %v3941 = vsub.f32 2.0, %v3877
        %v3942 = vsub.f32 2.0, %v3878
        %v3943 = vsub.f32 2.0, %v3879
        %v3944 = vsub.f32 2.0, %v3880
        %v3945 = vsub.f32 2.0, %v3881
        %v3946 = vsub.f32 2.0, %v3882
        %v3947 = vsub.f32 2.0, %v3883
        %v3948 = vsub.f32 2.0, %v3884
        %v3949 = vsub.f32 2.0, %v3885
        %v3950 = vsub.f32 2.0, %v3886
        %v3951 = vsub.f32 2.0, %v3887
        %v3952 = vsub.f32 2.0, %v3888
        %v3953 = vsub.f32 2.0, %v3889
        %v3954 = vsub.f32 2.0, %v3890
        %v3955 = vsub.f32 2.0, %v3891
        %v3956 = vsub.f32 2.0, %v3892
        %v3957 = vsub.f32 2.0, %v3893
        %v3958 = vsub.f32 2.0, %v3894
        %v3959 = vsub.f32 2.0, %v3895
        %v3960 = vsub.f32 2.0, %v3896
        %v3961 = vsub.f32 2.0, %v3897
        %v3962 = vsub.f32 2.0, %v3898
        %v3963 = vsub.f32 2.0, %v3899
        %v3964 = vsub.f32 2.0, %v3900
        %v3965 = vsub.f32 2.0, %v3901
        %v3966 = vsub.f32 2.0, %v3902
        %v3967 = vsub.f32 2.0, %v3903
        %v3968 = vsub.f32 2.0, %v3904
        %v3969 = vsub.f32 2.0, %v3905
        %v3970 = vsub.f32 2.0, %v3906
        %v3971 = vsub.f32 2.0, %v3907
        %v3972 = vsub.f32 2.0, %v3908
        %v3973 = vsub.f32 2.0, %v3909
        %v3974 = vsub.f32 2.0, %v3910
        %v3975 = vsub.f32 2.0, %v3911
        %v3976 = vsub.f32 2.0, %v3912
        %v3977 = vsub.f32 2.0, %v3913
        %v3978 = vsub.f32 2.0, %v3914
        %v3979 = vsub.f32 2.0, %v3915
        %v3980 = vsub.f32 2.0, %v3916
        %v3981 = vsub.f32 2.0, %v3917
        %v3982 = vsub.f32 2.0, %v3918
        %v3983 = vsub.f32 2.0, %v3919
        %v3984 = vsub.f32 2.0, %v3920
        %v3985 = vsub.f32 2.0, %v3921
        %v3986 = vsub.f32 2.0, %v3922
        %v3987 = vsub.f32 2.0, %v3923
        %v3988 = vsub.f32 2.0, %v3924
        %v3989 = vsub.f32 2.0, %v3925
        %v3990 = vmul.f32 %v3798, %v3926
        %v3991 = vmul.f32 %v3799, %v3927
        %v3992 = vmul.f32 %v3800, %v3928
        %v3993 = vmul.f32 %v3801, %v3929
        %v3994 = vmul.f32 %v3802, %v3930
        %v3995 = vmul.f32 %v3803, %v3931
        %v3996 = vmul.f32 %v3804, %v3932
        %v3997 = vmul.f32 %v3805, %v3933
        %v3998 = vmul.f32 %v3806, %v3934
        %v3999 = vmul.f32 %v3807, %v3935
        %v4000 = vmul.f32 %v3808, %v3936
        %v4001 = vmul.f32 %v3809, %v3937
        %v4002 = vmul.f32 %v3810, %v3938
        %v4003 = vmul.f32 %v3811, %v3939
        %v4004 = vmul.f32 %v3812, %v3940
        %v4005 = vmul.f32 %v3813, %v3941
        %v4006 = vmul.f32 %v3814, %v3942
        %v4007 = vmul.f32 %v3815, %v3943
        %v4008 = vmul.f32 %v3816, %v3944
        %v4009 = vmul.f32 %v3817, %v3945
        %v4010 = vmul.f32 %v3818, %v3946
        %v4011 = vmul.f32 %v3819, %v3947
        %v4012 = vmul.f32 %v3820, %v3948
        %v4013 = vmul.f32 %v3821, %v3949
        %v4014 = vmul.f32 %v3822, %v3950
        %v4015 = vmul.f32 %v3823, %v3951
        %v4016 = vmul.f32 %v3824, %v3952
        %v4017 = vmul.f32 %v3825, %v3953
        %v4018 = vmul.f32 %v3826, %v3954
        %v4019 = vmul.f32 %v3827, %v3955
        %v4020 = vmul.f32 %v3828, %v3956
        %v4021 = vmul.f32 %v3829, %v3957
        %v4022 = vmul.f32 %v3830, %v3958
        %v4023 = vmul.f32 %v3831, %v3959
        %v4024 = vmul.f32 %v3832, %v3960
        %v4025 = vmul.f32 %v3833, %v3961
        %v4026 = vmul.f32 %v3834, %v3962
        %v4027 = vmul.f32 %v3835, %v3963
        %v4028 = vmul.f32 %v3836, %v3964
        %v4029 = vmul.f32 %v3837, %v3965
        %v4030 = vmul.f32 %v3838, %v3966
        %v4031 = vmul.f32 %v3839, %v3967
        %v4032 = vmul.f32 %v3840, %v3968
        %v4033 = vmul.f32 %v3841, %v3969
        %v4034 = vmul.f32 %v3842, %v3970
        %v4035 = vmul.f32 %v3843, %v3971
        %v4036 = vmul.f32 %v3844, %v3972
        %v4037 = vmul.f32 %v3845, %v3973
        %v4038 = vmul.f32 %v3846, %v3974
        %v4039 = vmul.f32 %v3847, %v3975
        %v4040 = vmul.f32 %v3848, %v3976
        %v4041 = vmul.f32 %v3849, %v3977
        %v4042 = vmul.f32 %v3850, %v3978
        %v4043 = vmul.f32 %v3851, %v3979
        %v4044 = vmul.f32 %v3852, %v3980
        %v4045 = vmul.f32 %v3853, %v3981
        %v4046 = vmul.f32 %v3854, %v3982
        %v4047 = vmul.f32 %v3855, %v3983
        %v4048 = vmul.f32 %v3856, %v3984
        %v4049 = vmul.f32 %v3857, %v3985
        %v4050 = vmul.f32 %v3858, %v3986
        %v4051 = vmul.f32 %v3859, %v3987
        %v4052 = vmul.f32 %v3860, %v3988
        %v4053 = vmul.f32 %v3861, %v3989
        %v4054 = vmul.f32 %v3223, %v3990
        %v4055 = vmul.f32 %v3225, %v3991
        %v4056 = vmul.f32 %v3227, %v3992
        %v4057 = vmul.f32 %v3229, %v3993
        %v4058 = vmul.f32 %v3231, %v3994
        %v4059 = vmul.f32 %v3233, %v3995
        %v4060 = vmul.f32 %v3235, %v3996
        %v4061 = vmul.f32 %v3237, %v3997
        %v4062 = vmul.f32 %v3239, %v3998
        %v4063 = vmul.f32 %v3241, %v3999
        %v4064 = vmul.f32 %v3243, %v4000
        %v4065 = vmul.f32 %v3245, %v4001
        %v4066 = vmul.f32 %v3247, %v4002
        %v4067 = vmul.f32 %v3249, %v4003
        %v4068 = vmul.f32 %v3251, %v4004
        %v4069 = vmul.f32 %v3253, %v4005
        %v4070 = vmul.f32 %v3255, %v4006
        %v4071 = vmul.f32 %v3257, %v4007
        %v4072 = vmul.f32 %v3259, %v4008
        %v4073 = vmul.f32 %v3261, %v4009
        %v4074 = vmul.f32 %v3263, %v4010
        %v4075 = vmul.f32 %v3265, %v4011
        %v4076 = vmul.f32 %v3267, %v4012
        %v4077 = vmul.f32 %v3269, %v4013
        %v4078 = vmul.f32 %v3271, %v4014
        %v4079 = vmul.f32 %v3273, %v4015
        %v4080 = vmul.f32 %v3275, %v4016
        %v4081 = vmul.f32 %v3277, %v4017
        %v4082 = vmul.f32 %v3279, %v4018
        %v4083 = vmul.f32 %v3281, %v4019
        %v4084 = vmul.f32 %v3283, %v4020
        %v4085 = vmul.f32 %v3285, %v4021
        %v4086 = vmul.f32 %v3287, %v4022
        %v4087 = vmul.f32 %v3289, %v4023
        %v4088 = vmul.f32 %v3291, %v4024
        %v4089 = vmul.f32 %v3293, %v4025
        %v4090 = vmul.f32 %v3295, %v4026
        %v4091 = vmul.f32 %v3297, %v4027
        %v4092 = vmul.f32 %v3299, %v4028
        %v4093 = vmul.f32 %v3301, %v4029
        %v4094 = vmul.f32 %v3303, %v4030
        %v4095 = vmul.f32 %v3305, %v4031
        %v4096 = vmul.f32 %v3307, %v4032
        %v4097 = vmul.f32 %v3309, %v4033
        %v4098 = vmul.f32 %v3311, %v4034
        %v4099 = vmul.f32 %v3313, %v4035
        %v4100 = vmul.f32 %v3315, %v4036
        %v4101 = vmul.f32 %v3317, %v4037
        %v4102 = vmul.f32 %v3319, %v4038
        %v4103 = vmul.f32 %v3321, %v4039
        %v4104 = vmul.f32 %v3323, %v4040
        %v4105 = vmul.f32 %v3325, %v4041
        %v4106 = vmul.f32 %v3327, %v4042
        %v4107 = vmul.f32 %v3329, %v4043
        %v4108 = vmul.f32 %v3331, %v4044
        %v4109 = vmul.f32 %v3333, %v4045
        %v4110 = vmul.f32 %v3335, %v4046
        %v4111 = vmul.f32 %v3337, %v4047
        %v4112 = vmul.f32 %v3339, %v4048
        %v4113 = vmul.f32 %v3341, %v4049
        %v4114 = vmul.f32 %v3343, %v4050
        %v4115 = vmul.f32 %v3345, %v4051
        %v4116 = vmul.f32 %v3347, %v4052
        %v4117 = vmul.f32 %v3349, %v4053
        %4119 = vset.pattern.permute.xlu0 0
        %4120 = vperm.xlu0 %4119, %v4054
        %v4121 = vpop.permute.xlu0 %4120
        %4124 = vset.pattern.permute.xlu0 0
        %4125 = vperm.xlu0 %4124, %v4055
        %v4126 = vpop.permute.xlu0 %4125
        %4129 = vset.pattern.permute.xlu0 0
        %4130 = vperm.xlu0 %4129, %v4056
        %v4131 = vpop.permute.xlu0 %4130
        %4134 = vset.pattern.permute.xlu0 0
        %4135 = vperm.xlu0 %4134, %v4057
        %v4136 = vpop.permute.xlu0 %4135
        %4139 = vset.pattern.permute.xlu0 0
        %4140 = vperm.xlu0 %4139, %v4058
        %v4141 = vpop.permute.xlu0 %4140
        %4144 = vset.pattern.permute.xlu0 0
        %4145 = vperm.xlu0 %4144, %v4059
        %v4146 = vpop.permute.xlu0 %4145
        %4149 = vset.pattern.permute.xlu0 0
        %4150 = vperm.xlu0 %4149, %v4060
        %v4151 = vpop.permute.xlu0 %4150
        %4154 = vset.pattern.permute.xlu0 0
        %4155 = vperm.xlu0 %4154, %v4061
        %v4156 = vpop.permute.xlu0 %4155
        %4159 = vset.pattern.permute.xlu0 0
        %4160 = vperm.xlu0 %4159, %v4062
        %v4161 = vpop.permute.xlu0 %4160
        %4164 = vset.pattern.permute.xlu0 0
        %4165 = vperm.xlu0 %4164, %v4063
        %v4166 = vpop.permute.xlu0 %4165
        %4169 = vset.pattern.permute.xlu0 0
        %4170 = vperm.xlu0 %4169, %v4064
        %v4171 = vpop.permute.xlu0 %4170
        %4174 = vset.pattern.permute.xlu0 0
        %4175 = vperm.xlu0 %4174, %v4065
        %v4176 = vpop.permute.xlu0 %4175
        %4179 = vset.pattern.permute.xlu0 0
        %4180 = vperm.xlu0 %4179, %v4066
        %v4181 = vpop.permute.xlu0 %4180
        %4184 = vset.pattern.permute.xlu0 0
        %4185 = vperm.xlu0 %4184, %v4067
        %v4186 = vpop.permute.xlu0 %4185
        %4189 = vset.pattern.permute.xlu0 0
        %4190 = vperm.xlu0 %4189, %v4068
        %v4191 = vpop.permute.xlu0 %4190
        %4194 = vset.pattern.permute.xlu0 0
        %4195 = vperm.xlu0 %4194, %v4069
        %v4196 = vpop.permute.xlu0 %4195
        %4199 = vset.pattern.permute.xlu0 0
        %4200 = vperm.xlu0 %4199, %v4070
        %v4201 = vpop.permute.xlu0 %4200
        %4204 = vset.pattern.permute.xlu0 0
        %4205 = vperm.xlu0 %4204, %v4071
        %v4206 = vpop.permute.xlu0 %4205
        %4209 = vset.pattern.permute.xlu0 0
        %4210 = vperm.xlu0 %4209, %v4072
        %v4211 = vpop.permute.xlu0 %4210
        %4214 = vset.pattern.permute.xlu0 0
        %4215 = vperm.xlu0 %4214, %v4073
        %v4216 = vpop.permute.xlu0 %4215
        %4219 = vset.pattern.permute.xlu0 0
        %4220 = vperm.xlu0 %4219, %v4074
        %v4221 = vpop.permute.xlu0 %4220
        %4224 = vset.pattern.permute.xlu0 0
        %4225 = vperm.xlu0 %4224, %v4075
        %v4226 = vpop.permute.xlu0 %4225
        %4229 = vset.pattern.permute.xlu0 0
        %4230 = vperm.xlu0 %4229, %v4076
        %v4231 = vpop.permute.xlu0 %4230
        %4234 = vset.pattern.permute.xlu0 0
        %4235 = vperm.xlu0 %4234, %v4077
        %v4236 = vpop.permute.xlu0 %4235
        %4239 = vset.pattern.permute.xlu0 0
        %4240 = vperm.xlu0 %4239, %v4078
        %v4241 = vpop.permute.xlu0 %4240
        %4244 = vset.pattern.permute.xlu0 0
        %4245 = vperm.xlu0 %4244, %v4079
        %v4246 = vpop.permute.xlu0 %4245
        %4249 = vset.pattern.permute.xlu0 0
        %4250 = vperm.xlu0 %4249, %v4080
        %v4251 = vpop.permute.xlu0 %4250
        %4254 = vset.pattern.permute.xlu0 0
        %4255 = vperm.xlu0 %4254, %v4081
        %v4256 = vpop.permute.xlu0 %4255
        %4259 = vset.pattern.permute.xlu0 0
        %4260 = vperm.xlu0 %4259, %v4082
        %v4261 = vpop.permute.xlu0 %4260
        %4264 = vset.pattern.permute.xlu0 0
        %4265 = vperm.xlu0 %4264, %v4083
        %v4266 = vpop.permute.xlu0 %4265
        %4269 = vset.pattern.permute.xlu0 0
        %4270 = vperm.xlu0 %4269, %v4084
        %v4271 = vpop.permute.xlu0 %4270
        %4274 = vset.pattern.permute.xlu0 0
        %4275 = vperm.xlu0 %4274, %v4085
        %v4276 = vpop.permute.xlu0 %4275
        %4279 = vset.pattern.permute.xlu0 0
        %4280 = vperm.xlu0 %4279, %v4086
        %v4281 = vpop.permute.xlu0 %4280
        %4284 = vset.pattern.permute.xlu0 0
        %4285 = vperm.xlu0 %4284, %v4087
        %v4286 = vpop.permute.xlu0 %4285
        %4289 = vset.pattern.permute.xlu0 0
        %4290 = vperm.xlu0 %4289, %v4088
        %v4291 = vpop.permute.xlu0 %4290
        %4294 = vset.pattern.permute.xlu0 0
        %4295 = vperm.xlu0 %4294, %v4089
        %v4296 = vpop.permute.xlu0 %4295
        %4299 = vset.pattern.permute.xlu0 0
        %4300 = vperm.xlu0 %4299, %v4090
        %v4301 = vpop.permute.xlu0 %4300
        %4304 = vset.pattern.permute.xlu0 0
        %4305 = vperm.xlu0 %4304, %v4091
        %v4306 = vpop.permute.xlu0 %4305
        %4309 = vset.pattern.permute.xlu0 0
        %4310 = vperm.xlu0 %4309, %v4092
        %v4311 = vpop.permute.xlu0 %4310
        %4314 = vset.pattern.permute.xlu0 0
        %4315 = vperm.xlu0 %4314, %v4093
        %v4316 = vpop.permute.xlu0 %4315
        %4319 = vset.pattern.permute.xlu0 0
        %4320 = vperm.xlu0 %4319, %v4094
        %v4321 = vpop.permute.xlu0 %4320
        %4324 = vset.pattern.permute.xlu0 0
        %4325 = vperm.xlu0 %4324, %v4095
        %v4326 = vpop.permute.xlu0 %4325
        %4329 = vset.pattern.permute.xlu0 0
        %4330 = vperm.xlu0 %4329, %v4096
        %v4331 = vpop.permute.xlu0 %4330
        %4334 = vset.pattern.permute.xlu0 0
        %4335 = vperm.xlu0 %4334, %v4097
        %v4336 = vpop.permute.xlu0 %4335
        %4339 = vset.pattern.permute.xlu0 0
        %4340 = vperm.xlu0 %4339, %v4098
        %v4341 = vpop.permute.xlu0 %4340
        %4344 = vset.pattern.permute.xlu0 0
        %4345 = vperm.xlu0 %4344, %v4099
        %v4346 = vpop.permute.xlu0 %4345
        %4349 = vset.pattern.permute.xlu0 0
        %4350 = vperm.xlu0 %4349, %v4100
        %v4351 = vpop.permute.xlu0 %4350
        %4354 = vset.pattern.permute.xlu0 0
        %4355 = vperm.xlu0 %4354, %v4101
        %v4356 = vpop.permute.xlu0 %4355
        %4359 = vset.pattern.permute.xlu0 0
        %4360 = vperm.xlu0 %4359, %v4102
        %v4361 = vpop.permute.xlu0 %4360
        %4364 = vset.pattern.permute.xlu0 0
        %4365 = vperm.xlu0 %4364, %v4103
        %v4366 = vpop.permute.xlu0 %4365
        %4369 = vset.pattern.permute.xlu0 0
        %4370 = vperm.xlu0 %4369, %v4104
        %v4371 = vpop.permute.xlu0 %4370
        %4374 = vset.pattern.permute.xlu0 0
        %4375 = vperm.xlu0 %4374, %v4105
        %v4376 = vpop.permute.xlu0 %4375
        %4379 = vset.pattern.permute.xlu0 0
        %4380 = vperm.xlu0 %4379, %v4106
        %v4381 = vpop.permute.xlu0 %4380
        %4384 = vset.pattern.permute.xlu0 0
        %4385 = vperm.xlu0 %4384, %v4107
        %v4386 = vpop.permute.xlu0 %4385
        %4389 = vset.pattern.permute.xlu0 0
        %4390 = vperm.xlu0 %4389, %v4108
        %v4391 = vpop.permute.xlu0 %4390
        %4394 = vset.pattern.permute.xlu0 0
        %4395 = vperm.xlu0 %4394, %v4109
        %v4396 = vpop.permute.xlu0 %4395
        %4399 = vset.pattern.permute.xlu0 0
        %4400 = vperm.xlu0 %4399, %v4110
        %v4401 = vpop.permute.xlu0 %4400
        %4404 = vset.pattern.permute.xlu0 0
        %4405 = vperm.xlu0 %4404, %v4111
        %v4406 = vpop.permute.xlu0 %4405
        %4409 = vset.pattern.permute.xlu0 0
        %4410 = vperm.xlu0 %4409, %v4112
        %v4411 = vpop.permute.xlu0 %4410
        %4414 = vset.pattern.permute.xlu0 0
        %4415 = vperm.xlu0 %4414, %v4113
        %v4416 = vpop.permute.xlu0 %4415
        %4419 = vset.pattern.permute.xlu0 0
        %4420 = vperm.xlu0 %4419, %v4114
        %v4421 = vpop.permute.xlu0 %4420
        %4424 = vset.pattern.permute.xlu0 0
        %4425 = vperm.xlu0 %4424, %v4115
        %v4426 = vpop.permute.xlu0 %4425
        %4429 = vset.pattern.permute.xlu0 0
        %4430 = vperm.xlu0 %4429, %v4116
        %v4431 = vpop.permute.xlu0 %4430
        %4434 = vset.pattern.permute.xlu0 0
        %4435 = vperm.xlu0 %4434, %v4117
        %v4436 = vpop.permute.xlu0 %4435
        %v4438 = vmul.f32 %v4121, %v491
        %v4439 = vmul.f32 %v4121, %v493
        %v4440 = vmul.f32 %v4126, %v497
        %v4441 = vmul.f32 %v4126, %v499
        %v4442 = vmul.f32 %v4131, %v503
        %v4443 = vmul.f32 %v4131, %v505
        %v4444 = vmul.f32 %v4136, %v509
        %v4445 = vmul.f32 %v4136, %v511
        %v4446 = vmul.f32 %v4141, %v515
        %v4447 = vmul.f32 %v4141, %v517
        %v4448 = vmul.f32 %v4146, %v521
        %v4449 = vmul.f32 %v4146, %v523
        %v4450 = vmul.f32 %v4151, %v527
        %v4451 = vmul.f32 %v4151, %v529
        %v4452 = vmul.f32 %v4156, %v533
        %v4453 = vmul.f32 %v4156, %v535
        %v4454 = vmul.f32 %v4161, %v539
        %v4455 = vmul.f32 %v4161, %v541
        %v4456 = vmul.f32 %v4166, %v545
        %v4457 = vmul.f32 %v4166, %v547
        %v4458 = vmul.f32 %v4171, %v551
        %v4459 = vmul.f32 %v4171, %v553
        %v4460 = vmul.f32 %v4176, %v557
        %v4461 = vmul.f32 %v4176, %v559
        %v4462 = vmul.f32 %v4181, %v563
        %v4463 = vmul.f32 %v4181, %v565
        %v4464 = vmul.f32 %v4186, %v569
        %v4465 = vmul.f32 %v4186, %v571
        %v4466 = vmul.f32 %v4191, %v575
        %v4467 = vmul.f32 %v4191, %v577
        %v4468 = vmul.f32 %v4196, %v581
        %v4469 = vmul.f32 %v4196, %v583
        %v4470 = vmul.f32 %v4201, %v587
        %v4471 = vmul.f32 %v4201, %v589
        %v4472 = vmul.f32 %v4206, %v593
        %v4473 = vmul.f32 %v4206, %v595
        %v4474 = vmul.f32 %v4211, %v599
        %v4475 = vmul.f32 %v4211, %v601
        %v4476 = vmul.f32 %v4216, %v605
        %v4477 = vmul.f32 %v4216, %v607
        %v4478 = vmul.f32 %v4221, %v611
        %v4479 = vmul.f32 %v4221, %v613
        %v4480 = vmul.f32 %v4226, %v617
        %v4481 = vmul.f32 %v4226, %v619
        %v4482 = vmul.f32 %v4231, %v623
        %v4483 = vmul.f32 %v4231, %v625
        %v4484 = vmul.f32 %v4236, %v629
        %v4485 = vmul.f32 %v4236, %v631
        %v4486 = vmul.f32 %v4241, %v635
        %v4487 = vmul.f32 %v4241, %v637
        %v4488 = vmul.f32 %v4246, %v641
        %v4489 = vmul.f32 %v4246, %v643
        %v4490 = vmul.f32 %v4251, %v647
        %v4491 = vmul.f32 %v4251, %v649
        %v4492 = vmul.f32 %v4256, %v653
        %v4493 = vmul.f32 %v4256, %v655
        %v4494 = vmul.f32 %v4261, %v659
        %v4495 = vmul.f32 %v4261, %v661
        %v4496 = vmul.f32 %v4266, %v665
        %v4497 = vmul.f32 %v4266, %v667
        %v4498 = vmul.f32 %v4271, %v671
        %v4499 = vmul.f32 %v4271, %v673
        %v4500 = vmul.f32 %v4276, %v677
        %v4501 = vmul.f32 %v4276, %v679
        %v4502 = vmul.f32 %v4281, %v683
        %v4503 = vmul.f32 %v4281, %v685
        %v4504 = vmul.f32 %v4286, %v689
        %v4505 = vmul.f32 %v4286, %v691
        %v4506 = vmul.f32 %v4291, %v695
        %v4507 = vmul.f32 %v4291, %v697
        %v4508 = vmul.f32 %v4296, %v701
        %v4509 = vmul.f32 %v4296, %v703
        %v4510 = vmul.f32 %v4301, %v707
        %v4511 = vmul.f32 %v4301, %v709
        %v4512 = vmul.f32 %v4306, %v713
        %v4513 = vmul.f32 %v4306, %v715
        %v4514 = vmul.f32 %v4311, %v719
        %v4515 = vmul.f32 %v4311, %v721
        %v4516 = vmul.f32 %v4316, %v725
        %v4517 = vmul.f32 %v4316, %v727
        %v4518 = vmul.f32 %v4321, %v731
        %v4519 = vmul.f32 %v4321, %v733
        %v4520 = vmul.f32 %v4326, %v737
        %v4521 = vmul.f32 %v4326, %v739
        %v4522 = vmul.f32 %v4331, %v743
        %v4523 = vmul.f32 %v4331, %v745
        %v4524 = vmul.f32 %v4336, %v749
        %v4525 = vmul.f32 %v4336, %v751
        %v4526 = vmul.f32 %v4341, %v755
        %v4527 = vmul.f32 %v4341, %v757
        %v4528 = vmul.f32 %v4346, %v761
        %v4529 = vmul.f32 %v4346, %v763
        %v4530 = vmul.f32 %v4351, %v767
        %v4531 = vmul.f32 %v4351, %v769
        %v4532 = vmul.f32 %v4356, %v773
        %v4533 = vmul.f32 %v4356, %v775
        %v4534 = vmul.f32 %v4361, %v779
        %v4535 = vmul.f32 %v4361, %v781
        %v4536 = vmul.f32 %v4366, %v785
        %v4537 = vmul.f32 %v4366, %v787
        %v4538 = vmul.f32 %v4371, %v791
        %v4539 = vmul.f32 %v4371, %v793
        %v4540 = vmul.f32 %v4376, %v797
        %v4541 = vmul.f32 %v4376, %v799
        %v4542 = vmul.f32 %v4381, %v803
        %v4543 = vmul.f32 %v4381, %v805
        %v4544 = vmul.f32 %v4386, %v809
        %v4545 = vmul.f32 %v4386, %v811
        %v4546 = vmul.f32 %v4391, %v815
        %v4547 = vmul.f32 %v4391, %v817
        %v4548 = vmul.f32 %v4396, %v821
        %v4549 = vmul.f32 %v4396, %v823
        %v4550 = vmul.f32 %v4401, %v827
        %v4551 = vmul.f32 %v4401, %v829
        %v4552 = vmul.f32 %v4406, %v833
        %v4553 = vmul.f32 %v4406, %v835
        %v4554 = vmul.f32 %v4411, %v839
        %v4555 = vmul.f32 %v4411, %v841
        %v4556 = vmul.f32 %v4416, %v845
        %v4557 = vmul.f32 %v4416, %v847
        %v4558 = vmul.f32 %v4421, %v851
        %v4559 = vmul.f32 %v4421, %v853
        %v4560 = vmul.f32 %v4426, %v857
        %v4561 = vmul.f32 %v4426, %v859
        %v4562 = vmul.f32 %v4431, %v863
        %v4563 = vmul.f32 %v4431, %v865
        %v4564 = vmul.f32 %v4436, %v869
        %v4565 = vmul.f32 %v4436, %v871
        %v4566 = vrot.slane %v4438, 4
        %v4567 = vadd.f32 %v4438, %v4566
        %v4568 = vrot.slane %v4567, 2
        %v4569 = vadd.f32 %v4567, %v4568
        %v4570 = vrot.slane %v4569, 1
        %v4571 = vadd.f32 %v4569, %v4570
        %v4572 = vrot.slane %v4439, 4
        %v4573 = vadd.f32 %v4439, %v4572
        %v4574 = vrot.slane %v4573, 2
        %v4575 = vadd.f32 %v4573, %v4574
        %v4576 = vrot.slane %v4575, 1
        %v4577 = vadd.f32 %v4575, %v4576
        %v4578 = vrot.slane %v4440, 4
        %v4579 = vadd.f32 %v4440, %v4578
        %v4580 = vrot.slane %v4579, 2
        %v4581 = vadd.f32 %v4579, %v4580
        %v4582 = vrot.slane %v4581, 1
        %v4583 = vadd.f32 %v4581, %v4582
        %v4584 = vrot.slane %v4441, 4
        %v4585 = vadd.f32 %v4441, %v4584
        %v4586 = vrot.slane %v4585, 2
        %v4587 = vadd.f32 %v4585, %v4586
        %v4588 = vrot.slane %v4587, 1
        %v4589 = vadd.f32 %v4587, %v4588
        %v4590 = vrot.slane %v4442, 4
        %v4591 = vadd.f32 %v4442, %v4590
        %v4592 = vrot.slane %v4591, 2
        %v4593 = vadd.f32 %v4591, %v4592
        %v4594 = vrot.slane %v4593, 1
        %v4595 = vadd.f32 %v4593, %v4594
        %v4596 = vrot.slane %v4443, 4
        %v4597 = vadd.f32 %v4443, %v4596
        %v4598 = vrot.slane %v4597, 2
        %v4599 = vadd.f32 %v4597, %v4598
        %v4600 = vrot.slane %v4599, 1
        %v4601 = vadd.f32 %v4599, %v4600
        %v4602 = vrot.slane %v4444, 4
        %v4603 = vadd.f32 %v4444, %v4602
        %v4604 = vrot.slane %v4603, 2
        %v4605 = vadd.f32 %v4603, %v4604
        %v4606 = vrot.slane %v4605, 1
        %v4607 = vadd.f32 %v4605, %v4606
        %v4608 = vrot.slane %v4445, 4
        %v4609 = vadd.f32 %v4445, %v4608
        %v4610 = vrot.slane %v4609, 2
        %v4611 = vadd.f32 %v4609, %v4610
        %v4612 = vrot.slane %v4611, 1
        %v4613 = vadd.f32 %v4611, %v4612
        %v4614 = vrot.slane %v4446, 4
        %v4615 = vadd.f32 %v4446, %v4614
        %v4616 = vrot.slane %v4615, 2
        %v4617 = vadd.f32 %v4615, %v4616
        %v4618 = vrot.slane %v4617, 1
        %v4619 = vadd.f32 %v4617, %v4618
        %v4620 = vrot.slane %v4447, 4
        %v4621 = vadd.f32 %v4447, %v4620
        %v4622 = vrot.slane %v4621, 2
        %v4623 = vadd.f32 %v4621, %v4622
        %v4624 = vrot.slane %v4623, 1
        %v4625 = vadd.f32 %v4623, %v4624
        %v4626 = vrot.slane %v4448, 4
        %v4627 = vadd.f32 %v4448, %v4626
        %v4628 = vrot.slane %v4627, 2
        %v4629 = vadd.f32 %v4627, %v4628
        %v4630 = vrot.slane %v4629, 1
        %v4631 = vadd.f32 %v4629, %v4630
        %v4632 = vrot.slane %v4449, 4
        %v4633 = vadd.f32 %v4449, %v4632
        %v4634 = vrot.slane %v4633, 2
        %v4635 = vadd.f32 %v4633, %v4634
        %v4636 = vrot.slane %v4635, 1
        %v4637 = vadd.f32 %v4635, %v4636
        %v4638 = vrot.slane %v4450, 4
        %v4639 = vadd.f32 %v4450, %v4638
        %v4640 = vrot.slane %v4639, 2
        %v4641 = vadd.f32 %v4639, %v4640
        %v4642 = vrot.slane %v4641, 1
        %v4643 = vadd.f32 %v4641, %v4642
        %v4644 = vrot.slane %v4451, 4
        %v4645 = vadd.f32 %v4451, %v4644
        %v4646 = vrot.slane %v4645, 2
        %v4647 = vadd.f32 %v4645, %v4646
        %v4648 = vrot.slane %v4647, 1
        %v4649 = vadd.f32 %v4647, %v4648
        %v4650 = vrot.slane %v4452, 4
        %v4651 = vadd.f32 %v4452, %v4650
        %v4652 = vrot.slane %v4651, 2
        %v4653 = vadd.f32 %v4651, %v4652
        %v4654 = vrot.slane %v4653, 1
        %v4655 = vadd.f32 %v4653, %v4654
        %v4656 = vrot.slane %v4453, 4
        %v4657 = vadd.f32 %v4453, %v4656
        %v4658 = vrot.slane %v4657, 2
        %v4659 = vadd.f32 %v4657, %v4658
        %v4660 = vrot.slane %v4659, 1
        %v4661 = vadd.f32 %v4659, %v4660
        %v4662 = vrot.slane %v4454, 4
        %v4663 = vadd.f32 %v4454, %v4662
        %v4664 = vrot.slane %v4663, 2
        %v4665 = vadd.f32 %v4663, %v4664
        %v4666 = vrot.slane %v4665, 1
        %v4667 = vadd.f32 %v4665, %v4666
        %v4668 = vrot.slane %v4455, 4
        %v4669 = vadd.f32 %v4455, %v4668
        %v4670 = vrot.slane %v4669, 2
        %v4671 = vadd.f32 %v4669, %v4670
        %v4672 = vrot.slane %v4671, 1
        %v4673 = vadd.f32 %v4671, %v4672
        %v4674 = vrot.slane %v4456, 4
        %v4675 = vadd.f32 %v4456, %v4674
        %v4676 = vrot.slane %v4675, 2
        %v4677 = vadd.f32 %v4675, %v4676
        %v4678 = vrot.slane %v4677, 1
        %v4679 = vadd.f32 %v4677, %v4678
        %v4680 = vrot.slane %v4457, 4
        %v4681 = vadd.f32 %v4457, %v4680
        %v4682 = vrot.slane %v4681, 2
        %v4683 = vadd.f32 %v4681, %v4682
        %v4684 = vrot.slane %v4683, 1
        %v4685 = vadd.f32 %v4683, %v4684
        %v4686 = vrot.slane %v4458, 4
        %v4687 = vadd.f32 %v4458, %v4686
        %v4688 = vrot.slane %v4687, 2
        %v4689 = vadd.f32 %v4687, %v4688
        %v4690 = vrot.slane %v4689, 1
        %v4691 = vadd.f32 %v4689, %v4690
        %v4692 = vrot.slane %v4459, 4
        %v4693 = vadd.f32 %v4459, %v4692
        %v4694 = vrot.slane %v4693, 2
        %v4695 = vadd.f32 %v4693, %v4694
        %v4696 = vrot.slane %v4695, 1
        %v4697 = vadd.f32 %v4695, %v4696
        %v4698 = vrot.slane %v4460, 4
        %v4699 = vadd.f32 %v4460, %v4698
        %v4700 = vrot.slane %v4699, 2
        %v4701 = vadd.f32 %v4699, %v4700
        %v4702 = vrot.slane %v4701, 1
        %v4703 = vadd.f32 %v4701, %v4702
        %v4704 = vrot.slane %v4461, 4
        %v4705 = vadd.f32 %v4461, %v4704
        %v4706 = vrot.slane %v4705, 2
        %v4707 = vadd.f32 %v4705, %v4706
        %v4708 = vrot.slane %v4707, 1
        %v4709 = vadd.f32 %v4707, %v4708
        %v4710 = vrot.slane %v4462, 4
        %v4711 = vadd.f32 %v4462, %v4710
        %v4712 = vrot.slane %v4711, 2
        %v4713 = vadd.f32 %v4711, %v4712
        %v4714 = vrot.slane %v4713, 1
        %v4715 = vadd.f32 %v4713, %v4714
        %v4716 = vrot.slane %v4463, 4
        %v4717 = vadd.f32 %v4463, %v4716
        %v4718 = vrot.slane %v4717, 2
        %v4719 = vadd.f32 %v4717, %v4718
        %v4720 = vrot.slane %v4719, 1
        %v4721 = vadd.f32 %v4719, %v4720
        %v4722 = vrot.slane %v4464, 4
        %v4723 = vadd.f32 %v4464, %v4722
        %v4724 = vrot.slane %v4723, 2
        %v4725 = vadd.f32 %v4723, %v4724
        %v4726 = vrot.slane %v4725, 1
        %v4727 = vadd.f32 %v4725, %v4726
        %v4728 = vrot.slane %v4465, 4
        %v4729 = vadd.f32 %v4465, %v4728
        %v4730 = vrot.slane %v4729, 2
        %v4731 = vadd.f32 %v4729, %v4730
        %v4732 = vrot.slane %v4731, 1
        %v4733 = vadd.f32 %v4731, %v4732
        %v4734 = vrot.slane %v4466, 4
        %v4735 = vadd.f32 %v4466, %v4734
        %v4736 = vrot.slane %v4735, 2
        %v4737 = vadd.f32 %v4735, %v4736
        %v4738 = vrot.slane %v4737, 1
        %v4739 = vadd.f32 %v4737, %v4738
        %v4740 = vrot.slane %v4467, 4
        %v4741 = vadd.f32 %v4467, %v4740
        %v4742 = vrot.slane %v4741, 2
        %v4743 = vadd.f32 %v4741, %v4742
        %v4744 = vrot.slane %v4743, 1
        %v4745 = vadd.f32 %v4743, %v4744
        %v4746 = vrot.slane %v4468, 4
        %v4747 = vadd.f32 %v4468, %v4746
        %v4748 = vrot.slane %v4747, 2
        %v4749 = vadd.f32 %v4747, %v4748
        %v4750 = vrot.slane %v4749, 1
        %v4751 = vadd.f32 %v4749, %v4750
        %v4752 = vrot.slane %v4469, 4
        %v4753 = vadd.f32 %v4469, %v4752
        %v4754 = vrot.slane %v4753, 2
        %v4755 = vadd.f32 %v4753, %v4754
        %v4756 = vrot.slane %v4755, 1
        %v4757 = vadd.f32 %v4755, %v4756
        %v4758 = vrot.slane %v4470, 4
        %v4759 = vadd.f32 %v4470, %v4758
        %v4760 = vrot.slane %v4759, 2
        %v4761 = vadd.f32 %v4759, %v4760
        %v4762 = vrot.slane %v4761, 1
        %v4763 = vadd.f32 %v4761, %v4762
        %v4764 = vrot.slane %v4471, 4
        %v4765 = vadd.f32 %v4471, %v4764
        %v4766 = vrot.slane %v4765, 2
        %v4767 = vadd.f32 %v4765, %v4766
        %v4768 = vrot.slane %v4767, 1
        %v4769 = vadd.f32 %v4767, %v4768
        %v4770 = vrot.slane %v4472, 4
        %v4771 = vadd.f32 %v4472, %v4770
        %v4772 = vrot.slane %v4771, 2
        %v4773 = vadd.f32 %v4771, %v4772
        %v4774 = vrot.slane %v4773, 1
        %v4775 = vadd.f32 %v4773, %v4774
        %v4776 = vrot.slane %v4473, 4
        %v4777 = vadd.f32 %v4473, %v4776
        %v4778 = vrot.slane %v4777, 2
        %v4779 = vadd.f32 %v4777, %v4778
        %v4780 = vrot.slane %v4779, 1
        %v4781 = vadd.f32 %v4779, %v4780
        %v4782 = vrot.slane %v4474, 4
        %v4783 = vadd.f32 %v4474, %v4782
        %v4784 = vrot.slane %v4783, 2
        %v4785 = vadd.f32 %v4783, %v4784
        %v4786 = vrot.slane %v4785, 1
        %v4787 = vadd.f32 %v4785, %v4786
        %v4788 = vrot.slane %v4475, 4
        %v4789 = vadd.f32 %v4475, %v4788
        %v4790 = vrot.slane %v4789, 2
        %v4791 = vadd.f32 %v4789, %v4790
        %v4792 = vrot.slane %v4791, 1
        %v4793 = vadd.f32 %v4791, %v4792
        %v4794 = vrot.slane %v4476, 4
        %v4795 = vadd.f32 %v4476, %v4794
        %v4796 = vrot.slane %v4795, 2
        %v4797 = vadd.f32 %v4795, %v4796
        %v4798 = vrot.slane %v4797, 1
        %v4799 = vadd.f32 %v4797, %v4798
        %v4800 = vrot.slane %v4477, 4
        %v4801 = vadd.f32 %v4477, %v4800
        %v4802 = vrot.slane %v4801, 2
        %v4803 = vadd.f32 %v4801, %v4802
        %v4804 = vrot.slane %v4803, 1
        %v4805 = vadd.f32 %v4803, %v4804
        %v4806 = vrot.slane %v4478, 4
        %v4807 = vadd.f32 %v4478, %v4806
        %v4808 = vrot.slane %v4807, 2
        %v4809 = vadd.f32 %v4807, %v4808
        %v4810 = vrot.slane %v4809, 1
        %v4811 = vadd.f32 %v4809, %v4810
        %v4812 = vrot.slane %v4479, 4
        %v4813 = vadd.f32 %v4479, %v4812
        %v4814 = vrot.slane %v4813, 2
        %v4815 = vadd.f32 %v4813, %v4814
        %v4816 = vrot.slane %v4815, 1
        %v4817 = vadd.f32 %v4815, %v4816
        %v4818 = vrot.slane %v4480, 4
        %v4819 = vadd.f32 %v4480, %v4818
        %v4820 = vrot.slane %v4819, 2
        %v4821 = vadd.f32 %v4819, %v4820
        %v4822 = vrot.slane %v4821, 1
        %v4823 = vadd.f32 %v4821, %v4822
        %v4824 = vrot.slane %v4481, 4
        %v4825 = vadd.f32 %v4481, %v4824
        %v4826 = vrot.slane %v4825, 2
        %v4827 = vadd.f32 %v4825, %v4826
        %v4828 = vrot.slane %v4827, 1
        %v4829 = vadd.f32 %v4827, %v4828
        %v4830 = vrot.slane %v4482, 4
        %v4831 = vadd.f32 %v4482, %v4830
        %v4832 = vrot.slane %v4831, 2
        %v4833 = vadd.f32 %v4831, %v4832
        %v4834 = vrot.slane %v4833, 1
        %v4835 = vadd.f32 %v4833, %v4834
        %v4836 = vrot.slane %v4483, 4
        %v4837 = vadd.f32 %v4483, %v4836
        %v4838 = vrot.slane %v4837, 2
        %v4839 = vadd.f32 %v4837, %v4838
        %v4840 = vrot.slane %v4839, 1
        %v4841 = vadd.f32 %v4839, %v4840
        %v4842 = vrot.slane %v4484, 4
        %v4843 = vadd.f32 %v4484, %v4842
        %v4844 = vrot.slane %v4843, 2
        %v4845 = vadd.f32 %v4843, %v4844
        %v4846 = vrot.slane %v4845, 1
        %v4847 = vadd.f32 %v4845, %v4846
        %v4848 = vrot.slane %v4485, 4
        %v4849 = vadd.f32 %v4485, %v4848
        %v4850 = vrot.slane %v4849, 2
        %v4851 = vadd.f32 %v4849, %v4850
        %v4852 = vrot.slane %v4851, 1
        %v4853 = vadd.f32 %v4851, %v4852
        %v4854 = vrot.slane %v4486, 4
        %v4855 = vadd.f32 %v4486, %v4854
        %v4856 = vrot.slane %v4855, 2
        %v4857 = vadd.f32 %v4855, %v4856
        %v4858 = vrot.slane %v4857, 1
        %v4859 = vadd.f32 %v4857, %v4858
        %v4860 = vrot.slane %v4487, 4
        %v4861 = vadd.f32 %v4487, %v4860
        %v4862 = vrot.slane %v4861, 2
        %v4863 = vadd.f32 %v4861, %v4862
        %v4864 = vrot.slane %v4863, 1
        %v4865 = vadd.f32 %v4863, %v4864
        %v4866 = vrot.slane %v4488, 4
        %v4867 = vadd.f32 %v4488, %v4866
        %v4868 = vrot.slane %v4867, 2
        %v4869 = vadd.f32 %v4867, %v4868
        %v4870 = vrot.slane %v4869, 1
        %v4871 = vadd.f32 %v4869, %v4870
        %v4872 = vrot.slane %v4489, 4
        %v4873 = vadd.f32 %v4489, %v4872
        %v4874 = vrot.slane %v4873, 2
        %v4875 = vadd.f32 %v4873, %v4874
        %v4876 = vrot.slane %v4875, 1
        %v4877 = vadd.f32 %v4875, %v4876
        %v4878 = vrot.slane %v4490, 4
        %v4879 = vadd.f32 %v4490, %v4878
        %v4880 = vrot.slane %v4879, 2
        %v4881 = vadd.f32 %v4879, %v4880
        %v4882 = vrot.slane %v4881, 1
        %v4883 = vadd.f32 %v4881, %v4882
        %v4884 = vrot.slane %v4491, 4
        %v4885 = vadd.f32 %v4491, %v4884
        %v4886 = vrot.slane %v4885, 2
        %v4887 = vadd.f32 %v4885, %v4886
        %v4888 = vrot.slane %v4887, 1
        %v4889 = vadd.f32 %v4887, %v4888
        %v4890 = vrot.slane %v4492, 4
        %v4891 = vadd.f32 %v4492, %v4890
        %v4892 = vrot.slane %v4891, 2
        %v4893 = vadd.f32 %v4891, %v4892
        %v4894 = vrot.slane %v4893, 1
        %v4895 = vadd.f32 %v4893, %v4894
        %v4896 = vrot.slane %v4493, 4
        %v4897 = vadd.f32 %v4493, %v4896
        %v4898 = vrot.slane %v4897, 2
        %v4899 = vadd.f32 %v4897, %v4898
        %v4900 = vrot.slane %v4899, 1
        %v4901 = vadd.f32 %v4899, %v4900
        %v4902 = vrot.slane %v4494, 4
        %v4903 = vadd.f32 %v4494, %v4902
        %v4904 = vrot.slane %v4903, 2
        %v4905 = vadd.f32 %v4903, %v4904
        %v4906 = vrot.slane %v4905, 1
        %v4907 = vadd.f32 %v4905, %v4906
        %v4908 = vrot.slane %v4495, 4
        %v4909 = vadd.f32 %v4495, %v4908
        %v4910 = vrot.slane %v4909, 2
        %v4911 = vadd.f32 %v4909, %v4910
        %v4912 = vrot.slane %v4911, 1
        %v4913 = vadd.f32 %v4911, %v4912
        %v4914 = vrot.slane %v4496, 4
        %v4915 = vadd.f32 %v4496, %v4914
        %v4916 = vrot.slane %v4915, 2
        %v4917 = vadd.f32 %v4915, %v4916
        %v4918 = vrot.slane %v4917, 1
        %v4919 = vadd.f32 %v4917, %v4918
        %v4920 = vrot.slane %v4497, 4
        %v4921 = vadd.f32 %v4497, %v4920
        %v4922 = vrot.slane %v4921, 2
        %v4923 = vadd.f32 %v4921, %v4922
        %v4924 = vrot.slane %v4923, 1
        %v4925 = vadd.f32 %v4923, %v4924
        %v4926 = vrot.slane %v4498, 4
        %v4927 = vadd.f32 %v4498, %v4926
        %v4928 = vrot.slane %v4927, 2
        %v4929 = vadd.f32 %v4927, %v4928
        %v4930 = vrot.slane %v4929, 1
        %v4931 = vadd.f32 %v4929, %v4930
        %v4932 = vrot.slane %v4499, 4
        %v4933 = vadd.f32 %v4499, %v4932
        %v4934 = vrot.slane %v4933, 2
        %v4935 = vadd.f32 %v4933, %v4934
        %v4936 = vrot.slane %v4935, 1
        %v4937 = vadd.f32 %v4935, %v4936
        %v4938 = vrot.slane %v4500, 4
        %v4939 = vadd.f32 %v4500, %v4938
        %v4940 = vrot.slane %v4939, 2
        %v4941 = vadd.f32 %v4939, %v4940
        %v4942 = vrot.slane %v4941, 1
        %v4943 = vadd.f32 %v4941, %v4942
        %v4944 = vrot.slane %v4501, 4
        %v4945 = vadd.f32 %v4501, %v4944
        %v4946 = vrot.slane %v4945, 2
        %v4947 = vadd.f32 %v4945, %v4946
        %v4948 = vrot.slane %v4947, 1
        %v4949 = vadd.f32 %v4947, %v4948
        %v4950 = vrot.slane %v4502, 4
        %v4951 = vadd.f32 %v4502, %v4950
        %v4952 = vrot.slane %v4951, 2
        %v4953 = vadd.f32 %v4951, %v4952
        %v4954 = vrot.slane %v4953, 1
        %v4955 = vadd.f32 %v4953, %v4954
        %v4956 = vrot.slane %v4503, 4
        %v4957 = vadd.f32 %v4503, %v4956
        %v4958 = vrot.slane %v4957, 2
        %v4959 = vadd.f32 %v4957, %v4958
        %v4960 = vrot.slane %v4959, 1
        %v4961 = vadd.f32 %v4959, %v4960
        %v4962 = vrot.slane %v4504, 4
        %v4963 = vadd.f32 %v4504, %v4962
        %v4964 = vrot.slane %v4963, 2
        %v4965 = vadd.f32 %v4963, %v4964
        %v4966 = vrot.slane %v4965, 1
        %v4967 = vadd.f32 %v4965, %v4966
        %v4968 = vrot.slane %v4505, 4
        %v4969 = vadd.f32 %v4505, %v4968
        %v4970 = vrot.slane %v4969, 2
        %v4971 = vadd.f32 %v4969, %v4970
        %v4972 = vrot.slane %v4971, 1
        %v4973 = vadd.f32 %v4971, %v4972
        %v4974 = vrot.slane %v4506, 4
        %v4975 = vadd.f32 %v4506, %v4974
        %v4976 = vrot.slane %v4975, 2
        %v4977 = vadd.f32 %v4975, %v4976
        %v4978 = vrot.slane %v4977, 1
        %v4979 = vadd.f32 %v4977, %v4978
        %v4980 = vrot.slane %v4507, 4
        %v4981 = vadd.f32 %v4507, %v4980
        %v4982 = vrot.slane %v4981, 2
        %v4983 = vadd.f32 %v4981, %v4982
        %v4984 = vrot.slane %v4983, 1
        %v4985 = vadd.f32 %v4983, %v4984
        %v4986 = vrot.slane %v4508, 4
        %v4987 = vadd.f32 %v4508, %v4986
        %v4988 = vrot.slane %v4987, 2
        %v4989 = vadd.f32 %v4987, %v4988
        %v4990 = vrot.slane %v4989, 1
        %v4991 = vadd.f32 %v4989, %v4990
        %v4992 = vrot.slane %v4509, 4
        %v4993 = vadd.f32 %v4509, %v4992
        %v4994 = vrot.slane %v4993, 2
        %v4995 = vadd.f32 %v4993, %v4994
        %v4996 = vrot.slane %v4995, 1
        %v4997 = vadd.f32 %v4995, %v4996
        %v4998 = vrot.slane %v4510, 4
        %v4999 = vadd.f32 %v4510, %v4998
        %v5000 = vrot.slane %v4999, 2
        %v5001 = vadd.f32 %v4999, %v5000
        %v5002 = vrot.slane %v5001, 1
        %v5003 = vadd.f32 %v5001, %v5002
        %v5004 = vrot.slane %v4511, 4
        %v5005 = vadd.f32 %v4511, %v5004
        %v5006 = vrot.slane %v5005, 2
        %v5007 = vadd.f32 %v5005, %v5006
        %v5008 = vrot.slane %v5007, 1
        %v5009 = vadd.f32 %v5007, %v5008
        %v5010 = vrot.slane %v4512, 4
        %v5011 = vadd.f32 %v4512, %v5010
        %v5012 = vrot.slane %v5011, 2
        %v5013 = vadd.f32 %v5011, %v5012
        %v5014 = vrot.slane %v5013, 1
        %v5015 = vadd.f32 %v5013, %v5014
        %v5016 = vrot.slane %v4513, 4
        %v5017 = vadd.f32 %v4513, %v5016
        %v5018 = vrot.slane %v5017, 2
        %v5019 = vadd.f32 %v5017, %v5018
        %v5020 = vrot.slane %v5019, 1
        %v5021 = vadd.f32 %v5019, %v5020
        %v5022 = vrot.slane %v4514, 4
        %v5023 = vadd.f32 %v4514, %v5022
        %v5024 = vrot.slane %v5023, 2
        %v5025 = vadd.f32 %v5023, %v5024
        %v5026 = vrot.slane %v5025, 1
        %v5027 = vadd.f32 %v5025, %v5026
        %v5028 = vrot.slane %v4515, 4
        %v5029 = vadd.f32 %v4515, %v5028
        %v5030 = vrot.slane %v5029, 2
        %v5031 = vadd.f32 %v5029, %v5030
        %v5032 = vrot.slane %v5031, 1
        %v5033 = vadd.f32 %v5031, %v5032
        %v5034 = vrot.slane %v4516, 4
        %v5035 = vadd.f32 %v4516, %v5034
        %v5036 = vrot.slane %v5035, 2
        %v5037 = vadd.f32 %v5035, %v5036
        %v5038 = vrot.slane %v5037, 1
        %v5039 = vadd.f32 %v5037, %v5038
        %v5040 = vrot.slane %v4517, 4
        %v5041 = vadd.f32 %v4517, %v5040
        %v5042 = vrot.slane %v5041, 2
        %v5043 = vadd.f32 %v5041, %v5042
        %v5044 = vrot.slane %v5043, 1
        %v5045 = vadd.f32 %v5043, %v5044
        %v5046 = vrot.slane %v4518, 4
        %v5047 = vadd.f32 %v4518, %v5046
        %v5048 = vrot.slane %v5047, 2
        %v5049 = vadd.f32 %v5047, %v5048
        %v5050 = vrot.slane %v5049, 1
        %v5051 = vadd.f32 %v5049, %v5050
        %v5052 = vrot.slane %v4519, 4
        %v5053 = vadd.f32 %v4519, %v5052
        %v5054 = vrot.slane %v5053, 2
        %v5055 = vadd.f32 %v5053, %v5054
        %v5056 = vrot.slane %v5055, 1
        %v5057 = vadd.f32 %v5055, %v5056
        %v5058 = vrot.slane %v4520, 4
        %v5059 = vadd.f32 %v4520, %v5058
        %v5060 = vrot.slane %v5059, 2
        %v5061 = vadd.f32 %v5059, %v5060
        %v5062 = vrot.slane %v5061, 1
        %v5063 = vadd.f32 %v5061, %v5062
        %v5064 = vrot.slane %v4521, 4
        %v5065 = vadd.f32 %v4521, %v5064
        %v5066 = vrot.slane %v5065, 2
        %v5067 = vadd.f32 %v5065, %v5066
        %v5068 = vrot.slane %v5067, 1
        %v5069 = vadd.f32 %v5067, %v5068
        %v5070 = vrot.slane %v4522, 4
        %v5071 = vadd.f32 %v4522, %v5070
        %v5072 = vrot.slane %v5071, 2
        %v5073 = vadd.f32 %v5071, %v5072
        %v5074 = vrot.slane %v5073, 1
        %v5075 = vadd.f32 %v5073, %v5074
        %v5076 = vrot.slane %v4523, 4
        %v5077 = vadd.f32 %v4523, %v5076
        %v5078 = vrot.slane %v5077, 2
        %v5079 = vadd.f32 %v5077, %v5078
        %v5080 = vrot.slane %v5079, 1
        %v5081 = vadd.f32 %v5079, %v5080
        %v5082 = vrot.slane %v4524, 4
        %v5083 = vadd.f32 %v4524, %v5082
        %v5084 = vrot.slane %v5083, 2
        %v5085 = vadd.f32 %v5083, %v5084
        %v5086 = vrot.slane %v5085, 1
        %v5087 = vadd.f32 %v5085, %v5086
        %v5088 = vrot.slane %v4525, 4
        %v5089 = vadd.f32 %v4525, %v5088
        %v5090 = vrot.slane %v5089, 2
        %v5091 = vadd.f32 %v5089, %v5090
        %v5092 = vrot.slane %v5091, 1
        %v5093 = vadd.f32 %v5091, %v5092
        %v5094 = vrot.slane %v4526, 4
        %v5095 = vadd.f32 %v4526, %v5094
        %v5096 = vrot.slane %v5095, 2
        %v5097 = vadd.f32 %v5095, %v5096
        %v5098 = vrot.slane %v5097, 1
        %v5099 = vadd.f32 %v5097, %v5098
        %v5100 = vrot.slane %v4527, 4
        %v5101 = vadd.f32 %v4527, %v5100
        %v5102 = vrot.slane %v5101, 2
        %v5103 = vadd.f32 %v5101, %v5102
        %v5104 = vrot.slane %v5103, 1
        %v5105 = vadd.f32 %v5103, %v5104
        %v5106 = vrot.slane %v4528, 4
        %v5107 = vadd.f32 %v4528, %v5106
        %v5108 = vrot.slane %v5107, 2
        %v5109 = vadd.f32 %v5107, %v5108
        %v5110 = vrot.slane %v5109, 1
        %v5111 = vadd.f32 %v5109, %v5110
        %v5112 = vrot.slane %v4529, 4
        %v5113 = vadd.f32 %v4529, %v5112
        %v5114 = vrot.slane %v5113, 2
        %v5115 = vadd.f32 %v5113, %v5114
        %v5116 = vrot.slane %v5115, 1
        %v5117 = vadd.f32 %v5115, %v5116
        %v5118 = vrot.slane %v4530, 4
        %v5119 = vadd.f32 %v4530, %v5118
        %v5120 = vrot.slane %v5119, 2
        %v5121 = vadd.f32 %v5119, %v5120
        %v5122 = vrot.slane %v5121, 1
        %v5123 = vadd.f32 %v5121, %v5122
        %v5124 = vrot.slane %v4531, 4
        %v5125 = vadd.f32 %v4531, %v5124
        %v5126 = vrot.slane %v5125, 2
        %v5127 = vadd.f32 %v5125, %v5126
        %v5128 = vrot.slane %v5127, 1
        %v5129 = vadd.f32 %v5127, %v5128
        %v5130 = vrot.slane %v4532, 4
        %v5131 = vadd.f32 %v4532, %v5130
        %v5132 = vrot.slane %v5131, 2
        %v5133 = vadd.f32 %v5131, %v5132
        %v5134 = vrot.slane %v5133, 1
        %v5135 = vadd.f32 %v5133, %v5134
        %v5136 = vrot.slane %v4533, 4
        %v5137 = vadd.f32 %v4533, %v5136
        %v5138 = vrot.slane %v5137, 2
        %v5139 = vadd.f32 %v5137, %v5138
        %v5140 = vrot.slane %v5139, 1
        %v5141 = vadd.f32 %v5139, %v5140
        %v5142 = vrot.slane %v4534, 4
        %v5143 = vadd.f32 %v4534, %v5142
        %v5144 = vrot.slane %v5143, 2
        %v5145 = vadd.f32 %v5143, %v5144
        %v5146 = vrot.slane %v5145, 1
        %v5147 = vadd.f32 %v5145, %v5146
        %v5148 = vrot.slane %v4535, 4
        %v5149 = vadd.f32 %v4535, %v5148
        %v5150 = vrot.slane %v5149, 2
        %v5151 = vadd.f32 %v5149, %v5150
        %v5152 = vrot.slane %v5151, 1
        %v5153 = vadd.f32 %v5151, %v5152
        %v5154 = vrot.slane %v4536, 4
        %v5155 = vadd.f32 %v4536, %v5154
        %v5156 = vrot.slane %v5155, 2
        %v5157 = vadd.f32 %v5155, %v5156
        %v5158 = vrot.slane %v5157, 1
        %v5159 = vadd.f32 %v5157, %v5158
        %v5160 = vrot.slane %v4537, 4
        %v5161 = vadd.f32 %v4537, %v5160
        %v5162 = vrot.slane %v5161, 2
        %v5163 = vadd.f32 %v5161, %v5162
        %v5164 = vrot.slane %v5163, 1
        %v5165 = vadd.f32 %v5163, %v5164
        %v5166 = vrot.slane %v4538, 4
        %v5167 = vadd.f32 %v4538, %v5166
        %v5168 = vrot.slane %v5167, 2
        %v5169 = vadd.f32 %v5167, %v5168
        %v5170 = vrot.slane %v5169, 1
        %v5171 = vadd.f32 %v5169, %v5170
        %v5172 = vrot.slane %v4539, 4
        %v5173 = vadd.f32 %v4539, %v5172
        %v5174 = vrot.slane %v5173, 2
        %v5175 = vadd.f32 %v5173, %v5174
        %v5176 = vrot.slane %v5175, 1
        %v5177 = vadd.f32 %v5175, %v5176
        %v5178 = vrot.slane %v4540, 4
        %v5179 = vadd.f32 %v4540, %v5178
        %v5180 = vrot.slane %v5179, 2
        %v5181 = vadd.f32 %v5179, %v5180
        %v5182 = vrot.slane %v5181, 1
        %v5183 = vadd.f32 %v5181, %v5182
        %v5184 = vrot.slane %v4541, 4
        %v5185 = vadd.f32 %v4541, %v5184
        %v5186 = vrot.slane %v5185, 2
        %v5187 = vadd.f32 %v5185, %v5186
        %v5188 = vrot.slane %v5187, 1
        %v5189 = vadd.f32 %v5187, %v5188
        %v5190 = vrot.slane %v4542, 4
        %v5191 = vadd.f32 %v4542, %v5190
        %v5192 = vrot.slane %v5191, 2
        %v5193 = vadd.f32 %v5191, %v5192
        %v5194 = vrot.slane %v5193, 1
        %v5195 = vadd.f32 %v5193, %v5194
        %v5196 = vrot.slane %v4543, 4
        %v5197 = vadd.f32 %v4543, %v5196
        %v5198 = vrot.slane %v5197, 2
        %v5199 = vadd.f32 %v5197, %v5198
        %v5200 = vrot.slane %v5199, 1
        %v5201 = vadd.f32 %v5199, %v5200
        %v5202 = vrot.slane %v4544, 4
        %v5203 = vadd.f32 %v4544, %v5202
        %v5204 = vrot.slane %v5203, 2
        %v5205 = vadd.f32 %v5203, %v5204
        %v5206 = vrot.slane %v5205, 1
        %v5207 = vadd.f32 %v5205, %v5206
        %v5208 = vrot.slane %v4545, 4
        %v5209 = vadd.f32 %v4545, %v5208
        %v5210 = vrot.slane %v5209, 2
        %v5211 = vadd.f32 %v5209, %v5210
        %v5212 = vrot.slane %v5211, 1
        %v5213 = vadd.f32 %v5211, %v5212
        %v5214 = vrot.slane %v4546, 4
        %v5215 = vadd.f32 %v4546, %v5214
        %v5216 = vrot.slane %v5215, 2
        %v5217 = vadd.f32 %v5215, %v5216
        %v5218 = vrot.slane %v5217, 1
        %v5219 = vadd.f32 %v5217, %v5218
        %v5220 = vrot.slane %v4547, 4
        %v5221 = vadd.f32 %v4547, %v5220
        %v5222 = vrot.slane %v5221, 2
        %v5223 = vadd.f32 %v5221, %v5222
        %v5224 = vrot.slane %v5223, 1
        %v5225 = vadd.f32 %v5223, %v5224
        %v5226 = vrot.slane %v4548, 4
        %v5227 = vadd.f32 %v4548, %v5226
        %v5228 = vrot.slane %v5227, 2
        %v5229 = vadd.f32 %v5227, %v5228
        %v5230 = vrot.slane %v5229, 1
        %v5231 = vadd.f32 %v5229, %v5230
        %v5232 = vrot.slane %v4549, 4
        %v5233 = vadd.f32 %v4549, %v5232
        %v5234 = vrot.slane %v5233, 2
        %v5235 = vadd.f32 %v5233, %v5234
        %v5236 = vrot.slane %v5235, 1
        %v5237 = vadd.f32 %v5235, %v5236
        %v5238 = vrot.slane %v4550, 4
        %v5239 = vadd.f32 %v4550, %v5238
        %v5240 = vrot.slane %v5239, 2
        %v5241 = vadd.f32 %v5239, %v5240
        %v5242 = vrot.slane %v5241, 1
        %v5243 = vadd.f32 %v5241, %v5242
        %v5244 = vrot.slane %v4551, 4
        %v5245 = vadd.f32 %v4551, %v5244
        %v5246 = vrot.slane %v5245, 2
        %v5247 = vadd.f32 %v5245, %v5246
        %v5248 = vrot.slane %v5247, 1
        %v5249 = vadd.f32 %v5247, %v5248
        %v5250 = vrot.slane %v4552, 4
        %v5251 = vadd.f32 %v4552, %v5250
        %v5252 = vrot.slane %v5251, 2
        %v5253 = vadd.f32 %v5251, %v5252
        %v5254 = vrot.slane %v5253, 1
        %v5255 = vadd.f32 %v5253, %v5254
        %v5256 = vrot.slane %v4553, 4
        %v5257 = vadd.f32 %v4553, %v5256
        %v5258 = vrot.slane %v5257, 2
        %v5259 = vadd.f32 %v5257, %v5258
        %v5260 = vrot.slane %v5259, 1
        %v5261 = vadd.f32 %v5259, %v5260
        %v5262 = vrot.slane %v4554, 4
        %v5263 = vadd.f32 %v4554, %v5262
        %v5264 = vrot.slane %v5263, 2
        %v5265 = vadd.f32 %v5263, %v5264
        %v5266 = vrot.slane %v5265, 1
        %v5267 = vadd.f32 %v5265, %v5266
        %v5268 = vrot.slane %v4555, 4
        %v5269 = vadd.f32 %v4555, %v5268
        %v5270 = vrot.slane %v5269, 2
        %v5271 = vadd.f32 %v5269, %v5270
        %v5272 = vrot.slane %v5271, 1
        %v5273 = vadd.f32 %v5271, %v5272
        %v5274 = vrot.slane %v4556, 4
        %v5275 = vadd.f32 %v4556, %v5274
        %v5276 = vrot.slane %v5275, 2
        %v5277 = vadd.f32 %v5275, %v5276
        %v5278 = vrot.slane %v5277, 1
        %v5279 = vadd.f32 %v5277, %v5278
        %v5280 = vrot.slane %v4557, 4
        %v5281 = vadd.f32 %v4557, %v5280
        %v5282 = vrot.slane %v5281, 2
        %v5283 = vadd.f32 %v5281, %v5282
        %v5284 = vrot.slane %v5283, 1
        %v5285 = vadd.f32 %v5283, %v5284
        %v5286 = vrot.slane %v4558, 4
        %v5287 = vadd.f32 %v4558, %v5286
        %v5288 = vrot.slane %v5287, 2
        %v5289 = vadd.f32 %v5287, %v5288
        %v5290 = vrot.slane %v5289, 1
        %v5291 = vadd.f32 %v5289, %v5290
        %v5292 = vrot.slane %v4559, 4
        %v5293 = vadd.f32 %v4559, %v5292
        %v5294 = vrot.slane %v5293, 2
        %v5295 = vadd.f32 %v5293, %v5294
        %v5296 = vrot.slane %v5295, 1
        %v5297 = vadd.f32 %v5295, %v5296
        %v5298 = vrot.slane %v4560, 4
        %v5299 = vadd.f32 %v4560, %v5298
        %v5300 = vrot.slane %v5299, 2
        %v5301 = vadd.f32 %v5299, %v5300
        %v5302 = vrot.slane %v5301, 1
        %v5303 = vadd.f32 %v5301, %v5302
        %v5304 = vrot.slane %v4561, 4
        %v5305 = vadd.f32 %v4561, %v5304
        %v5306 = vrot.slane %v5305, 2
        %v5307 = vadd.f32 %v5305, %v5306
        %v5308 = vrot.slane %v5307, 1
        %v5309 = vadd.f32 %v5307, %v5308
        %v5310 = vrot.slane %v4562, 4
        %v5311 = vadd.f32 %v4562, %v5310
        %v5312 = vrot.slane %v5311, 2
        %v5313 = vadd.f32 %v5311, %v5312
        %v5314 = vrot.slane %v5313, 1
        %v5315 = vadd.f32 %v5313, %v5314
        %v5316 = vrot.slane %v4563, 4
        %v5317 = vadd.f32 %v4563, %v5316
        %v5318 = vrot.slane %v5317, 2
        %v5319 = vadd.f32 %v5317, %v5318
        %v5320 = vrot.slane %v5319, 1
        %v5321 = vadd.f32 %v5319, %v5320
        %v5322 = vrot.slane %v4564, 4
        %v5323 = vadd.f32 %v4564, %v5322
        %v5324 = vrot.slane %v5323, 2
        %v5325 = vadd.f32 %v5323, %v5324
        %v5326 = vrot.slane %v5325, 1
        %v5327 = vadd.f32 %v5325, %v5326
        %v5328 = vrot.slane %v4565, 4
        %v5329 = vadd.f32 %v4565, %v5328
        %v5330 = vrot.slane %v5329, 2
        %v5331 = vadd.f32 %v5329, %v5330
        %v5332 = vrot.slane %v5331, 1
        %v5333 = vadd.f32 %v5331, %v5332
        %vm5462 = vcmask 1041409
        %v5463 = vsel %vm5462, %v4583, %v4571
        %vm5464 = vcmask 1042434
        %v5465 = vsel %vm5464, %v4595, %v5463
        %vm5466 = vcmask 1043459
        %v5467 = vsel %vm5466, %v4607, %v5465
        %vm5468 = vcmask 1044484
        %v5469 = vsel %vm5468, %v4619, %v5467
        %vm5470 = vcmask 1045509
        %v5471 = vsel %vm5470, %v4631, %v5469
        %vm5472 = vcmask 1046534
        %v5473 = vsel %vm5472, %v4643, %v5471
        %vm5474 = vcmask 1047559
        %v5475 = vsel %vm5474, %v4655, %v5473
        %v5476 = vsel %vm5462, %v4589, %v4577
        %v5477 = vsel %vm5464, %v4601, %v5476
        %v5478 = vsel %vm5466, %v4613, %v5477
        %v5479 = vsel %vm5468, %v4625, %v5478
        %v5480 = vsel %vm5470, %v4637, %v5479
        %v5481 = vsel %vm5472, %v4649, %v5480
        %v5482 = vsel %vm5474, %v4661, %v5481
        %v5483 = vsel %vm5462, %v4679, %v4667
        %v5484 = vsel %vm5464, %v4691, %v5483
        %v5485 = vsel %vm5466, %v4703, %v5484
        %v5486 = vsel %vm5468, %v4715, %v5485
        %v5487 = vsel %vm5470, %v4727, %v5486
        %v5488 = vsel %vm5472, %v4739, %v5487
        %v5489 = vsel %vm5474, %v4751, %v5488
        %v5490 = vsel %vm5462, %v4685, %v4673
        %v5491 = vsel %vm5464, %v4697, %v5490
        %v5492 = vsel %vm5466, %v4709, %v5491
        %v5493 = vsel %vm5468, %v4721, %v5492
        %v5494 = vsel %vm5470, %v4733, %v5493
        %v5495 = vsel %vm5472, %v4745, %v5494
        %v5496 = vsel %vm5474, %v4757, %v5495
        %v5497 = vsel %vm5462, %v4775, %v4763
        %v5498 = vsel %vm5464, %v4787, %v5497
        %v5499 = vsel %vm5466, %v4799, %v5498
        %v5500 = vsel %vm5468, %v4811, %v5499
        %v5501 = vsel %vm5470, %v4823, %v5500
        %v5502 = vsel %vm5472, %v4835, %v5501
        %v5503 = vsel %vm5474, %v4847, %v5502
        %v5504 = vsel %vm5462, %v4781, %v4769
        %v5505 = vsel %vm5464, %v4793, %v5504
        %v5506 = vsel %vm5466, %v4805, %v5505
        %v5507 = vsel %vm5468, %v4817, %v5506
        %v5508 = vsel %vm5470, %v4829, %v5507
        %v5509 = vsel %vm5472, %v4841, %v5508
        %v5510 = vsel %vm5474, %v4853, %v5509
        %v5511 = vsel %vm5462, %v4871, %v4859
        %v5512 = vsel %vm5464, %v4883, %v5511
        %v5513 = vsel %vm5466, %v4895, %v5512
        %v5514 = vsel %vm5468, %v4907, %v5513
        %v5515 = vsel %vm5470, %v4919, %v5514
        %v5516 = vsel %vm5472, %v4931, %v5515
        %v5517 = vsel %vm5474, %v4943, %v5516
        %v5518 = vsel %vm5462, %v4877, %v4865
        %v5519 = vsel %vm5464, %v4889, %v5518
        %v5520 = vsel %vm5466, %v4901, %v5519
        %v5521 = vsel %vm5468, %v4913, %v5520
        %v5522 = vsel %vm5470, %v4925, %v5521
        %v5523 = vsel %vm5472, %v4937, %v5522
        %v5524 = vsel %vm5474, %v4949, %v5523
        %v5525 = vsel %vm5462, %v4967, %v4955
        %v5526 = vsel %vm5464, %v4979, %v5525
        %v5527 = vsel %vm5466, %v4991, %v5526
        %v5528 = vsel %vm5468, %v5003, %v5527
        %v5529 = vsel %vm5470, %v5015, %v5528
        %v5530 = vsel %vm5472, %v5027, %v5529
        %v5531 = vsel %vm5474, %v5039, %v5530
        %v5532 = vsel %vm5462, %v4973, %v4961
        %v5533 = vsel %vm5464, %v4985, %v5532
        %v5534 = vsel %vm5466, %v4997, %v5533
        %v5535 = vsel %vm5468, %v5009, %v5534
        %v5536 = vsel %vm5470, %v5021, %v5535
        %v5537 = vsel %vm5472, %v5033, %v5536
        %v5538 = vsel %vm5474, %v5045, %v5537
        %v5539 = vsel %vm5462, %v5063, %v5051
        %v5540 = vsel %vm5464, %v5075, %v5539
        %v5541 = vsel %vm5466, %v5087, %v5540
        %v5542 = vsel %vm5468, %v5099, %v5541
        %v5543 = vsel %vm5470, %v5111, %v5542
        %v5544 = vsel %vm5472, %v5123, %v5543
        %v5545 = vsel %vm5474, %v5135, %v5544
        %v5546 = vsel %vm5462, %v5069, %v5057
        %v5547 = vsel %vm5464, %v5081, %v5546
        %v5548 = vsel %vm5466, %v5093, %v5547
        %v5549 = vsel %vm5468, %v5105, %v5548
        %v5550 = vsel %vm5470, %v5117, %v5549
        %v5551 = vsel %vm5472, %v5129, %v5550
        %v5552 = vsel %vm5474, %v5141, %v5551
        %v5553 = vsel %vm5462, %v5159, %v5147
        %v5554 = vsel %vm5464, %v5171, %v5553
        %v5555 = vsel %vm5466, %v5183, %v5554
        %v5556 = vsel %vm5468, %v5195, %v5555
        %v5557 = vsel %vm5470, %v5207, %v5556
        %v5558 = vsel %vm5472, %v5219, %v5557
        %v5559 = vsel %vm5474, %v5231, %v5558
        %v5560 = vsel %vm5462, %v5165, %v5153
        %v5561 = vsel %vm5464, %v5177, %v5560
        %v5562 = vsel %vm5466, %v5189, %v5561
        %v5563 = vsel %vm5468, %v5201, %v5562
        %v5564 = vsel %vm5470, %v5213, %v5563
        %v5565 = vsel %vm5472, %v5225, %v5564
        %v5566 = vsel %vm5474, %v5237, %v5565
        %v5567 = vsel %vm5462, %v5255, %v5243
        %v5568 = vsel %vm5464, %v5267, %v5567
        %v5569 = vsel %vm5466, %v5279, %v5568
        %v5570 = vsel %vm5468, %v5291, %v5569
        %v5571 = vsel %vm5470, %v5303, %v5570
        %v5572 = vsel %vm5472, %v5315, %v5571
        %v5573 = vsel %vm5474, %v5327, %v5572
        %v5574 = vsel %vm5462, %v5261, %v5249
        %v5575 = vsel %vm5464, %v5273, %v5574
        %v5576 = vsel %vm5466, %v5285, %v5575
        %v5577 = vsel %vm5468, %v5297, %v5576
        %v5578 = vsel %vm5470, %v5309, %v5577
        %v5579 = vsel %vm5472, %v5321, %v5578
        %v5580 = vsel %vm5474, %v5333, %v5579
        %5597 = vst [vmem:[%s313] sm:$0xff] %v5475
        %5598 = vst [vmem:[%s313 + $0x8] sm:$0xff] %v5482
        %5599 = vst [vmem:[%s313 + $0x10] sm:$0xff] %v5489
        %5600 = vst [vmem:[%s313 + $0x18] sm:$0xff] %v5496
        %5601 = vst [vmem:[%s313 + $0x20] sm:$0xff] %v5503
        %5602 = vst [vmem:[%s313 + $0x28] sm:$0xff] %v5510
        %5603 = vst [vmem:[%s313 + $0x30] sm:$0xff] %v5517
        %5604 = vst [vmem:[%s313 + $0x38] sm:$0xff] %v5524
        %5605 = vst [vmem:[%s313 + $0x40] sm:$0xff] %v5531
        %5606 = vst [vmem:[%s313 + $0x48] sm:$0xff] %v5538
        %5607 = vst [vmem:[%s313 + $0x50] sm:$0xff] %v5545
        %5608 = vst [vmem:[%s313 + $0x58] sm:$0xff] %v5552
        %5609 = vst [vmem:[%s313 + $0x60] sm:$0xff] %v5559
        %5610 = vst [vmem:[%s313 + $0x68] sm:$0xff] %v5566
        %5611 = vst [vmem:[%s313 + $0x70] sm:$0xff] %v5573
        %5612 = vst [vmem:[%s313 + $0x78] sm:$0xff] %v5580
        %s5613 = sand.u32 %s187, 1
        %s5614 = scalar_lea.sflag [#allocation5], %s5613
        %s5615 = sand.u32 %s187, 1
        %s5616 = smul.addr %s5615, 128
        %s5617 = scalar_lea.vmem [#allocation8], %s5616
        // Predicated region
        $region57: #{tpu_custom_call.1} parent=47 // pred_check
          %p5618 = pneg %p197
        $region58: #{tpu_custom_call.1} parent=47 // pred_check_branch
          %5620 = sbr.rel (%p5618) target = $region60
        $region59: #{tpu_custom_call.1} parent=47 // pred_region
          %s5621 = smul.u32 8, %s27
          %s5623 = ssub.s32 2048, 2048
          %5624 = vsyncadd %s5614, %s5623
          %s5625 = smul.addr %s5621, 2
          %s5626 = smul.addr %s5625, 128
          %s5627 = scalar_lea.hbm %s7, %s5626
          %s5628 = sshll.u32 %s5617, 4
          %s5629 = int_to_ptr.vmem [resolvable:$true] %s5628
          %5634 = dma.vmem_to_hbm [thread:$0]  %s5629, 2048, %s5627, %s5614, 256, 256, 16
        $region60: #{tpu_custom_call.1} parent=47 // pred_fallthru
          _
      $region48: #{tpu_custom_call.1} parent=5 // pred_fallthru
        _
      %p5635 = scmp.le.s32.totalorder 2, %s22
      // Predicated region
      $region61: #{tpu_custom_call.1} parent=5 // pred_check
        %p5636 = pneg %p5635
      $region62: #{tpu_custom_call.1} parent=5 // pred_check_branch
        %5638 = sbr.rel (%p5636) target = $region64
      $region63: #{tpu_custom_call.1} parent=5 // pred_region
        %s5639 = ssub.s32 %s22, 2
        // Predicated region
        $region65: #{tpu_custom_call.1} parent=63 // pred_check
          %p5640 = pneg %p203
        $region66: #{tpu_custom_call.1} parent=63 // pred_check_branch
          %5642 = sbr.rel (%p5640) target = $region68
        $region67: #{tpu_custom_call.1} parent=63 // pred_region
          %s5643 = sand.u32 %s188, 1
          %s5644 = scalar_lea.sflag [#allocation5], %s5643
          %s5645 = sand.u32 %s188, 1
          %s5646 = smul.addr %s5645, 128
          %s5647 = scalar_lea.vmem [#allocation8], %s5646
          %5648 = dma.done %s5644, 2048
        $region68: #{tpu_custom_call.1} parent=63 // pred_fallthru
          _
      $region64: #{tpu_custom_call.1} parent=5 // pred_fallthru
        _
    $region6: #{tpu_custom_call.1} parent=1 // loop_footer
      %s26 = sadd.s32 1, %s22
    $region7: #{tpu_custom_call.1} parent=1 // loop_footer_branch
      %21 = sbr.rel target = $region3
    $region8: #{tpu_custom_call.1} parent=1 // loop_exit
      _
    %5649 = vsyncpa [#allocation4], 1
    %s5650 = scalar_lea.sflag [#allocation4], 1
    %5651 = vsyncpa %s5650, 1
    %5652 = vsyncpa [#allocation7], 1
    %5653 = vsyncpa [#allocation5], 1
    %s5654 = scalar_lea.sflag [#allocation5], 1
    %5655 = vsyncpa %s5654, 1

</llo_original>
